<compile_context>
chip_gen: v6e
topology: v6e:2x2x1
jax: 0.10.0
libtpu: 0.0.40
codegen_flags: <defaults>
</compile_context>

<pallas_src>
import functools

import jax
import jax.numpy as jnp
from jax import lax
from jax.experimental import pallas as pl
from jax.experimental.pallas import tpu as pltpu

EPS = 1e-5  # InstanceNorm2d default eps


def _fused_net_kernel(x_ref, w1_ref, w2_ref, w3_ref, w4_ref, o_ref, *, H, W):
    """All 4 (conv3x3 pad=1 -> InstanceNorm -> ReLU) layers for ONE sample.

    Layout: channels on sublanes, flattened spatial (H*W) on lanes.
      x_ref : (1, 3, H*W)
      wk_ref: (9, Cout, Cin)   tap-major weights, tap = 3*ky + kx
      o_ref : (1, 3, H*W)
    """
    HW = H * W

    # Flattened spatial coordinates of each lane position.
    pos = lax.broadcasted_iota(jnp.int32, (1, HW), 1)
    if W & (W - 1) == 0:  # power-of-two fast path: shifts/ands, no vector int div
        yv = jnp.right_shift(pos, W.bit_length() - 1)
        xv = jnp.bitwise_and(pos, W - 1)
    else:
        yv = pos // W
        xv = pos - yv * W

    def conv_in_relu(a, w_ref):
        """a: (Cin, HW) f32 -> (Cout, HW) f32."""
        cout = w_ref.shape[1]
        acc = jnp.zeros((cout, HW), jnp.float32)
        tap = 0
        for dy in (-1, 0, 1):
            for dx in (-1, 0, 1):
                off = dy * W + dx
                # shifted[p] = a[p + off]; wrap-around positions are zero-masked
                # below, which reproduces the conv's zero padding exactly.
                shifted = a if off == 0 else pltpu.roll(a, (-off) % HW, 1)
                conds = []
                if dy == -1:
                    conds.append(yv >= 1)
                elif dy == 1:
                    conds.append(yv <= H - 2)
                if dx == -1:
                    conds.append(xv >= 1)
                elif dx == 1:
                    conds.append(xv <= W - 2)
                if conds:
                    m = conds[0]
                    for c in conds[1:]:
                        m = jnp.logical_and(m, c)
                    shifted = jnp.where(m, shifted, 0.0)
                acc = acc + jnp.dot(w_ref[tap], shifted,
                                    preferred_element_type=jnp.float32)
                tap += 1
        # InstanceNorm2d (affine=False): per-channel mean / biased var over the
        # spatial dims of this single instance (matches PyTorch).
        mean = jnp.mean(acc, axis=1, keepdims=True)
        var = jnp.mean((acc - mean) ** 2, axis=1, keepdims=True)
        y = (acc - mean) * lax.rsqrt(var + EPS)
        return jnp.maximum(y, 0.0)  # ReLU

    a = x_ref[0]                       # (3, HW)
    a = conv_in_relu(a, w1_ref)        # 3  -> 16
    a = conv_in_relu(a, w2_ref)        # 16 -> 32
    a = conv_in_relu(a, w3_ref)        # 32 -> 16
    a = conv_in_relu(a, w4_ref)        # 16 -> 3
    o_ref[0] = a


def net_forward(x_nchw, weights):
    """Full Net forward. Input/output in PyTorch NCHW convention.

    weights: list of 4 HWIO conv kernels [(3,3,Cin,Cout), ...].
    """
    N, C, H, W = x_nchw.shape
    HW = H * W
    x_flat = x_nchw.reshape(N, C, HW)  # metadata-only reshape (wrapper side)

    # HWIO (3,3,Cin,Cout) -> tap-major (9, Cout, Cin), one-time wrapper-side prep.
    ws = [jnp.transpose(w, (0, 1, 3, 2)).reshape(9, w.shape[3], w.shape[2])
          for w in weights]
    cout_final = ws[-1].shape[1]

    kernel = functools.partial(_fused_net_kernel, H=H, W=W)
    out = pl.pallas_call(
        kernel,
        out_shape=jax.ShapeDtypeStruct((N, cout_final, HW), jnp.float32),
        grid_spec=pltpu.PrefetchScalarGridSpec(
            num_scalar_prefetch=0,
            grid=(N,),  # one fused 4-layer body per sample (instance norm is per-sample)
            in_specs=[
                pl.BlockSpec((1, C, HW), lambda n: (n, 0, 0)),
                # Weights: constant index_map -> stay VMEM-resident across grid steps.
                pl.BlockSpec(ws[0].shape, lambda n: (0, 0, 0)),
                pl.BlockSpec(ws[1].shape, lambda n: (0, 0, 0)),
                pl.BlockSpec(ws[2].shape, lambda n: (0, 0, 0)),
                pl.BlockSpec(ws[3].shape, lambda n: (0, 0, 0)),
            ],
            out_specs=pl.BlockSpec((1, cout_final, HW), lambda n: (n, 0, 0)),
        ),
        compiler_params=pltpu.CompilerParams(
            dimension_semantics=("parallel",)),
    )(x_flat, *ws)
    return out.reshape(N, cout_final, H, W)


def init_params(key):
    """Deterministic weight init for the 4 conv layers (HWIO)."""
    shapes = [(3, 3, 3, 16), (3, 3, 16, 32), (3, 3, 32, 16), (3, 3, 16, 3)]
    keys = jax.random.split(key, len(shapes))
    weights = []
    for k, s in zip(keys, shapes):
        fan_in = s[0] * s[1] * s[2]
        weights.append(jax.random.normal(k, s, jnp.float32) * (1.0 / fan_in) ** 0.5)
    return weights


# ---------------- pure-JAX reference (for correctness check) ----------------
def _ref_layer(x_nchw, w_hwio):
    y = lax.conv_general_dilated(
        x_nchw, w_hwio, window_strides=(1, 1), padding="SAME",
        dimension_numbers=("NCHW", "HWIO", "NCHW"))
    mean = jnp.mean(y, axis=(2, 3), keepdims=True)
    var = jnp.mean((y - mean) ** 2, axis=(2, 3), keepdims=True)
    y = (y - mean) * lax.rsqrt(var + EPS)
    return jnp.maximum(y, 0.0)


def _ref_forward(x_nchw, weights):
    x = x_nchw
    for w in weights:
        x = _ref_layer(x, w)
    return x


if __name__ == "__main__":
    key = jax.random.PRNGKey(0)
    k_x, k_w = jax.random.split(key)

    # small shapes consistent with the module: batch=2, 3 input channels, 16x16 spatial
    x = jax.random.normal(k_x, (2, 3, 16, 16), jnp.float32)
    weights = init_params(k_w)

    out = jax.block_until_ready(net_forward(x, weights))
    ref = jax.block_until_ready(_ref_forward(x, weights))

    assert out.shape == (2, 3, 16, 16)
    assert jnp.allclose(out, ref, atol=1e-3, rtol=1e-3), "mismatch vs JAX reference"

    print("KERNEL_OK")
</pallas_src>

<mosaic_0001>
module attributes {stable_mosaic.version = 11 : i64} {
  func.func @_fused_net_kernel(%arg0: i32, %arg1: memref<1x3x256xf32, #tpu.memory_space<vmem>>, %arg2: memref<9x16x3xf32, #tpu.memory_space<vmem>>, %arg3: memref<9x32x16xf32, #tpu.memory_space<vmem>>, %arg4: memref<9x16x32xf32, #tpu.memory_space<vmem>>, %arg5: memref<9x3x16xf32, #tpu.memory_space<vmem>>, %arg6: memref<1x3x256xf32, #tpu.memory_space<vmem>>) attributes {dimension_semantics = [#tpu.dimension_semantics<parallel>], iteration_bounds = array<i64: 2>, scalar_prefetch = 0 : i64, scratch_operands = 0 : i64, tpu.core_type = #tpu.core_type<tc>, window_params = [{transform_indices = @transform_0, window_bounds = array<i64: 1, 3, 256>}, {pipeline_mode = #tpu.pipeline_mode<synchronous>, transform_indices = @transform_1, window_bounds = array<i64: 9, 16, 3>}, {pipeline_mode = #tpu.pipeline_mode<synchronous>, transform_indices = @transform_2, window_bounds = array<i64: 9, 32, 16>}, {pipeline_mode = #tpu.pipeline_mode<synchronous>, transform_indices = @transform_3, window_bounds = array<i64: 9, 16, 32>}, {pipeline_mode = #tpu.pipeline_mode<synchronous>, transform_indices = @transform_4, window_bounds = array<i64: 9, 3, 16>}, {transform_indices = @transform_5, window_bounds = array<i64: 1, 3, 256>}]} {
    %0 = tpu.iota {dimensions = array<i32: 1>} : vector<1x256xi32>
    %c4_i32 = arith.constant 4 : i32
    %1 = vector.broadcast %c4_i32 : i32 to vector<1x256xi32>
    %2 = arith.shrsi %0, %1 : vector<1x256xi32>
    %c15_i32 = arith.constant 15 : i32
    %3 = vector.broadcast %c15_i32 : i32 to vector<1x256xi32>
    %4 = arith.andi %0, %3 : vector<1x256xi32>
    %c0 = arith.constant 0 : index
    %c0_0 = arith.constant 0 : index
    %c0_1 = arith.constant 0 : index
    %5 = vector.load %arg1[%c0, %c0_0, %c0_1] : memref<1x3x256xf32, #tpu.memory_space<vmem>>, vector<1x3x256xf32>
    %6 = vector.shape_cast %5 : vector<1x3x256xf32> to vector<3x256xf32>
    %cst = arith.constant 0.000000e+00 : f32
    %7 = vector.broadcast %cst : f32 to vector<16x256xf32>
    %c17_i32 = arith.constant 17 : i32
    %8 = tpu.dynamic_rotate %6 by %c17_i32 dim 1 : vector<3x256xf32>, i32 -> vector<3x256xf32>
    %c1_i32 = arith.constant 1 : i32
    %9 = vector.broadcast %c1_i32 : i32 to vector<1x256xi32>
    %10 = arith.cmpi sge, %2, %9 : vector<1x256xi32>
    %c1_i32_2 = arith.constant 1 : i32
    %11 = vector.broadcast %c1_i32_2 : i32 to vector<1x256xi32>
    %12 = arith.cmpi sge, %4, %11 : vector<1x256xi32>
    %13 = arith.andi %10, %12 : vector<1x256xi1>
    %cst_3 = arith.constant 0.000000e+00 : f32
    %14 = vector.shape_cast %13 : vector<1x256xi1> to vector<1x256xi1>
    %15 = vector.broadcast %14 : vector<1x256xi1> to vector<3x256xi1>
    %16 = vector.broadcast %cst_3 : f32 to vector<3x256xf32>
    %17 = arith.select %15, %8, %16 : vector<3x256xi1>, vector<3x256xf32>
    %c0_4 = arith.constant 0 : index
    %c0_5 = arith.constant 0 : index
    %c0_6 = arith.constant 0 : index
    %18 = vector.load %arg2[%c0_4, %c0_5, %c0_6] : memref<9x16x3xf32, #tpu.memory_space<vmem>>, vector<1x16x3xf32>
    %19 = vector.shape_cast %18 : vector<1x16x3xf32> to vector<16x3xf32>
    %cst_7 = arith.constant dense<0.000000e+00> : vector<16x256xf32>
    %20 = tpu.matmul %19, %17, %cst_7 {dimension_numbers = #tpu.dot_dimension_numbers<[1], [0], [0], [1], [0, 0, 1, 1], [], []>} : vector<16x3xf32>, vector<3x256xf32>, vector<16x256xf32> -> vector<16x256xf32>
    %21 = arith.addf %7, %20 : vector<16x256xf32>
    %c16_i32 = arith.constant 16 : i32
    %22 = tpu.dynamic_rotate %6 by %c16_i32 dim 1 : vector<3x256xf32>, i32 -> vector<3x256xf32>
    %c1_i32_8 = arith.constant 1 : i32
    %23 = vector.broadcast %c1_i32_8 : i32 to vector<1x256xi32>
    %24 = arith.cmpi sge, %2, %23 : vector<1x256xi32>
    %cst_9 = arith.constant 0.000000e+00 : f32
    %25 = vector.shape_cast %24 : vector<1x256xi1> to vector<1x256xi1>
    %26 = vector.broadcast %25 : vector<1x256xi1> to vector<3x256xi1>
    %27 = vector.broadcast %cst_9 : f32 to vector<3x256xf32>
    %28 = arith.select %26, %22, %27 : vector<3x256xi1>, vector<3x256xf32>
    %c1 = arith.constant 1 : index
    %c0_10 = arith.constant 0 : index
    %c0_11 = arith.constant 0 : index
    %29 = vector.load %arg2[%c1, %c0_10, %c0_11] : memref<9x16x3xf32, #tpu.memory_space<vmem>>, vector<1x16x3xf32>
    %30 = vector.shape_cast %29 : vector<1x16x3xf32> to vector<16x3xf32>
    %cst_12 = arith.constant dense<0.000000e+00> : vector<16x256xf32>
    %31 = tpu.matmul %30, %28, %cst_12 {dimension_numbers = #tpu.dot_dimension_numbers<[1], [0], [0], [1], [0, 0, 1, 1], [], []>} : vector<16x3xf32>, vector<3x256xf32>, vector<16x256xf32> -> vector<16x256xf32>
    %32 = arith.addf %21, %31 : vector<16x256xf32>
    %c15_i32_13 = arith.constant 15 : i32
    %33 = tpu.dynamic_rotate %6 by %c15_i32_13 dim 1 : vector<3x256xf32>, i32 -> vector<3x256xf32>
    %c1_i32_14 = arith.constant 1 : i32
    %34 = vector.broadcast %c1_i32_14 : i32 to vector<1x256xi32>
    %35 = arith.cmpi sge, %2, %34 : vector<1x256xi32>
    %c14_i32 = arith.constant 14 : i32
    %36 = vector.broadcast %c14_i32 : i32 to vector<1x256xi32>
    %37 = arith.cmpi sle, %4, %36 : vector<1x256xi32>
    %38 = arith.andi %35, %37 : vector<1x256xi1>
    %cst_15 = arith.constant 0.000000e+00 : f32
    %39 = vector.shape_cast %38 : vector<1x256xi1> to vector<1x256xi1>
    %40 = vector.broadcast %39 : vector<1x256xi1> to vector<3x256xi1>
    %41 = vector.broadcast %cst_15 : f32 to vector<3x256xf32>
    %42 = arith.select %40, %33, %41 : vector<3x256xi1>, vector<3x256xf32>
    %c2 = arith.constant 2 : index
    %c0_16 = arith.constant 0 : index
    %c0_17 = arith.constant 0 : index
    %43 = vector.load %arg2[%c2, %c0_16, %c0_17] : memref<9x16x3xf32, #tpu.memory_space<vmem>>, vector<1x16x3xf32>
    %44 = vector.shape_cast %43 : vector<1x16x3xf32> to vector<16x3xf32>
    %cst_18 = arith.constant dense<0.000000e+00> : vector<16x256xf32>
    %45 = tpu.matmul %44, %42, %cst_18 {dimension_numbers = #tpu.dot_dimension_numbers<[1], [0], [0], [1], [0, 0, 1, 1], [], []>} : vector<16x3xf32>, vector<3x256xf32>, vector<16x256xf32> -> vector<16x256xf32>
    %46 = arith.addf %32, %45 : vector<16x256xf32>
    %c1_i32_19 = arith.constant 1 : i32
    %47 = tpu.dynamic_rotate %6 by %c1_i32_19 dim 1 : vector<3x256xf32>, i32 -> vector<3x256xf32>
    %c1_i32_20 = arith.constant 1 : i32
    %48 = vector.broadcast %c1_i32_20 : i32 to vector<1x256xi32>
    %49 = arith.cmpi sge, %4, %48 : vector<1x256xi32>
    %cst_21 = arith.constant 0.000000e+00 : f32
    %50 = vector.shape_cast %49 : vector<1x256xi1> to vector<1x256xi1>
    %51 = vector.broadcast %50 : vector<1x256xi1> to vector<3x256xi1>
    %52 = vector.broadcast %cst_21 : f32 to vector<3x256xf32>
    %53 = arith.select %51, %47, %52 : vector<3x256xi1>, vector<3x256xf32>
    %c3 = arith.constant 3 : index
    %c0_22 = arith.constant 0 : index
    %c0_23 = arith.constant 0 : index
    %54 = vector.load %arg2[%c3, %c0_22, %c0_23] : memref<9x16x3xf32, #tpu.memory_space<vmem>>, vector<1x16x3xf32>
    %55 = vector.shape_cast %54 : vector<1x16x3xf32> to vector<16x3xf32>
    %cst_24 = arith.constant dense<0.000000e+00> : vector<16x256xf32>
    %56 = tpu.matmul %55, %53, %cst_24 {dimension_numbers = #tpu.dot_dimension_numbers<[1], [0], [0], [1], [0, 0, 1, 1], [], []>} : vector<16x3xf32>, vector<3x256xf32>, vector<16x256xf32> -> vector<16x256xf32>
    %57 = arith.addf %46, %56 : vector<16x256xf32>
    %c4 = arith.constant 4 : index
    %c0_25 = arith.constant 0 : index
    %c0_26 = arith.constant 0 : index
    %58 = vector.load %arg2[%c4, %c0_25, %c0_26] : memref<9x16x3xf32, #tpu.memory_space<vmem>>, vector<1x16x3xf32>
    %59 = vector.shape_cast %58 : vector<1x16x3xf32> to vector<16x3xf32>
    %cst_27 = arith.constant dense<0.000000e+00> : vector<16x256xf32>
    %60 = tpu.matmul %59, %6, %cst_27 {dimension_numbers = #tpu.dot_dimension_numbers<[1], [0], [0], [1], [0, 0, 1, 1], [], []>} : vector<16x3xf32>, vector<3x256xf32>, vector<16x256xf32> -> vector<16x256xf32>
    %61 = arith.addf %57, %60 : vector<16x256xf32>
    %c255_i32 = arith.constant 255 : i32
    %62 = tpu.dynamic_rotate %6 by %c255_i32 dim 1 : vector<3x256xf32>, i32 -> vector<3x256xf32>
    %c14_i32_28 = arith.constant 14 : i32
    %63 = vector.broadcast %c14_i32_28 : i32 to vector<1x256xi32>
    %64 = arith.cmpi sle, %4, %63 : vector<1x256xi32>
    %cst_29 = arith.constant 0.000000e+00 : f32
    %65 = vector.shape_cast %64 : vector<1x256xi1> to vector<1x256xi1>
    %66 = vector.broadcast %65 : vector<1x256xi1> to vector<3x256xi1>
    %67 = vector.broadcast %cst_29 : f32 to vector<3x256xf32>
    %68 = arith.select %66, %62, %67 : vector<3x256xi1>, vector<3x256xf32>
    %c5 = arith.constant 5 : index
    %c0_30 = arith.constant 0 : index
    %c0_31 = arith.constant 0 : index
    %69 = vector.load %arg2[%c5, %c0_30, %c0_31] : memref<9x16x3xf32, #tpu.memory_space<vmem>>, vector<1x16x3xf32>
    %70 = vector.shape_cast %69 : vector<1x16x3xf32> to vector<16x3xf32>
    %cst_32 = arith.constant dense<0.000000e+00> : vector<16x256xf32>
    %71 = tpu.matmul %70, %68, %cst_32 {dimension_numbers = #tpu.dot_dimension_numbers<[1], [0], [0], [1], [0, 0, 1, 1], [], []>} : vector<16x3xf32>, vector<3x256xf32>, vector<16x256xf32> -> vector<16x256xf32>
    %72 = arith.addf %61, %71 : vector<16x256xf32>
    %c241_i32 = arith.constant 241 : i32
    %73 = tpu.dynamic_rotate %6 by %c241_i32 dim 1 : vector<3x256xf32>, i32 -> vector<3x256xf32>
    %c14_i32_33 = arith.constant 14 : i32
    %74 = vector.broadcast %c14_i32_33 : i32 to vector<1x256xi32>
    %75 = arith.cmpi sle, %2, %74 : vector<1x256xi32>
    %c1_i32_34 = arith.constant 1 : i32
    %76 = vector.broadcast %c1_i32_34 : i32 to vector<1x256xi32>
    %77 = arith.cmpi sge, %4, %76 : vector<1x256xi32>
    %78 = arith.andi %75, %77 : vector<1x256xi1>
    %cst_35 = arith.constant 0.000000e+00 : f32
    %79 = vector.shape_cast %78 : vector<1x256xi1> to vector<1x256xi1>
    %80 = vector.broadcast %79 : vector<1x256xi1> to vector<3x256xi1>
    %81 = vector.broadcast %cst_35 : f32 to vector<3x256xf32>
    %82 = arith.select %80, %73, %81 : vector<3x256xi1>, vector<3x256xf32>
    %c6 = arith.constant 6 : index
    %c0_36 = arith.constant 0 : index
    %c0_37 = arith.constant 0 : index
    %83 = vector.load %arg2[%c6, %c0_36, %c0_37] : memref<9x16x3xf32, #tpu.memory_space<vmem>>, vector<1x16x3xf32>
    %84 = vector.shape_cast %83 : vector<1x16x3xf32> to vector<16x3xf32>
    %cst_38 = arith.constant dense<0.000000e+00> : vector<16x256xf32>
    %85 = tpu.matmul %84, %82, %cst_38 {dimension_numbers = #tpu.dot_dimension_numbers<[1], [0], [0], [1], [0, 0, 1, 1], [], []>} : vector<16x3xf32>, vector<3x256xf32>, vector<16x256xf32> -> vector<16x256xf32>
    %86 = arith.addf %72, %85 : vector<16x256xf32>
    %c240_i32 = arith.constant 240 : i32
    %87 = tpu.dynamic_rotate %6 by %c240_i32 dim 1 : vector<3x256xf32>, i32 -> vector<3x256xf32>
    %c14_i32_39 = arith.constant 14 : i32
    %88 = vector.broadcast %c14_i32_39 : i32 to vector<1x256xi32>
    %89 = arith.cmpi sle, %2, %88 : vector<1x256xi32>
    %cst_40 = arith.constant 0.000000e+00 : f32
    %90 = vector.shape_cast %89 : vector<1x256xi1> to vector<1x256xi1>
    %91 = vector.broadcast %90 : vector<1x256xi1> to vector<3x256xi1>
    %92 = vector.broadcast %cst_40 : f32 to vector<3x256xf32>
    %93 = arith.select %91, %87, %92 : vector<3x256xi1>, vector<3x256xf32>
    %c7 = arith.constant 7 : index
    %c0_41 = arith.constant 0 : index
    %c0_42 = arith.constant 0 : index
    %94 = vector.load %arg2[%c7, %c0_41, %c0_42] : memref<9x16x3xf32, #tpu.memory_space<vmem>>, vector<1x16x3xf32>
    %95 = vector.shape_cast %94 : vector<1x16x3xf32> to vector<16x3xf32>
    %cst_43 = arith.constant dense<0.000000e+00> : vector<16x256xf32>
    %96 = tpu.matmul %95, %93, %cst_43 {dimension_numbers = #tpu.dot_dimension_numbers<[1], [0], [0], [1], [0, 0, 1, 1], [], []>} : vector<16x3xf32>, vector<3x256xf32>, vector<16x256xf32> -> vector<16x256xf32>
    %97 = arith.addf %86, %96 : vector<16x256xf32>
    %c239_i32 = arith.constant 239 : i32
    %98 = tpu.dynamic_rotate %6 by %c239_i32 dim 1 : vector<3x256xf32>, i32 -> vector<3x256xf32>
    %c14_i32_44 = arith.constant 14 : i32
    %99 = vector.broadcast %c14_i32_44 : i32 to vector<1x256xi32>
    %100 = arith.cmpi sle, %2, %99 : vector<1x256xi32>
    %c14_i32_45 = arith.constant 14 : i32
    %101 = vector.broadcast %c14_i32_45 : i32 to vector<1x256xi32>
    %102 = arith.cmpi sle, %4, %101 : vector<1x256xi32>
    %103 = arith.andi %100, %102 : vector<1x256xi1>
    %cst_46 = arith.constant 0.000000e+00 : f32
    %104 = vector.shape_cast %103 : vector<1x256xi1> to vector<1x256xi1>
    %105 = vector.broadcast %104 : vector<1x256xi1> to vector<3x256xi1>
    %106 = vector.broadcast %cst_46 : f32 to vector<3x256xf32>
    %107 = arith.select %105, %98, %106 : vector<3x256xi1>, vector<3x256xf32>
    %c8 = arith.constant 8 : index
    %c0_47 = arith.constant 0 : index
    %c0_48 = arith.constant 0 : index
    %108 = vector.load %arg2[%c8, %c0_47, %c0_48] : memref<9x16x3xf32, #tpu.memory_space<vmem>>, vector<1x16x3xf32>
    %109 = vector.shape_cast %108 : vector<1x16x3xf32> to vector<16x3xf32>
    %cst_49 = arith.constant dense<0.000000e+00> : vector<16x256xf32>
    %110 = tpu.matmul %109, %107, %cst_49 {dimension_numbers = #tpu.dot_dimension_numbers<[1], [0], [0], [1], [0, 0, 1, 1], [], []>} : vector<16x3xf32>, vector<3x256xf32>, vector<16x256xf32> -> vector<16x256xf32>
    %111 = arith.addf %97, %110 : vector<16x256xf32>
    %cst_50 = arith.constant dense<0.000000e+00> : vector<16xf32>
    %112 = vector.multi_reduction <add>, %111, %cst_50 [1] : vector<16x256xf32> to vector<16xf32>
    %113 = vector.shape_cast %112 : vector<16xf32> to vector<16x1xf32>
    %cst_51 = arith.constant 2.560000e+02 : f32
    %114 = vector.broadcast %cst_51 : f32 to vector<16x1xf32>
    %115 = arith.divf %113, %114 : vector<16x1xf32>
    %116 = vector.broadcast %115 : vector<16x1xf32> to vector<16x256xf32>
    %117 = arith.subf %111, %116 : vector<16x256xf32>
    %118 = arith.mulf %117, %117 : vector<16x256xf32>
    %cst_52 = arith.constant dense<0.000000e+00> : vector<16xf32>
    %119 = vector.multi_reduction <add>, %118, %cst_52 [1] : vector<16x256xf32> to vector<16xf32>
    %120 = vector.shape_cast %119 : vector<16xf32> to vector<16x1xf32>
    %cst_53 = arith.constant 2.560000e+02 : f32
    %121 = vector.broadcast %cst_53 : f32 to vector<16x1xf32>
    %122 = arith.divf %120, %121 : vector<16x1xf32>
    %123 = vector.broadcast %115 : vector<16x1xf32> to vector<16x256xf32>
    %124 = arith.subf %111, %123 : vector<16x256xf32>
    %cst_54 = arith.constant 9.99999974E-6 : f32
    %125 = vector.broadcast %cst_54 : f32 to vector<16x1xf32>
    %126 = arith.addf %122, %125 : vector<16x1xf32>
    %127 = math.rsqrt %126 : vector<16x1xf32>
    %128 = vector.broadcast %127 : vector<16x1xf32> to vector<16x256xf32>
    %129 = arith.mulf %124, %128 : vector<16x256xf32>
    %cst_55 = arith.constant 0.000000e+00 : f32
    %130 = vector.broadcast %cst_55 : f32 to vector<16x256xf32>
    %131 = arith.maximumf %129, %130 : vector<16x256xf32>
    %cst_56 = arith.constant 0.000000e+00 : f32
    %132 = vector.broadcast %cst_56 : f32 to vector<32x256xf32>
    %c17_i32_57 = arith.constant 17 : i32
    %133 = tpu.dynamic_rotate %131 by %c17_i32_57 dim 1 : vector<16x256xf32>, i32 -> vector<16x256xf32>
    %c1_i32_58 = arith.constant 1 : i32
    %134 = vector.broadcast %c1_i32_58 : i32 to vector<1x256xi32>
    %135 = arith.cmpi sge, %2, %134 : vector<1x256xi32>
    %c1_i32_59 = arith.constant 1 : i32
    %136 = vector.broadcast %c1_i32_59 : i32 to vector<1x256xi32>
    %137 = arith.cmpi sge, %4, %136 : vector<1x256xi32>
    %138 = arith.andi %135, %137 : vector<1x256xi1>
    %cst_60 = arith.constant 0.000000e+00 : f32
    %139 = vector.shape_cast %138 : vector<1x256xi1> to vector<1x256xi1>
    %140 = vector.broadcast %139 : vector<1x256xi1> to vector<16x256xi1>
    %141 = vector.broadcast %cst_60 : f32 to vector<16x256xf32>
    %142 = arith.select %140, %133, %141 : vector<16x256xi1>, vector<16x256xf32>
    %c0_61 = arith.constant 0 : index
    %c0_62 = arith.constant 0 : index
    %c0_63 = arith.constant 0 : index
    %143 = vector.load %arg3[%c0_61, %c0_62, %c0_63] : memref<9x32x16xf32, #tpu.memory_space<vmem>>, vector<1x32x16xf32>
    %144 = vector.shape_cast %143 : vector<1x32x16xf32> to vector<32x16xf32>
    %cst_64 = arith.constant dense<0.000000e+00> : vector<32x256xf32>
    %145 = tpu.matmul %144, %142, %cst_64 {dimension_numbers = #tpu.dot_dimension_numbers<[1], [0], [0], [1], [0, 0, 1, 1], [], []>} : vector<32x16xf32>, vector<16x256xf32>, vector<32x256xf32> -> vector<32x256xf32>
    %146 = arith.addf %132, %145 : vector<32x256xf32>
    %c16_i32_65 = arith.constant 16 : i32
    %147 = tpu.dynamic_rotate %131 by %c16_i32_65 dim 1 : vector<16x256xf32>, i32 -> vector<16x256xf32>
    %c1_i32_66 = arith.constant 1 : i32
    %148 = vector.broadcast %c1_i32_66 : i32 to vector<1x256xi32>
    %149 = arith.cmpi sge, %2, %148 : vector<1x256xi32>
    %cst_67 = arith.constant 0.000000e+00 : f32
    %150 = vector.shape_cast %149 : vector<1x256xi1> to vector<1x256xi1>
    %151 = vector.broadcast %150 : vector<1x256xi1> to vector<16x256xi1>
    %152 = vector.broadcast %cst_67 : f32 to vector<16x256xf32>
    %153 = arith.select %151, %147, %152 : vector<16x256xi1>, vector<16x256xf32>
    %c1_68 = arith.constant 1 : index
    %c0_69 = arith.constant 0 : index
    %c0_70 = arith.constant 0 : index
    %154 = vector.load %arg3[%c1_68, %c0_69, %c0_70] : memref<9x32x16xf32, #tpu.memory_space<vmem>>, vector<1x32x16xf32>
    %155 = vector.shape_cast %154 : vector<1x32x16xf32> to vector<32x16xf32>
    %cst_71 = arith.constant dense<0.000000e+00> : vector<32x256xf32>
    %156 = tpu.matmul %155, %153, %cst_71 {dimension_numbers = #tpu.dot_dimension_numbers<[1], [0], [0], [1], [0, 0, 1, 1], [], []>} : vector<32x16xf32>, vector<16x256xf32>, vector<32x256xf32> -> vector<32x256xf32>
    %157 = arith.addf %146, %156 : vector<32x256xf32>
    %c15_i32_72 = arith.constant 15 : i32
    %158 = tpu.dynamic_rotate %131 by %c15_i32_72 dim 1 : vector<16x256xf32>, i32 -> vector<16x256xf32>
    %c1_i32_73 = arith.constant 1 : i32
    %159 = vector.broadcast %c1_i32_73 : i32 to vector<1x256xi32>
    %160 = arith.cmpi sge, %2, %159 : vector<1x256xi32>
    %c14_i32_74 = arith.constant 14 : i32
    %161 = vector.broadcast %c14_i32_74 : i32 to vector<1x256xi32>
    %162 = arith.cmpi sle, %4, %161 : vector<1x256xi32>
    %163 = arith.andi %160, %162 : vector<1x256xi1>
    %cst_75 = arith.constant 0.000000e+00 : f32
    %164 = vector.shape_cast %163 : vector<1x256xi1> to vector<1x256xi1>
    %165 = vector.broadcast %164 : vector<1x256xi1> to vector<16x256xi1>
    %166 = vector.broadcast %cst_75 : f32 to vector<16x256xf32>
    %167 = arith.select %165, %158, %166 : vector<16x256xi1>, vector<16x256xf32>
    %c2_76 = arith.constant 2 : index
    %c0_77 = arith.constant 0 : index
    %c0_78 = arith.constant 0 : index
    %168 = vector.load %arg3[%c2_76, %c0_77, %c0_78] : memref<9x32x16xf32, #tpu.memory_space<vmem>>, vector<1x32x16xf32>
    %169 = vector.shape_cast %168 : vector<1x32x16xf32> to vector<32x16xf32>
    %cst_79 = arith.constant dense<0.000000e+00> : vector<32x256xf32>
    %170 = tpu.matmul %169, %167, %cst_79 {dimension_numbers = #tpu.dot_dimension_numbers<[1], [0], [0], [1], [0, 0, 1, 1], [], []>} : vector<32x16xf32>, vector<16x256xf32>, vector<32x256xf32> -> vector<32x256xf32>
    %171 = arith.addf %157, %170 : vector<32x256xf32>
    %c1_i32_80 = arith.constant 1 : i32
    %172 = tpu.dynamic_rotate %131 by %c1_i32_80 dim 1 : vector<16x256xf32>, i32 -> vector<16x256xf32>
    %c1_i32_81 = arith.constant 1 : i32
    %173 = vector.broadcast %c1_i32_81 : i32 to vector<1x256xi32>
    %174 = arith.cmpi sge, %4, %173 : vector<1x256xi32>
    %cst_82 = arith.constant 0.000000e+00 : f32
    %175 = vector.shape_cast %174 : vector<1x256xi1> to vector<1x256xi1>
    %176 = vector.broadcast %175 : vector<1x256xi1> to vector<16x256xi1>
    %177 = vector.broadcast %cst_82 : f32 to vector<16x256xf32>
    %178 = arith.select %176, %172, %177 : vector<16x256xi1>, vector<16x256xf32>
    %c3_83 = arith.constant 3 : index
    %c0_84 = arith.constant 0 : index
    %c0_85 = arith.constant 0 : index
    %179 = vector.load %arg3[%c3_83, %c0_84, %c0_85] : memref<9x32x16xf32, #tpu.memory_space<vmem>>, vector<1x32x16xf32>
    %180 = vector.shape_cast %179 : vector<1x32x16xf32> to vector<32x16xf32>
    %cst_86 = arith.constant dense<0.000000e+00> : vector<32x256xf32>
    %181 = tpu.matmul %180, %178, %cst_86 {dimension_numbers = #tpu.dot_dimension_numbers<[1], [0], [0], [1], [0, 0, 1, 1], [], []>} : vector<32x16xf32>, vector<16x256xf32>, vector<32x256xf32> -> vector<32x256xf32>
    %182 = arith.addf %171, %181 : vector<32x256xf32>
    %c4_87 = arith.constant 4 : index
    %c0_88 = arith.constant 0 : index
    %c0_89 = arith.constant 0 : index
    %183 = vector.load %arg3[%c4_87, %c0_88, %c0_89] : memref<9x32x16xf32, #tpu.memory_space<vmem>>, vector<1x32x16xf32>
    %184 = vector.shape_cast %183 : vector<1x32x16xf32> to vector<32x16xf32>
    %cst_90 = arith.constant dense<0.000000e+00> : vector<32x256xf32>
    %185 = tpu.matmul %184, %131, %cst_90 {dimension_numbers = #tpu.dot_dimension_numbers<[1], [0], [0], [1], [0, 0, 1, 1], [], []>} : vector<32x16xf32>, vector<16x256xf32>, vector<32x256xf32> -> vector<32x256xf32>
    %186 = arith.addf %182, %185 : vector<32x256xf32>
    %c255_i32_91 = arith.constant 255 : i32
    %187 = tpu.dynamic_rotate %131 by %c255_i32_91 dim 1 : vector<16x256xf32>, i32 -> vector<16x256xf32>
    %c14_i32_92 = arith.constant 14 : i32
    %188 = vector.broadcast %c14_i32_92 : i32 to vector<1x256xi32>
    %189 = arith.cmpi sle, %4, %188 : vector<1x256xi32>
    %cst_93 = arith.constant 0.000000e+00 : f32
    %190 = vector.shape_cast %189 : vector<1x256xi1> to vector<1x256xi1>
    %191 = vector.broadcast %190 : vector<1x256xi1> to vector<16x256xi1>
    %192 = vector.broadcast %cst_93 : f32 to vector<16x256xf32>
    %193 = arith.select %191, %187, %192 : vector<16x256xi1>, vector<16x256xf32>
    %c5_94 = arith.constant 5 : index
    %c0_95 = arith.constant 0 : index
    %c0_96 = arith.constant 0 : index
    %194 = vector.load %arg3[%c5_94, %c0_95, %c0_96] : memref<9x32x16xf32, #tpu.memory_space<vmem>>, vector<1x32x16xf32>
    %195 = vector.shape_cast %194 : vector<1x32x16xf32> to vector<32x16xf32>
    %cst_97 = arith.constant dense<0.000000e+00> : vector<32x256xf32>
    %196 = tpu.matmul %195, %193, %cst_97 {dimension_numbers = #tpu.dot_dimension_numbers<[1], [0], [0], [1], [0, 0, 1, 1], [], []>} : vector<32x16xf32>, vector<16x256xf32>, vector<32x256xf32> -> vector<32x256xf32>
    %197 = arith.addf %186, %196 : vector<32x256xf32>
    %c241_i32_98 = arith.constant 241 : i32
    %198 = tpu.dynamic_rotate %131 by %c241_i32_98 dim 1 : vector<16x256xf32>, i32 -> vector<16x256xf32>
    %c14_i32_99 = arith.constant 14 : i32
    %199 = vector.broadcast %c14_i32_99 : i32 to vector<1x256xi32>
    %200 = arith.cmpi sle, %2, %199 : vector<1x256xi32>
    %c1_i32_100 = arith.constant 1 : i32
    %201 = vector.broadcast %c1_i32_100 : i32 to vector<1x256xi32>
    %202 = arith.cmpi sge, %4, %201 : vector<1x256xi32>
    %203 = arith.andi %200, %202 : vector<1x256xi1>
    %cst_101 = arith.constant 0.000000e+00 : f32
    %204 = vector.shape_cast %203 : vector<1x256xi1> to vector<1x256xi1>
    %205 = vector.broadcast %204 : vector<1x256xi1> to vector<16x256xi1>
    %206 = vector.broadcast %cst_101 : f32 to vector<16x256xf32>
    %207 = arith.select %205, %198, %206 : vector<16x256xi1>, vector<16x256xf32>
    %c6_102 = arith.constant 6 : index
    %c0_103 = arith.constant 0 : index
    %c0_104 = arith.constant 0 : index
    %208 = vector.load %arg3[%c6_102, %c0_103, %c0_104] : memref<9x32x16xf32, #tpu.memory_space<vmem>>, vector<1x32x16xf32>
    %209 = vector.shape_cast %208 : vector<1x32x16xf32> to vector<32x16xf32>
    %cst_105 = arith.constant dense<0.000000e+00> : vector<32x256xf32>
    %210 = tpu.matmul %209, %207, %cst_105 {dimension_numbers = #tpu.dot_dimension_numbers<[1], [0], [0], [1], [0, 0, 1, 1], [], []>} : vector<32x16xf32>, vector<16x256xf32>, vector<32x256xf32> -> vector<32x256xf32>
    %211 = arith.addf %197, %210 : vector<32x256xf32>
    %c240_i32_106 = arith.constant 240 : i32
    %212 = tpu.dynamic_rotate %131 by %c240_i32_106 dim 1 : vector<16x256xf32>, i32 -> vector<16x256xf32>
    %c14_i32_107 = arith.constant 14 : i32
    %213 = vector.broadcast %c14_i32_107 : i32 to vector<1x256xi32>
    %214 = arith.cmpi sle, %2, %213 : vector<1x256xi32>
    %cst_108 = arith.constant 0.000000e+00 : f32
    %215 = vector.shape_cast %214 : vector<1x256xi1> to vector<1x256xi1>
    %216 = vector.broadcast %215 : vector<1x256xi1> to vector<16x256xi1>
    %217 = vector.broadcast %cst_108 : f32 to vector<16x256xf32>
    %218 = arith.select %216, %212, %217 : vector<16x256xi1>, vector<16x256xf32>
    %c7_109 = arith.constant 7 : index
    %c0_110 = arith.constant 0 : index
    %c0_111 = arith.constant 0 : index
    %219 = vector.load %arg3[%c7_109, %c0_110, %c0_111] : memref<9x32x16xf32, #tpu.memory_space<vmem>>, vector<1x32x16xf32>
    %220 = vector.shape_cast %219 : vector<1x32x16xf32> to vector<32x16xf32>
    %cst_112 = arith.constant dense<0.000000e+00> : vector<32x256xf32>
    %221 = tpu.matmul %220, %218, %cst_112 {dimension_numbers = #tpu.dot_dimension_numbers<[1], [0], [0], [1], [0, 0, 1, 1], [], []>} : vector<32x16xf32>, vector<16x256xf32>, vector<32x256xf32> -> vector<32x256xf32>
    %222 = arith.addf %211, %221 : vector<32x256xf32>
    %c239_i32_113 = arith.constant 239 : i32
    %223 = tpu.dynamic_rotate %131 by %c239_i32_113 dim 1 : vector<16x256xf32>, i32 -> vector<16x256xf32>
    %c14_i32_114 = arith.constant 14 : i32
    %224 = vector.broadcast %c14_i32_114 : i32 to vector<1x256xi32>
    %225 = arith.cmpi sle, %2, %224 : vector<1x256xi32>
    %c14_i32_115 = arith.constant 14 : i32
    %226 = vector.broadcast %c14_i32_115 : i32 to vector<1x256xi32>
    %227 = arith.cmpi sle, %4, %226 : vector<1x256xi32>
    %228 = arith.andi %225, %227 : vector<1x256xi1>
    %cst_116 = arith.constant 0.000000e+00 : f32
    %229 = vector.shape_cast %228 : vector<1x256xi1> to vector<1x256xi1>
    %230 = vector.broadcast %229 : vector<1x256xi1> to vector<16x256xi1>
    %231 = vector.broadcast %cst_116 : f32 to vector<16x256xf32>
    %232 = arith.select %230, %223, %231 : vector<16x256xi1>, vector<16x256xf32>
    %c8_117 = arith.constant 8 : index
    %c0_118 = arith.constant 0 : index
    %c0_119 = arith.constant 0 : index
    %233 = vector.load %arg3[%c8_117, %c0_118, %c0_119] : memref<9x32x16xf32, #tpu.memory_space<vmem>>, vector<1x32x16xf32>
    %234 = vector.shape_cast %233 : vector<1x32x16xf32> to vector<32x16xf32>
    %cst_120 = arith.constant dense<0.000000e+00> : vector<32x256xf32>
    %235 = tpu.matmul %234, %232, %cst_120 {dimension_numbers = #tpu.dot_dimension_numbers<[1], [0], [0], [1], [0, 0, 1, 1], [], []>} : vector<32x16xf32>, vector<16x256xf32>, vector<32x256xf32> -> vector<32x256xf32>
    %236 = arith.addf %222, %235 : vector<32x256xf32>
    %cst_121 = arith.constant dense<0.000000e+00> : vector<32xf32>
    %237 = vector.multi_reduction <add>, %236, %cst_121 [1] : vector<32x256xf32> to vector<32xf32>
    %238 = vector.shape_cast %237 : vector<32xf32> to vector<32x1xf32>
    %cst_122 = arith.constant 2.560000e+02 : f32
    %239 = vector.broadcast %cst_122 : f32 to vector<32x1xf32>
    %240 = arith.divf %238, %239 : vector<32x1xf32>
    %241 = vector.broadcast %240 : vector<32x1xf32> to vector<32x256xf32>
    %242 = arith.subf %236, %241 : vector<32x256xf32>
    %243 = arith.mulf %242, %242 : vector<32x256xf32>
    %cst_123 = arith.constant dense<0.000000e+00> : vector<32xf32>
    %244 = vector.multi_reduction <add>, %243, %cst_123 [1] : vector<32x256xf32> to vector<32xf32>
    %245 = vector.shape_cast %244 : vector<32xf32> to vector<32x1xf32>
    %cst_124 = arith.constant 2.560000e+02 : f32
    %246 = vector.broadcast %cst_124 : f32 to vector<32x1xf32>
    %247 = arith.divf %245, %246 : vector<32x1xf32>
    %248 = vector.broadcast %240 : vector<32x1xf32> to vector<32x256xf32>
    %249 = arith.subf %236, %248 : vector<32x256xf32>
    %cst_125 = arith.constant 9.99999974E-6 : f32
    %250 = vector.broadcast %cst_125 : f32 to vector<32x1xf32>
    %251 = arith.addf %247, %250 : vector<32x1xf32>
    %252 = math.rsqrt %251 : vector<32x1xf32>
    %253 = vector.broadcast %252 : vector<32x1xf32> to vector<32x256xf32>
    %254 = arith.mulf %249, %253 : vector<32x256xf32>
    %cst_126 = arith.constant 0.000000e+00 : f32
    %255 = vector.broadcast %cst_126 : f32 to vector<32x256xf32>
    %256 = arith.maximumf %254, %255 : vector<32x256xf32>
    %cst_127 = arith.constant 0.000000e+00 : f32
    %257 = vector.broadcast %cst_127 : f32 to vector<16x256xf32>
    %c17_i32_128 = arith.constant 17 : i32
    %258 = tpu.dynamic_rotate %256 by %c17_i32_128 dim 1 : vector<32x256xf32>, i32 -> vector<32x256xf32>
    %c1_i32_129 = arith.constant 1 : i32
    %259 = vector.broadcast %c1_i32_129 : i32 to vector<1x256xi32>
    %260 = arith.cmpi sge, %2, %259 : vector<1x256xi32>
    %c1_i32_130 = arith.constant 1 : i32
    %261 = vector.broadcast %c1_i32_130 : i32 to vector<1x256xi32>
    %262 = arith.cmpi sge, %4, %261 : vector<1x256xi32>
    %263 = arith.andi %260, %262 : vector<1x256xi1>
    %cst_131 = arith.constant 0.000000e+00 : f32
    %264 = vector.shape_cast %263 : vector<1x256xi1> to vector<1x256xi1>
    %265 = vector.broadcast %264 : vector<1x256xi1> to vector<32x256xi1>
    %266 = vector.broadcast %cst_131 : f32 to vector<32x256xf32>
    %267 = arith.select %265, %258, %266 : vector<32x256xi1>, vector<32x256xf32>
    %c0_132 = arith.constant 0 : index
    %c0_133 = arith.constant 0 : index
    %c0_134 = arith.constant 0 : index
    %268 = vector.load %arg4[%c0_132, %c0_133, %c0_134] : memref<9x16x32xf32, #tpu.memory_space<vmem>>, vector<1x16x32xf32>
    %269 = vector.shape_cast %268 : vector<1x16x32xf32> to vector<16x32xf32>
    %cst_135 = arith.constant dense<0.000000e+00> : vector<16x256xf32>
    %270 = tpu.matmul %269, %267, %cst_135 {dimension_numbers = #tpu.dot_dimension_numbers<[1], [0], [0], [1], [0, 0, 1, 1], [], []>} : vector<16x32xf32>, vector<32x256xf32>, vector<16x256xf32> -> vector<16x256xf32>
    %271 = arith.addf %257, %270 : vector<16x256xf32>
    %c16_i32_136 = arith.constant 16 : i32
    %272 = tpu.dynamic_rotate %256 by %c16_i32_136 dim 1 : vector<32x256xf32>, i32 -> vector<32x256xf32>
    %c1_i32_137 = arith.constant 1 : i32
    %273 = vector.broadcast %c1_i32_137 : i32 to vector<1x256xi32>
    %274 = arith.cmpi sge, %2, %273 : vector<1x256xi32>
    %cst_138 = arith.constant 0.000000e+00 : f32
    %275 = vector.shape_cast %274 : vector<1x256xi1> to vector<1x256xi1>
    %276 = vector.broadcast %275 : vector<1x256xi1> to vector<32x256xi1>
    %277 = vector.broadcast %cst_138 : f32 to vector<32x256xf32>
    %278 = arith.select %276, %272, %277 : vector<32x256xi1>, vector<32x256xf32>
    %c1_139 = arith.constant 1 : index
    %c0_140 = arith.constant 0 : index
    %c0_141 = arith.constant 0 : index
    %279 = vector.load %arg4[%c1_139, %c0_140, %c0_141] : memref<9x16x32xf32, #tpu.memory_space<vmem>>, vector<1x16x32xf32>
    %280 = vector.shape_cast %279 : vector<1x16x32xf32> to vector<16x32xf32>
    %cst_142 = arith.constant dense<0.000000e+00> : vector<16x256xf32>
    %281 = tpu.matmul %280, %278, %cst_142 {dimension_numbers = #tpu.dot_dimension_numbers<[1], [0], [0], [1], [0, 0, 1, 1], [], []>} : vector<16x32xf32>, vector<32x256xf32>, vector<16x256xf32> -> vector<16x256xf32>
    %282 = arith.addf %271, %281 : vector<16x256xf32>
    %c15_i32_143 = arith.constant 15 : i32
    %283 = tpu.dynamic_rotate %256 by %c15_i32_143 dim 1 : vector<32x256xf32>, i32 -> vector<32x256xf32>
    %c1_i32_144 = arith.constant 1 : i32
    %284 = vector.broadcast %c1_i32_144 : i32 to vector<1x256xi32>
    %285 = arith.cmpi sge, %2, %284 : vector<1x256xi32>
    %c14_i32_145 = arith.constant 14 : i32
    %286 = vector.broadcast %c14_i32_145 : i32 to vector<1x256xi32>
    %287 = arith.cmpi sle, %4, %286 : vector<1x256xi32>
    %288 = arith.andi %285, %287 : vector<1x256xi1>
    %cst_146 = arith.constant 0.000000e+00 : f32
    %289 = vector.shape_cast %288 : vector<1x256xi1> to vector<1x256xi1>
    %290 = vector.broadcast %289 : vector<1x256xi1> to vector<32x256xi1>
    %291 = vector.broadcast %cst_146 : f32 to vector<32x256xf32>
    %292 = arith.select %290, %283, %291 : vector<32x256xi1>, vector<32x256xf32>
    %c2_147 = arith.constant 2 : index
    %c0_148 = arith.constant 0 : index
    %c0_149 = arith.constant 0 : index
    %293 = vector.load %arg4[%c2_147, %c0_148, %c0_149] : memref<9x16x32xf32, #tpu.memory_space<vmem>>, vector<1x16x32xf32>
    %294 = vector.shape_cast %293 : vector<1x16x32xf32> to vector<16x32xf32>
    %cst_150 = arith.constant dense<0.000000e+00> : vector<16x256xf32>
    %295 = tpu.matmul %294, %292, %cst_150 {dimension_numbers = #tpu.dot_dimension_numbers<[1], [0], [0], [1], [0, 0, 1, 1], [], []>} : vector<16x32xf32>, vector<32x256xf32>, vector<16x256xf32> -> vector<16x256xf32>
    %296 = arith.addf %282, %295 : vector<16x256xf32>
    %c1_i32_151 = arith.constant 1 : i32
    %297 = tpu.dynamic_rotate %256 by %c1_i32_151 dim 1 : vector<32x256xf32>, i32 -> vector<32x256xf32>
    %c1_i32_152 = arith.constant 1 : i32
    %298 = vector.broadcast %c1_i32_152 : i32 to vector<1x256xi32>
    %299 = arith.cmpi sge, %4, %298 : vector<1x256xi32>
    %cst_153 = arith.constant 0.000000e+00 : f32
    %300 = vector.shape_cast %299 : vector<1x256xi1> to vector<1x256xi1>
    %301 = vector.broadcast %300 : vector<1x256xi1> to vector<32x256xi1>
    %302 = vector.broadcast %cst_153 : f32 to vector<32x256xf32>
    %303 = arith.select %301, %297, %302 : vector<32x256xi1>, vector<32x256xf32>
    %c3_154 = arith.constant 3 : index
    %c0_155 = arith.constant 0 : index
    %c0_156 = arith.constant 0 : index
    %304 = vector.load %arg4[%c3_154, %c0_155, %c0_156] : memref<9x16x32xf32, #tpu.memory_space<vmem>>, vector<1x16x32xf32>
    %305 = vector.shape_cast %304 : vector<1x16x32xf32> to vector<16x32xf32>
    %cst_157 = arith.constant dense<0.000000e+00> : vector<16x256xf32>
    %306 = tpu.matmul %305, %303, %cst_157 {dimension_numbers = #tpu.dot_dimension_numbers<[1], [0], [0], [1], [0, 0, 1, 1], [], []>} : vector<16x32xf32>, vector<32x256xf32>, vector<16x256xf32> -> vector<16x256xf32>
    %307 = arith.addf %296, %306 : vector<16x256xf32>
    %c4_158 = arith.constant 4 : index
    %c0_159 = arith.constant 0 : index
    %c0_160 = arith.constant 0 : index
    %308 = vector.load %arg4[%c4_158, %c0_159, %c0_160] : memref<9x16x32xf32, #tpu.memory_space<vmem>>, vector<1x16x32xf32>
    %309 = vector.shape_cast %308 : vector<1x16x32xf32> to vector<16x32xf32>
    %cst_161 = arith.constant dense<0.000000e+00> : vector<16x256xf32>
    %310 = tpu.matmul %309, %256, %cst_161 {dimension_numbers = #tpu.dot_dimension_numbers<[1], [0], [0], [1], [0, 0, 1, 1], [], []>} : vector<16x32xf32>, vector<32x256xf32>, vector<16x256xf32> -> vector<16x256xf32>
    %311 = arith.addf %307, %310 : vector<16x256xf32>
    %c255_i32_162 = arith.constant 255 : i32
    %312 = tpu.dynamic_rotate %256 by %c255_i32_162 dim 1 : vector<32x256xf32>, i32 -> vector<32x256xf32>
    %c14_i32_163 = arith.constant 14 : i32
    %313 = vector.broadcast %c14_i32_163 : i32 to vector<1x256xi32>
    %314 = arith.cmpi sle, %4, %313 : vector<1x256xi32>
    %cst_164 = arith.constant 0.000000e+00 : f32
    %315 = vector.shape_cast %314 : vector<1x256xi1> to vector<1x256xi1>
    %316 = vector.broadcast %315 : vector<1x256xi1> to vector<32x256xi1>
    %317 = vector.broadcast %cst_164 : f32 to vector<32x256xf32>
    %318 = arith.select %316, %312, %317 : vector<32x256xi1>, vector<32x256xf32>
    %c5_165 = arith.constant 5 : index
    %c0_166 = arith.constant 0 : index
    %c0_167 = arith.constant 0 : index
    %319 = vector.load %arg4[%c5_165, %c0_166, %c0_167] : memref<9x16x32xf32, #tpu.memory_space<vmem>>, vector<1x16x32xf32>
    %320 = vector.shape_cast %319 : vector<1x16x32xf32> to vector<16x32xf32>
    %cst_168 = arith.constant dense<0.000000e+00> : vector<16x256xf32>
    %321 = tpu.matmul %320, %318, %cst_168 {dimension_numbers = #tpu.dot_dimension_numbers<[1], [0], [0], [1], [0, 0, 1, 1], [], []>} : vector<16x32xf32>, vector<32x256xf32>, vector<16x256xf32> -> vector<16x256xf32>
    %322 = arith.addf %311, %321 : vector<16x256xf32>
    %c241_i32_169 = arith.constant 241 : i32
    %323 = tpu.dynamic_rotate %256 by %c241_i32_169 dim 1 : vector<32x256xf32>, i32 -> vector<32x256xf32>
    %c14_i32_170 = arith.constant 14 : i32
    %324 = vector.broadcast %c14_i32_170 : i32 to vector<1x256xi32>
    %325 = arith.cmpi sle, %2, %324 : vector<1x256xi32>
    %c1_i32_171 = arith.constant 1 : i32
    %326 = vector.broadcast %c1_i32_171 : i32 to vector<1x256xi32>
    %327 = arith.cmpi sge, %4, %326 : vector<1x256xi32>
    %328 = arith.andi %325, %327 : vector<1x256xi1>
    %cst_172 = arith.constant 0.000000e+00 : f32
    %329 = vector.shape_cast %328 : vector<1x256xi1> to vector<1x256xi1>
    %330 = vector.broadcast %329 : vector<1x256xi1> to vector<32x256xi1>
    %331 = vector.broadcast %cst_172 : f32 to vector<32x256xf32>
    %332 = arith.select %330, %323, %331 : vector<32x256xi1>, vector<32x256xf32>
    %c6_173 = arith.constant 6 : index
    %c0_174 = arith.constant 0 : index
    %c0_175 = arith.constant 0 : index
    %333 = vector.load %arg4[%c6_173, %c0_174, %c0_175] : memref<9x16x32xf32, #tpu.memory_space<vmem>>, vector<1x16x32xf32>
    %334 = vector.shape_cast %333 : vector<1x16x32xf32> to vector<16x32xf32>
    %cst_176 = arith.constant dense<0.000000e+00> : vector<16x256xf32>
    %335 = tpu.matmul %334, %332, %cst_176 {dimension_numbers = #tpu.dot_dimension_numbers<[1], [0], [0], [1], [0, 0, 1, 1], [], []>} : vector<16x32xf32>, vector<32x256xf32>, vector<16x256xf32> -> vector<16x256xf32>
    %336 = arith.addf %322, %335 : vector<16x256xf32>
    %c240_i32_177 = arith.constant 240 : i32
    %337 = tpu.dynamic_rotate %256 by %c240_i32_177 dim 1 : vector<32x256xf32>, i32 -> vector<32x256xf32>
    %c14_i32_178 = arith.constant 14 : i32
    %338 = vector.broadcast %c14_i32_178 : i32 to vector<1x256xi32>
    %339 = arith.cmpi sle, %2, %338 : vector<1x256xi32>
    %cst_179 = arith.constant 0.000000e+00 : f32
    %340 = vector.shape_cast %339 : vector<1x256xi1> to vector<1x256xi1>
    %341 = vector.broadcast %340 : vector<1x256xi1> to vector<32x256xi1>
    %342 = vector.broadcast %cst_179 : f32 to vector<32x256xf32>
    %343 = arith.select %341, %337, %342 : vector<32x256xi1>, vector<32x256xf32>
    %c7_180 = arith.constant 7 : index
    %c0_181 = arith.constant 0 : index
    %c0_182 = arith.constant 0 : index
    %344 = vector.load %arg4[%c7_180, %c0_181, %c0_182] : memref<9x16x32xf32, #tpu.memory_space<vmem>>, vector<1x16x32xf32>
    %345 = vector.shape_cast %344 : vector<1x16x32xf32> to vector<16x32xf32>
    %cst_183 = arith.constant dense<0.000000e+00> : vector<16x256xf32>
    %346 = tpu.matmul %345, %343, %cst_183 {dimension_numbers = #tpu.dot_dimension_numbers<[1], [0], [0], [1], [0, 0, 1, 1], [], []>} : vector<16x32xf32>, vector<32x256xf32>, vector<16x256xf32> -> vector<16x256xf32>
    %347 = arith.addf %336, %346 : vector<16x256xf32>
    %c239_i32_184 = arith.constant 239 : i32
    %348 = tpu.dynamic_rotate %256 by %c239_i32_184 dim 1 : vector<32x256xf32>, i32 -> vector<32x256xf32>
    %c14_i32_185 = arith.constant 14 : i32
    %349 = vector.broadcast %c14_i32_185 : i32 to vector<1x256xi32>
    %350 = arith.cmpi sle, %2, %349 : vector<1x256xi32>
    %c14_i32_186 = arith.constant 14 : i32
    %351 = vector.broadcast %c14_i32_186 : i32 to vector<1x256xi32>
    %352 = arith.cmpi sle, %4, %351 : vector<1x256xi32>
    %353 = arith.andi %350, %352 : vector<1x256xi1>
    %cst_187 = arith.constant 0.000000e+00 : f32
    %354 = vector.shape_cast %353 : vector<1x256xi1> to vector<1x256xi1>
    %355 = vector.broadcast %354 : vector<1x256xi1> to vector<32x256xi1>
    %356 = vector.broadcast %cst_187 : f32 to vector<32x256xf32>
    %357 = arith.select %355, %348, %356 : vector<32x256xi1>, vector<32x256xf32>
    %c8_188 = arith.constant 8 : index
    %c0_189 = arith.constant 0 : index
    %c0_190 = arith.constant 0 : index
    %358 = vector.load %arg4[%c8_188, %c0_189, %c0_190] : memref<9x16x32xf32, #tpu.memory_space<vmem>>, vector<1x16x32xf32>
    %359 = vector.shape_cast %358 : vector<1x16x32xf32> to vector<16x32xf32>
    %cst_191 = arith.constant dense<0.000000e+00> : vector<16x256xf32>
    %360 = tpu.matmul %359, %357, %cst_191 {dimension_numbers = #tpu.dot_dimension_numbers<[1], [0], [0], [1], [0, 0, 1, 1], [], []>} : vector<16x32xf32>, vector<32x256xf32>, vector<16x256xf32> -> vector<16x256xf32>
    %361 = arith.addf %347, %360 : vector<16x256xf32>
    %cst_192 = arith.constant dense<0.000000e+00> : vector<16xf32>
    %362 = vector.multi_reduction <add>, %361, %cst_192 [1] : vector<16x256xf32> to vector<16xf32>
    %363 = vector.shape_cast %362 : vector<16xf32> to vector<16x1xf32>
    %cst_193 = arith.constant 2.560000e+02 : f32
    %364 = vector.broadcast %cst_193 : f32 to vector<16x1xf32>
    %365 = arith.divf %363, %364 : vector<16x1xf32>
    %366 = vector.broadcast %365 : vector<16x1xf32> to vector<16x256xf32>
    %367 = arith.subf %361, %366 : vector<16x256xf32>
    %368 = arith.mulf %367, %367 : vector<16x256xf32>
    %cst_194 = arith.constant dense<0.000000e+00> : vector<16xf32>
    %369 = vector.multi_reduction <add>, %368, %cst_194 [1] : vector<16x256xf32> to vector<16xf32>
    %370 = vector.shape_cast %369 : vector<16xf32> to vector<16x1xf32>
    %cst_195 = arith.constant 2.560000e+02 : f32
    %371 = vector.broadcast %cst_195 : f32 to vector<16x1xf32>
    %372 = arith.divf %370, %371 : vector<16x1xf32>
    %373 = vector.broadcast %365 : vector<16x1xf32> to vector<16x256xf32>
    %374 = arith.subf %361, %373 : vector<16x256xf32>
    %cst_196 = arith.constant 9.99999974E-6 : f32
    %375 = vector.broadcast %cst_196 : f32 to vector<16x1xf32>
    %376 = arith.addf %372, %375 : vector<16x1xf32>
    %377 = math.rsqrt %376 : vector<16x1xf32>
    %378 = vector.broadcast %377 : vector<16x1xf32> to vector<16x256xf32>
    %379 = arith.mulf %374, %378 : vector<16x256xf32>
    %cst_197 = arith.constant 0.000000e+00 : f32
    %380 = vector.broadcast %cst_197 : f32 to vector<16x256xf32>
    %381 = arith.maximumf %379, %380 : vector<16x256xf32>
    %cst_198 = arith.constant 0.000000e+00 : f32
    %382 = vector.broadcast %cst_198 : f32 to vector<3x256xf32>
    %c17_i32_199 = arith.constant 17 : i32
    %383 = tpu.dynamic_rotate %381 by %c17_i32_199 dim 1 : vector<16x256xf32>, i32 -> vector<16x256xf32>
    %c1_i32_200 = arith.constant 1 : i32
    %384 = vector.broadcast %c1_i32_200 : i32 to vector<1x256xi32>
    %385 = arith.cmpi sge, %2, %384 : vector<1x256xi32>
    %c1_i32_201 = arith.constant 1 : i32
    %386 = vector.broadcast %c1_i32_201 : i32 to vector<1x256xi32>
    %387 = arith.cmpi sge, %4, %386 : vector<1x256xi32>
    %388 = arith.andi %385, %387 : vector<1x256xi1>
    %cst_202 = arith.constant 0.000000e+00 : f32
    %389 = vector.shape_cast %388 : vector<1x256xi1> to vector<1x256xi1>
    %390 = vector.broadcast %389 : vector<1x256xi1> to vector<16x256xi1>
    %391 = vector.broadcast %cst_202 : f32 to vector<16x256xf32>
    %392 = arith.select %390, %383, %391 : vector<16x256xi1>, vector<16x256xf32>
    %c0_203 = arith.constant 0 : index
    %c0_204 = arith.constant 0 : index
    %c0_205 = arith.constant 0 : index
    %393 = vector.load %arg5[%c0_203, %c0_204, %c0_205] : memref<9x3x16xf32, #tpu.memory_space<vmem>>, vector<1x3x16xf32>
    %394 = vector.shape_cast %393 : vector<1x3x16xf32> to vector<3x16xf32>
    %cst_206 = arith.constant dense<0.000000e+00> : vector<3x256xf32>
    %395 = tpu.matmul %394, %392, %cst_206 {dimension_numbers = #tpu.dot_dimension_numbers<[1], [0], [0], [1], [0, 0, 1, 1], [], []>} : vector<3x16xf32>, vector<16x256xf32>, vector<3x256xf32> -> vector<3x256xf32>
    %396 = arith.addf %382, %395 : vector<3x256xf32>
    %c16_i32_207 = arith.constant 16 : i32
    %397 = tpu.dynamic_rotate %381 by %c16_i32_207 dim 1 : vector<16x256xf32>, i32 -> vector<16x256xf32>
    %c1_i32_208 = arith.constant 1 : i32
    %398 = vector.broadcast %c1_i32_208 : i32 to vector<1x256xi32>
    %399 = arith.cmpi sge, %2, %398 : vector<1x256xi32>
    %cst_209 = arith.constant 0.000000e+00 : f32
    %400 = vector.shape_cast %399 : vector<1x256xi1> to vector<1x256xi1>
    %401 = vector.broadcast %400 : vector<1x256xi1> to vector<16x256xi1>
    %402 = vector.broadcast %cst_209 : f32 to vector<16x256xf32>
    %403 = arith.select %401, %397, %402 : vector<16x256xi1>, vector<16x256xf32>
    %c1_210 = arith.constant 1 : index
    %c0_211 = arith.constant 0 : index
    %c0_212 = arith.constant 0 : index
    %404 = vector.load %arg5[%c1_210, %c0_211, %c0_212] : memref<9x3x16xf32, #tpu.memory_space<vmem>>, vector<1x3x16xf32>
    %405 = vector.shape_cast %404 : vector<1x3x16xf32> to vector<3x16xf32>
    %cst_213 = arith.constant dense<0.000000e+00> : vector<3x256xf32>
    %406 = tpu.matmul %405, %403, %cst_213 {dimension_numbers = #tpu.dot_dimension_numbers<[1], [0], [0], [1], [0, 0, 1, 1], [], []>} : vector<3x16xf32>, vector<16x256xf32>, vector<3x256xf32> -> vector<3x256xf32>
    %407 = arith.addf %396, %406 : vector<3x256xf32>
    %c15_i32_214 = arith.constant 15 : i32
    %408 = tpu.dynamic_rotate %381 by %c15_i32_214 dim 1 : vector<16x256xf32>, i32 -> vector<16x256xf32>
    %c1_i32_215 = arith.constant 1 : i32
    %409 = vector.broadcast %c1_i32_215 : i32 to vector<1x256xi32>
    %410 = arith.cmpi sge, %2, %409 : vector<1x256xi32>
    %c14_i32_216 = arith.constant 14 : i32
    %411 = vector.broadcast %c14_i32_216 : i32 to vector<1x256xi32>
    %412 = arith.cmpi sle, %4, %411 : vector<1x256xi32>
    %413 = arith.andi %410, %412 : vector<1x256xi1>
    %cst_217 = arith.constant 0.000000e+00 : f32
    %414 = vector.shape_cast %413 : vector<1x256xi1> to vector<1x256xi1>
    %415 = vector.broadcast %414 : vector<1x256xi1> to vector<16x256xi1>
    %416 = vector.broadcast %cst_217 : f32 to vector<16x256xf32>
    %417 = arith.select %415, %408, %416 : vector<16x256xi1>, vector<16x256xf32>
    %c2_218 = arith.constant 2 : index
    %c0_219 = arith.constant 0 : index
    %c0_220 = arith.constant 0 : index
    %418 = vector.load %arg5[%c2_218, %c0_219, %c0_220] : memref<9x3x16xf32, #tpu.memory_space<vmem>>, vector<1x3x16xf32>
    %419 = vector.shape_cast %418 : vector<1x3x16xf32> to vector<3x16xf32>
    %cst_221 = arith.constant dense<0.000000e+00> : vector<3x256xf32>
    %420 = tpu.matmul %419, %417, %cst_221 {dimension_numbers = #tpu.dot_dimension_numbers<[1], [0], [0], [1], [0, 0, 1, 1], [], []>} : vector<3x16xf32>, vector<16x256xf32>, vector<3x256xf32> -> vector<3x256xf32>
    %421 = arith.addf %407, %420 : vector<3x256xf32>
    %c1_i32_222 = arith.constant 1 : i32
    %422 = tpu.dynamic_rotate %381 by %c1_i32_222 dim 1 : vector<16x256xf32>, i32 -> vector<16x256xf32>
    %c1_i32_223 = arith.constant 1 : i32
    %423 = vector.broadcast %c1_i32_223 : i32 to vector<1x256xi32>
    %424 = arith.cmpi sge, %4, %423 : vector<1x256xi32>
    %cst_224 = arith.constant 0.000000e+00 : f32
    %425 = vector.shape_cast %424 : vector<1x256xi1> to vector<1x256xi1>
    %426 = vector.broadcast %425 : vector<1x256xi1> to vector<16x256xi1>
    %427 = vector.broadcast %cst_224 : f32 to vector<16x256xf32>
    %428 = arith.select %426, %422, %427 : vector<16x256xi1>, vector<16x256xf32>
    %c3_225 = arith.constant 3 : index
    %c0_226 = arith.constant 0 : index
    %c0_227 = arith.constant 0 : index
    %429 = vector.load %arg5[%c3_225, %c0_226, %c0_227] : memref<9x3x16xf32, #tpu.memory_space<vmem>>, vector<1x3x16xf32>
    %430 = vector.shape_cast %429 : vector<1x3x16xf32> to vector<3x16xf32>
    %cst_228 = arith.constant dense<0.000000e+00> : vector<3x256xf32>
    %431 = tpu.matmul %430, %428, %cst_228 {dimension_numbers = #tpu.dot_dimension_numbers<[1], [0], [0], [1], [0, 0, 1, 1], [], []>} : vector<3x16xf32>, vector<16x256xf32>, vector<3x256xf32> -> vector<3x256xf32>
    %432 = arith.addf %421, %431 : vector<3x256xf32>
    %c4_229 = arith.constant 4 : index
    %c0_230 = arith.constant 0 : index
    %c0_231 = arith.constant 0 : index
    %433 = vector.load %arg5[%c4_229, %c0_230, %c0_231] : memref<9x3x16xf32, #tpu.memory_space<vmem>>, vector<1x3x16xf32>
    %434 = vector.shape_cast %433 : vector<1x3x16xf32> to vector<3x16xf32>
    %cst_232 = arith.constant dense<0.000000e+00> : vector<3x256xf32>
    %435 = tpu.matmul %434, %381, %cst_232 {dimension_numbers = #tpu.dot_dimension_numbers<[1], [0], [0], [1], [0, 0, 1, 1], [], []>} : vector<3x16xf32>, vector<16x256xf32>, vector<3x256xf32> -> vector<3x256xf32>
    %436 = arith.addf %432, %435 : vector<3x256xf32>
    %c255_i32_233 = arith.constant 255 : i32
    %437 = tpu.dynamic_rotate %381 by %c255_i32_233 dim 1 : vector<16x256xf32>, i32 -> vector<16x256xf32>
    %c14_i32_234 = arith.constant 14 : i32
    %438 = vector.broadcast %c14_i32_234 : i32 to vector<1x256xi32>
    %439 = arith.cmpi sle, %4, %438 : vector<1x256xi32>
    %cst_235 = arith.constant 0.000000e+00 : f32
    %440 = vector.shape_cast %439 : vector<1x256xi1> to vector<1x256xi1>
    %441 = vector.broadcast %440 : vector<1x256xi1> to vector<16x256xi1>
    %442 = vector.broadcast %cst_235 : f32 to vector<16x256xf32>
    %443 = arith.select %441, %437, %442 : vector<16x256xi1>, vector<16x256xf32>
    %c5_236 = arith.constant 5 : index
    %c0_237 = arith.constant 0 : index
    %c0_238 = arith.constant 0 : index
    %444 = vector.load %arg5[%c5_236, %c0_237, %c0_238] : memref<9x3x16xf32, #tpu.memory_space<vmem>>, vector<1x3x16xf32>
    %445 = vector.shape_cast %444 : vector<1x3x16xf32> to vector<3x16xf32>
    %cst_239 = arith.constant dense<0.000000e+00> : vector<3x256xf32>
    %446 = tpu.matmul %445, %443, %cst_239 {dimension_numbers = #tpu.dot_dimension_numbers<[1], [0], [0], [1], [0, 0, 1, 1], [], []>} : vector<3x16xf32>, vector<16x256xf32>, vector<3x256xf32> -> vector<3x256xf32>
    %447 = arith.addf %436, %446 : vector<3x256xf32>
    %c241_i32_240 = arith.constant 241 : i32
    %448 = tpu.dynamic_rotate %381 by %c241_i32_240 dim 1 : vector<16x256xf32>, i32 -> vector<16x256xf32>
    %c14_i32_241 = arith.constant 14 : i32
    %449 = vector.broadcast %c14_i32_241 : i32 to vector<1x256xi32>
    %450 = arith.cmpi sle, %2, %449 : vector<1x256xi32>
    %c1_i32_242 = arith.constant 1 : i32
    %451 = vector.broadcast %c1_i32_242 : i32 to vector<1x256xi32>
    %452 = arith.cmpi sge, %4, %451 : vector<1x256xi32>
    %453 = arith.andi %450, %452 : vector<1x256xi1>
    %cst_243 = arith.constant 0.000000e+00 : f32
    %454 = vector.shape_cast %453 : vector<1x256xi1> to vector<1x256xi1>
    %455 = vector.broadcast %454 : vector<1x256xi1> to vector<16x256xi1>
    %456 = vector.broadcast %cst_243 : f32 to vector<16x256xf32>
    %457 = arith.select %455, %448, %456 : vector<16x256xi1>, vector<16x256xf32>
    %c6_244 = arith.constant 6 : index
    %c0_245 = arith.constant 0 : index
    %c0_246 = arith.constant 0 : index
    %458 = vector.load %arg5[%c6_244, %c0_245, %c0_246] : memref<9x3x16xf32, #tpu.memory_space<vmem>>, vector<1x3x16xf32>
    %459 = vector.shape_cast %458 : vector<1x3x16xf32> to vector<3x16xf32>
    %cst_247 = arith.constant dense<0.000000e+00> : vector<3x256xf32>
    %460 = tpu.matmul %459, %457, %cst_247 {dimension_numbers = #tpu.dot_dimension_numbers<[1], [0], [0], [1], [0, 0, 1, 1], [], []>} : vector<3x16xf32>, vector<16x256xf32>, vector<3x256xf32> -> vector<3x256xf32>
    %461 = arith.addf %447, %460 : vector<3x256xf32>
    %c240_i32_248 = arith.constant 240 : i32
    %462 = tpu.dynamic_rotate %381 by %c240_i32_248 dim 1 : vector<16x256xf32>, i32 -> vector<16x256xf32>
    %c14_i32_249 = arith.constant 14 : i32
    %463 = vector.broadcast %c14_i32_249 : i32 to vector<1x256xi32>
    %464 = arith.cmpi sle, %2, %463 : vector<1x256xi32>
    %cst_250 = arith.constant 0.000000e+00 : f32
    %465 = vector.shape_cast %464 : vector<1x256xi1> to vector<1x256xi1>
    %466 = vector.broadcast %465 : vector<1x256xi1> to vector<16x256xi1>
    %467 = vector.broadcast %cst_250 : f32 to vector<16x256xf32>
    %468 = arith.select %466, %462, %467 : vector<16x256xi1>, vector<16x256xf32>
    %c7_251 = arith.constant 7 : index
    %c0_252 = arith.constant 0 : index
    %c0_253 = arith.constant 0 : index
    %469 = vector.load %arg5[%c7_251, %c0_252, %c0_253] : memref<9x3x16xf32, #tpu.memory_space<vmem>>, vector<1x3x16xf32>
    %470 = vector.shape_cast %469 : vector<1x3x16xf32> to vector<3x16xf32>
    %cst_254 = arith.constant dense<0.000000e+00> : vector<3x256xf32>
    %471 = tpu.matmul %470, %468, %cst_254 {dimension_numbers = #tpu.dot_dimension_numbers<[1], [0], [0], [1], [0, 0, 1, 1], [], []>} : vector<3x16xf32>, vector<16x256xf32>, vector<3x256xf32> -> vector<3x256xf32>
    %472 = arith.addf %461, %471 : vector<3x256xf32>
    %c239_i32_255 = arith.constant 239 : i32
    %473 = tpu.dynamic_rotate %381 by %c239_i32_255 dim 1 : vector<16x256xf32>, i32 -> vector<16x256xf32>
    %c14_i32_256 = arith.constant 14 : i32
    %474 = vector.broadcast %c14_i32_256 : i32 to vector<1x256xi32>
    %475 = arith.cmpi sle, %2, %474 : vector<1x256xi32>
    %c14_i32_257 = arith.constant 14 : i32
    %476 = vector.broadcast %c14_i32_257 : i32 to vector<1x256xi32>
    %477 = arith.cmpi sle, %4, %476 : vector<1x256xi32>
    %478 = arith.andi %475, %477 : vector<1x256xi1>
    %cst_258 = arith.constant 0.000000e+00 : f32
    %479 = vector.shape_cast %478 : vector<1x256xi1> to vector<1x256xi1>
    %480 = vector.broadcast %479 : vector<1x256xi1> to vector<16x256xi1>
    %481 = vector.broadcast %cst_258 : f32 to vector<16x256xf32>
    %482 = arith.select %480, %473, %481 : vector<16x256xi1>, vector<16x256xf32>
    %c8_259 = arith.constant 8 : index
    %c0_260 = arith.constant 0 : index
    %c0_261 = arith.constant 0 : index
    %483 = vector.load %arg5[%c8_259, %c0_260, %c0_261] : memref<9x3x16xf32, #tpu.memory_space<vmem>>, vector<1x3x16xf32>
    %484 = vector.shape_cast %483 : vector<1x3x16xf32> to vector<3x16xf32>
    %cst_262 = arith.constant dense<0.000000e+00> : vector<3x256xf32>
    %485 = tpu.matmul %484, %482, %cst_262 {dimension_numbers = #tpu.dot_dimension_numbers<[1], [0], [0], [1], [0, 0, 1, 1], [], []>} : vector<3x16xf32>, vector<16x256xf32>, vector<3x256xf32> -> vector<3x256xf32>
    %486 = arith.addf %472, %485 : vector<3x256xf32>
    %cst_263 = arith.constant dense<0.000000e+00> : vector<3xf32>
    %487 = vector.multi_reduction <add>, %486, %cst_263 [1] : vector<3x256xf32> to vector<3xf32>
    %488 = vector.shape_cast %487 : vector<3xf32> to vector<3x1xf32>
    %cst_264 = arith.constant 2.560000e+02 : f32
    %489 = vector.broadcast %cst_264 : f32 to vector<3x1xf32>
    %490 = arith.divf %488, %489 : vector<3x1xf32>
    %491 = vector.broadcast %490 : vector<3x1xf32> to vector<3x256xf32>
    %492 = arith.subf %486, %491 : vector<3x256xf32>
    %493 = arith.mulf %492, %492 : vector<3x256xf32>
    %cst_265 = arith.constant dense<0.000000e+00> : vector<3xf32>
    %494 = vector.multi_reduction <add>, %493, %cst_265 [1] : vector<3x256xf32> to vector<3xf32>
    %495 = vector.shape_cast %494 : vector<3xf32> to vector<3x1xf32>
    %cst_266 = arith.constant 2.560000e+02 : f32
    %496 = vector.broadcast %cst_266 : f32 to vector<3x1xf32>
    %497 = arith.divf %495, %496 : vector<3x1xf32>
    %498 = vector.broadcast %490 : vector<3x1xf32> to vector<3x256xf32>
    %499 = arith.subf %486, %498 : vector<3x256xf32>
    %cst_267 = arith.constant 9.99999974E-6 : f32
    %500 = vector.broadcast %cst_267 : f32 to vector<3x1xf32>
    %501 = arith.addf %497, %500 : vector<3x1xf32>
    %502 = math.rsqrt %501 : vector<3x1xf32>
    %503 = vector.broadcast %502 : vector<3x1xf32> to vector<3x256xf32>
    %504 = arith.mulf %499, %503 : vector<3x256xf32>
    %cst_268 = arith.constant 0.000000e+00 : f32
    %505 = vector.broadcast %cst_268 : f32 to vector<3x256xf32>
    %506 = arith.maximumf %504, %505 : vector<3x256xf32>
    %c0_269 = arith.constant 0 : index
    %c0_270 = arith.constant 0 : index
    %c0_271 = arith.constant 0 : index
    %507 = vector.load %arg6[%c0_269, %c0_270, %c0_271] : memref<1x3x256xf32, #tpu.memory_space<vmem>>, vector<1x3x256xf32>
    %508 = vector.shape_cast %507 : vector<1x3x256xf32> to vector<3x256xf32>
    %509 = vector.shape_cast %506 : vector<3x256xf32> to vector<1x3x256xf32>
    tpu.vector_store %arg6[%c0_269, %c0_270, %c0_271], %509 {strides = array<i32>} : memref<1x3x256xf32, #tpu.memory_space<vmem>>, vector<1x3x256xf32>,
    return
  }
  func.func @transform_0(%arg0: i32) -> (i32, i32, i32) {
    %c0_i32 = arith.constant 0 : i32
    %c0_i32_0 = arith.constant 0 : i32
    %c0_i32_1 = arith.constant 0 : i32
    return %arg0, %c0_i32, %c0_i32_0 : i32, i32, i32
  }
  func.func @transform_1(%arg0: i32) -> (i32, i32, i32) {
    %c0_i32 = arith.constant 0 : i32
    %c0_i32_0 = arith.constant 0 : i32
    %c0_i32_1 = arith.constant 0 : i32
    %c0_i32_2 = arith.constant 0 : i32
    return %c0_i32, %c0_i32_0, %c0_i32_1 : i32, i32, i32
  }
  func.func @transform_2(%arg0: i32) -> (i32, i32, i32) {
    %c0_i32 = arith.constant 0 : i32
    %c0_i32_0 = arith.constant 0 : i32
    %c0_i32_1 = arith.constant 0 : i32
    %c0_i32_2 = arith.constant 0 : i32
    return %c0_i32, %c0_i32_0, %c0_i32_1 : i32, i32, i32
  }
  func.func @transform_3(%arg0: i32) -> (i32, i32, i32) {
    %c0_i32 = arith.constant 0 : i32
    %c0_i32_0 = arith.constant 0 : i32
    %c0_i32_1 = arith.constant 0 : i32
    %c0_i32_2 = arith.constant 0 : i32
    return %c0_i32, %c0_i32_0, %c0_i32_1 : i32, i32, i32
  }
  func.func @transform_4(%arg0: i32) -> (i32, i32, i32) {
    %c0_i32 = arith.constant 0 : i32
    %c0_i32_0 = arith.constant 0 : i32
    %c0_i32_1 = arith.constant 0 : i32
    %c0_i32_2 = arith.constant 0 : i32
    return %c0_i32, %c0_i32_0, %c0_i32_1 : i32, i32, i32
  }
  func.func @transform_5(%arg0: i32) -> (i32, i32, i32) {
    %c0_i32 = arith.constant 0 : i32
    %c0_i32_0 = arith.constant 0 : i32
    %c0_i32_1 = arith.constant 0 : i32
    return %arg0, %c0_i32, %c0_i32_0 : i32, i32, i32
  }
}

</mosaic_0001>

<llo_original>
// kernel: tpu_custom_call.1
$region0: #{tpu_custom_call.1}
  #allocation0 [shape = 'u32[]', space=smem, size = 0x4, offset = 0x4, fixed_abs, tag = 'smem constant byte address 0x4 - core index']
  #allocation1 [shape = 'u32[144,128]{1,0:T(1,128)}', space=vmem, size = 0x12000, scoped, tag = 'internal scratch']
  %s0 = inlined_call_operand.vmem [shape: f32[2,3,256], index: 0, kind: input, shape index: {}]
  %s1 = inlined_call_operand.vmem [shape: f32[9,16,3], index: 1, kind: input, shape index: {}]
  %s2 = inlined_call_operand.vmem [shape: f32[9,32,16], index: 2, kind: input, shape index: {}]
  %s3 = inlined_call_operand.vmem [shape: f32[9,16,32], index: 3, kind: input, shape index: {}]
  %s4 = inlined_call_operand.vmem [shape: f32[9,3,16], index: 4, kind: input, shape index: {}]
  %s5 = inlined_call_operand.vmem [shape: f32[2,3,256], index: 5, kind: output, shape index: {}]
  %s6 = sld [smem:[#allocation0]]
  $region53: #{tpu_custom_call.1} parent=0
    _
  %s8 = ssub.s32 1, %s6
  %s9 = scalar_select 0, %s8, %s6
  loop: start=0, step=1, limit=4
  $region2: #{tpu_custom_call.1} parent=0 // loop_pre_header
    _
  $region3: #{tpu_custom_call.1} parent=0 // loop_header
    %s11 = sphi 0, %s15
    %p12 = scmp.ge.s32.totalorder %s11, 4
    %s21 = sphi 0, %s23
    %s24 = sphi 0, %s21
    %s25 = sphi 0, %s24
    %s41 = sphi 0, %s25
    %s45 = sphi 0, %s45
    %s47 = sphi 0, %s45
    %s48 = sphi 0, %s47
    %s62 = sphi 0, %s48
    %s66 = sphi 0, %s66
    %s68 = sphi 0, %s66
    %s69 = sphi 0, %s68
    %s83 = sphi 0, %s69
    %s87 = sphi 0, %s87
    %s89 = sphi 0, %s87
    %s90 = sphi 0, %s89
    %s104 = sphi 0, %s90
    %s108 = sphi 0, %s108
    %s110 = sphi 0, %s108
    %s111 = sphi 0, %s110
    %s125 = sphi 0, %s111
    %s131 = sphi 0, %s133
    %s134 = sphi 0, %s131
    %s135 = sphi 0, %s134
    %s151 = sphi 0, %s135
  $region4: #{tpu_custom_call.1} parent=0 // loop_header_branch
    %14 = sbr.rel (%p12) target = $region8
  $region5: #{tpu_custom_call.1} parent=0 // loop_body
    %s16 = ssub.s32 %s11, 1
    %s17 = ssub.s32 %s11, 2
    %s18 = sadd.s32 %s11, 1
    %s19 = ssub.s32 %s11, %s18
    %p20 = scmp.eq.s32.totalorder %s19, 0
    %s22 = sadd.s32 %s21, 1
    %s23 = scalar_select %p20, %s21, %s22
    %p26 = pneg %p20
    %p27 = scmp.eq.s32.totalorder %s11, 1
    %p28 = por %p26, %p27
    %p29 = scmp.ne.s32.totalorder %s21, %s24
    %p30 = scmp.eq.s32.totalorder %s11, 0
    %p31 = por %p29, %p30
    %p32 = scmp.ne.s32.totalorder %s21, %s24
    %p33 = scmp.eq.s32.totalorder %s16, 1
    %p34 = por %p32, %p33
    %p35 = scmp.ne.s32.totalorder %s24, %s25
    %p36 = scmp.eq.s32.totalorder %s16, 0
    %p37 = por %p35, %p36
    %p38 = scmp.ne.s32.totalorder %s24, %s25
    %p39 = scmp.eq.s32.totalorder %s17, 1
    %p40 = por %p38, %p39
    %p42 = scmp.ne.s32.totalorder %s25, %s41
    %p43 = scmp.eq.s32.totalorder %s17, 0
    %p44 = por %p42, %p43
    %s46 = sadd.s32 %s45, 1
    %p49 = scmp.eq.s32.totalorder %s11, 1
    %p50 = scmp.ne.s32.totalorder %s45, %s47
    %p51 = scmp.eq.s32.totalorder %s11, 0
    %p52 = por %p50, %p51
    %p53 = scmp.ne.s32.totalorder %s45, %s47
    %p54 = scmp.eq.s32.totalorder %s16, 1
    %p55 = por %p53, %p54
    %p56 = scmp.ne.s32.totalorder %s47, %s48
    %p57 = scmp.eq.s32.totalorder %s16, 0
    %p58 = por %p56, %p57
    %p59 = scmp.ne.s32.totalorder %s47, %s48
    %p60 = scmp.eq.s32.totalorder %s17, 1
    %p61 = por %p59, %p60
    %p63 = scmp.ne.s32.totalorder %s48, %s62
    %p64 = scmp.eq.s32.totalorder %s17, 0
    %p65 = por %p63, %p64
    %s67 = sadd.s32 %s66, 1
    %p70 = scmp.eq.s32.totalorder %s11, 1
    %p71 = scmp.ne.s32.totalorder %s66, %s68
    %p72 = scmp.eq.s32.totalorder %s11, 0
    %p73 = por %p71, %p72
    %p74 = scmp.ne.s32.totalorder %s66, %s68
    %p75 = scmp.eq.s32.totalorder %s16, 1
    %p76 = por %p74, %p75
    %p77 = scmp.ne.s32.totalorder %s68, %s69
    %p78 = scmp.eq.s32.totalorder %s16, 0
    %p79 = por %p77, %p78
    %p80 = scmp.ne.s32.totalorder %s68, %s69
    %p81 = scmp.eq.s32.totalorder %s17, 1
    %p82 = por %p80, %p81
    %p84 = scmp.ne.s32.totalorder %s69, %s83
    %p85 = scmp.eq.s32.totalorder %s17, 0
    %p86 = por %p84, %p85
    %s88 = sadd.s32 %s87, 1
    %p91 = scmp.eq.s32.totalorder %s11, 1
    %p92 = scmp.ne.s32.totalorder %s87, %s89
    %p93 = scmp.eq.s32.totalorder %s11, 0
    %p94 = por %p92, %p93
    %p95 = scmp.ne.s32.totalorder %s87, %s89
    %p96 = scmp.eq.s32.totalorder %s16, 1
    %p97 = por %p95, %p96
    %p98 = scmp.ne.s32.totalorder %s89, %s90
    %p99 = scmp.eq.s32.totalorder %s16, 0
    %p100 = por %p98, %p99
    %p101 = scmp.ne.s32.totalorder %s89, %s90
    %p102 = scmp.eq.s32.totalorder %s17, 1
    %p103 = por %p101, %p102
    %p105 = scmp.ne.s32.totalorder %s90, %s104
    %p106 = scmp.eq.s32.totalorder %s17, 0
    %p107 = por %p105, %p106
    %s109 = sadd.s32 %s108, 1
    %p112 = scmp.eq.s32.totalorder %s11, 1
    %p113 = scmp.ne.s32.totalorder %s108, %s110
    %p114 = scmp.eq.s32.totalorder %s11, 0
    %p115 = por %p113, %p114
    %p116 = scmp.ne.s32.totalorder %s108, %s110
    %p117 = scmp.eq.s32.totalorder %s16, 1
    %p118 = por %p116, %p117
    %p119 = scmp.ne.s32.totalorder %s110, %s111
    %p120 = scmp.eq.s32.totalorder %s16, 0
    %p121 = por %p119, %p120
    %p122 = scmp.ne.s32.totalorder %s110, %s111
    %p123 = scmp.eq.s32.totalorder %s17, 1
    %p124 = por %p122, %p123
    %p126 = scmp.ne.s32.totalorder %s111, %s125
    %p127 = scmp.eq.s32.totalorder %s17, 0
    %p128 = por %p126, %p127
    %s129 = ssub.s32 %s11, %s18
    %p130 = scmp.eq.s32.totalorder %s129, 0
    %s132 = sadd.s32 %s131, 1
    %s133 = scalar_select %p130, %s131, %s132
    %p136 = pneg %p130
    %p137 = scmp.eq.s32.totalorder %s11, 1
    %p138 = por %p136, %p137
    %p139 = scmp.ne.s32.totalorder %s131, %s134
    %p140 = scmp.eq.s32.totalorder %s11, 0
    %p141 = por %p139, %p140
    %p142 = scmp.ne.s32.totalorder %s131, %s134
    %p143 = scmp.eq.s32.totalorder %s16, 1
    %p144 = por %p142, %p143
    %p145 = scmp.ne.s32.totalorder %s134, %s135
    %p146 = scmp.eq.s32.totalorder %s16, 0
    %p147 = por %p145, %p146
    %p148 = scmp.ne.s32.totalorder %s134, %s135
    %p149 = scmp.eq.s32.totalorder %s17, 1
    %p150 = por %p148, %p149
    %p152 = scmp.ne.s32.totalorder %s135, %s151
    %p153 = scmp.eq.s32.totalorder %s17, 0
    %p154 = por %p152, %p153
    %p155 = scmp.le.s32.totalorder 1, %s11
    %p156 = scmp.lt.s32.totalorder %s11, 3
    %p157 = pnand %p155, %p156
    %p158 = pneg %p157
    // Predicated region
    $region9: #{tpu_custom_call.1} parent=5 // pred_check
      _
    $region10: #{tpu_custom_call.1} parent=5 // pred_check_branch
      %160 = sbr.rel (%p157) target = $region12
    $region11: #{tpu_custom_call.1} parent=5 // pred_region
      %s161 = ssub.s32 %s11, 1
      // Predicated region
      $region13: #{tpu_custom_call.1} parent=11 // pred_check
        %p162 = pneg %p58
      $region14: #{tpu_custom_call.1} parent=11 // pred_check_branch
        %164 = sbr.rel (%p162) target = $region16
      $region15: #{tpu_custom_call.1} parent=11 // pred_region
        _
      $region16: #{tpu_custom_call.1} parent=11 // pred_fallthru
        _
      // Predicated region
      $region17: #{tpu_custom_call.1} parent=11 // pred_check
        %p165 = pneg %p79
      $region18: #{tpu_custom_call.1} parent=11 // pred_check_branch
        %167 = sbr.rel (%p165) target = $region20
      $region19: #{tpu_custom_call.1} parent=11 // pred_region
        _
      $region20: #{tpu_custom_call.1} parent=11 // pred_fallthru
        _
      // Predicated region
      $region21: #{tpu_custom_call.1} parent=11 // pred_check
        %p168 = pneg %p100
      $region22: #{tpu_custom_call.1} parent=11 // pred_check_branch
        %170 = sbr.rel (%p168) target = $region24
      $region23: #{tpu_custom_call.1} parent=11 // pred_region
        _
      $region24: #{tpu_custom_call.1} parent=11 // pred_fallthru
        _
      // Predicated region
      $region25: #{tpu_custom_call.1} parent=11 // pred_check
        %p171 = pneg %p121
      $region26: #{tpu_custom_call.1} parent=11 // pred_check_branch
        %173 = sbr.rel (%p171) target = $region28
      $region27: #{tpu_custom_call.1} parent=11 // pred_region
        _
      $region28: #{tpu_custom_call.1} parent=11 // pred_fallthru
        _
    $region12: #{tpu_custom_call.1} parent=5 // pred_fallthru
      _
    %p174 = scmp.lt.s32.totalorder %s11, 2
    // Predicated region
    $region29: #{tpu_custom_call.1} parent=5 // pred_check
      %p175 = pneg %p174
    $region30: #{tpu_custom_call.1} parent=5 // pred_check_branch
      %177 = sbr.rel (%p175) target = $region32
    $region31: #{tpu_custom_call.1} parent=5 // pred_region
      // Predicated region
      $region33: #{tpu_custom_call.1} parent=31 // pred_check
        %p178 = pneg %p31
      $region34: #{tpu_custom_call.1} parent=31 // pred_check_branch
        %180 = sbr.rel (%p178) target = $region36
      $region35: #{tpu_custom_call.1} parent=31 // pred_region
        %p181 = scmp.lt.s32.totalorder %s11, 1
        %s182 = scalar_select %p181, %s11, 1
        %s183 = smul.addr %s182, 2
        %s184 = smul.addr %s183, 4
        %s185 = scalar_lea.vmem %s0, %s184
      $region36: #{tpu_custom_call.1} parent=31 // pred_fallthru
        _
    $region32: #{tpu_custom_call.1} parent=5 // pred_fallthru
      _
    %p186 = scmp.le.s32.totalorder 1, %s11
    %p187 = scmp.lt.s32.totalorder %s11, 3
    %p188 = pnand %p186, %p187
    %p189 = pneg %p188
    // Predicated region
    $region37: #{tpu_custom_call.1} parent=5 // pred_check
      _
    $region38: #{tpu_custom_call.1} parent=5 // pred_check_branch
      %191 = sbr.rel (%p188) target = $region40
    $region39: #{tpu_custom_call.1} parent=5 // pred_region
      %s192 = ssub.s32 %s11, 1
      %p193 = scmp.lt.s32.totalorder %s16, 1
      %s194 = scalar_select %p193, %s16, 1
      %s195 = smul.addr %s194, 2
      %s196 = smul.addr %s195, 4
      %s197 = scalar_lea.vmem %s0, %s196
      %p198 = pneg %p37
      %p199 = pneg %p34
      %p200 = pneg %p58
      %p201 = pneg %p55
      %p202 = pneg %p79
      %p203 = pneg %p76
      %p204 = pneg %p100
      %p205 = pneg %p97
      %p206 = pneg %p121
      %p207 = pneg %p118
      %p208 = pneg %p147
      %p209 = pneg %p144
      %p210 = scmp.lt.s32.totalorder %s16, 1
      %s211 = scalar_select %p210, %s16, 1
      %s212 = smul.addr %s211, 2
      %s213 = smul.addr %s212, 4
      %s214 = scalar_lea.vmem %s5, %s213
      %p215 = scmp.lt.s32.totalorder %s16, 1
      %s216 = scalar_select %p215, %s16, 1
      %s217 = smul.addr %s216, 2
      %s218 = smul.addr %s217, 4
      %s219 = scalar_lea.vmem %s0, %s218
      %p220 = scmp.lt.s32.totalorder %s16, 1
      %s221 = scalar_select %p220, %s16, 1
      %s222 = smul.addr %s221, 2
      %s223 = smul.addr %s222, 4
      %s224 = scalar_lea.vmem %s5, %s223
      %v225 = vlaneseq
      %v226 = vand.u32 %v225, 127
      %v227 = vadd.s32 %v226, 128
      %v228 = vshra.s32 %v226, 4
      %v229 = vshra.s32 %v227, 4
      %v230 = vand.u32 %v226, 15
      %v231 = vand.u32 %v227, 15
      %v232 = vld [vmem:[%s219] sm:$0x77]
      %v234 = vcombine.high %v232, %v232
      %236 = vrot.lane.b32.xlu0 %v232, 17
      %v237 = vpop.permute.xlu0 %236
      %238 = vrot.lane.b32.xlu0 %v234, 17
      %v239 = vpop.permute.xlu0 %238
      %vm240 = vcmp.lt.s32.totalorder %v226, 17
      %v241 = vsel %vm240, %v237, %v239
      %v242 = vsel %vm240, %v239, %v237
      %vm243 = vcmp.ge.s32.totalorder %v228, 1
      %vm244 = vcmp.ge.s32.totalorder %v229, 1
      %vm245 = vcmp.ge.s32.totalorder %v230, 1
      %vm246 = vcmp.ge.s32.totalorder %v231, 1
      %vm247 = vmand %vm243, %vm245
      %vm248 = vmand %vm244, %vm246
      %v249 = vsel %vm247, 1, 0
      %v250 = vsel %vm248, 1, 0
      %vm251 = vcmp.eq.s32.totalorder %v249, 1
      %vm252 = vcmp.eq.s32.totalorder %v250, 1
      %v253 = vsel %vm251, %v242, 0.0
      %v254 = vsel %vm252, %v241, 0.0
      %v255 = vld [vmem:[%s1] sm:$0xff]
      %v256 = vld [vmem:[%s1 + $0x8] sm:$0xff]
      %257 = vrot.lane.b32.xlu0 %v232, 16
      %v258 = vpop.permute.xlu0 %257
      %259 = vrot.lane.b32.xlu0 %v234, 16
      %v260 = vpop.permute.xlu0 %259
      %vm261 = vcmp.lt.s32.totalorder %v226, 16
      %v262 = vsel %vm261, %v258, %v260
      %v263 = vsel %vm261, %v260, %v258
      %v264 = vsel %vm243, 1, 0
      %v265 = vsel %vm244, 1, 0
      %vm266 = vcmp.eq.s32.totalorder %v264, 1
      %vm267 = vcmp.eq.s32.totalorder %v265, 1
      %v268 = vsel %vm266, %v263, 0.0
      %v269 = vsel %vm267, %v262, 0.0
      %s270 = scalar_lea.vmem %s1, 16
      %v271 = vld [vmem:[%s270] sm:$0xff]
      %v272 = vld [vmem:[%s270 + $0x8] sm:$0xff]
      %vm273 = vcmask 23552
      %v275 = vsel %vm273, %v271, 0
      %v278 = vsel %vm273, %v272, 0
      %vm280 = vcmask 1042432
      %v282 = vsel %vm280, %v268, 0
      %v285 = vsel %vm280, %v269, 0
      %287 = vmatprep.subr.mxu0 0.0
      %288 = vmatpush1.msra.mxu0 0.0
      %289 = vmatprep.subr.mxu0 0.0
      %290 = vmatpush1.msra.mxu0 0.0
      %291 = vmatprep.subr.mxu0 0.0
      %292 = vmatpush1.msra.mxu0 0.0
      %293 = vmatprep.subr.mxu0 0.0
      %294 = vmatpush1.msra.mxu0 0.0
      %295 = vmatprep.subr.mxu0 0.0
      %296 = vmatpush1.msra.mxu0 0.0
      %297 = vmatprep.subr.mxu0 0.0
      %298 = vmatpush1.msra.mxu0 0.0
      %299 = vmatprep.subr.mxu0 0.0
      %300 = vmatpush1.msra.mxu0 0.0
      %301 = vmatprep.subr.mxu0 0.0
      %302 = vmatpush1.msra.mxu0 0.0
      %303 = vmatprep.subr.mxu0 0.0
      %304 = vmatpush1.msra.mxu0 0.0
      %305 = vmatprep.subr.mxu0 0.0
      %306 = vmatpush1.msra.mxu0 0.0
      %307 = vmatprep.subr.mxu0 0.0
      %308 = vmatpush1.msra.mxu0 0.0
      %309 = vmatprep.subr.mxu0 0.0
      %310 = vmatpush1.msra.mxu0 0.0
      %311 = vmatprep.subr.mxu0 0.0
      %312 = vmatpush1.msra.mxu0 0.0
      %313 = vmatprep.subr.mxu0 0.0
      %314 = vmatpush1.msra.mxu0 0.0
      %315 = vmatprep.subr.mxu0 0.0
      %316 = vmatpush1.msra.mxu0 0.0
      %317 = vmatprep.subr.mxu0 %v285
      %318 = vmatpush1.msra.mxu0 %v282
      %319 = vmatprep.subr.mxu0 0.0
      %320 = vmatpush2.msra.mxu0 0.0
      %321 = vmatprep.subr.mxu0 0.0
      %322 = vmatpush2.msra.mxu0 0.0
      %323 = vmatprep.subr.mxu0 0.0
      %324 = vmatpush2.msra.mxu0 0.0
      %325 = vmatprep.subr.mxu0 0.0
      %326 = vmatpush2.msra.mxu0 0.0
      %327 = vmatprep.subr.mxu0 0.0
      %328 = vmatpush2.msra.mxu0 0.0
      %329 = vmatprep.subr.mxu0 0.0
      %330 = vmatpush2.msra.mxu0 0.0
      %331 = vmatprep.subr.mxu0 0.0
      %332 = vmatpush2.msra.mxu0 0.0
      %333 = vmatprep.subr.mxu0 0.0
      %334 = vmatpush2.msra.mxu0 0.0
      %335 = vmatprep.subr.mxu0 0.0
      %336 = vmatpush2.msra.mxu0 0.0
      %337 = vmatprep.subr.mxu0 0.0
      %338 = vmatpush2.msra.mxu0 0.0
      %339 = vmatprep.subr.mxu0 0.0
      %340 = vmatpush2.msra.mxu0 0.0
      %341 = vmatprep.subr.mxu0 0.0
      %342 = vmatpush2.msra.mxu0 0.0
      %343 = vmatprep.subr.mxu0 0.0
      %344 = vmatpush2.msra.mxu0 0.0
      %345 = vmatprep.subr.mxu0 0.0
      %346 = vmatpush2.msra.mxu0 0.0
      %347 = vmatprep.subr.mxu0 0.0
      %348 = vmatpush2.msra.mxu0 0.0
      %349 = vmatprep.subr.mxu0 0.0
      %350 = vmatpush2.msra.mxu0 0.0
      %351 = vmatprep.mubr.f32.mxu0 0.0
      %352 = vmatmul.mubr.f32.gmra.mxu0 %v275
      %v353 = vpop.f32.mrf.mxu0
      %v354 = vadd.f32 0.0, %v353
      %v355 = vpop.f32.mrf.mxu0
      %v356 = vadd.f32 0.0, %v355
      %357 = vmatprep.mubr.f32.mxu0 0.0
      %358 = vmatmul.mubr.f32.gmra.mxu0 %v278
      %v359 = vpop.f32.mrf.mxu0
      %v360 = vadd.f32 0.0, %v359
      %v361 = vpop.f32.mrf.mxu0
      %v362 = vadd.f32 0.0, %v361
      %363 = vdwg.mxu0
      %v365 = vsel %vm273, %v255, 0
      %v368 = vsel %vm273, %v256, 0
      %v371 = vsel %vm280, %v253, 0
      %v374 = vsel %vm280, %v254, 0
      %376 = vmatprep.subr.mxu0 0.0
      %377 = vmatpush1.msra.mxu0 0.0
      %378 = vmatprep.subr.mxu0 0.0
      %379 = vmatpush1.msra.mxu0 0.0
      %380 = vmatprep.subr.mxu0 0.0
      %381 = vmatpush1.msra.mxu0 0.0
      %382 = vmatprep.subr.mxu0 0.0
      %383 = vmatpush1.msra.mxu0 0.0
      %384 = vmatprep.subr.mxu0 0.0
      %385 = vmatpush1.msra.mxu0 0.0
      %386 = vmatprep.subr.mxu0 0.0
      %387 = vmatpush1.msra.mxu0 0.0
      %388 = vmatprep.subr.mxu0 0.0
      %389 = vmatpush1.msra.mxu0 0.0
      %390 = vmatprep.subr.mxu0 0.0
      %391 = vmatpush1.msra.mxu0 0.0
      %392 = vmatprep.subr.mxu0 0.0
      %393 = vmatpush1.msra.mxu0 0.0
      %394 = vmatprep.subr.mxu0 0.0
      %395 = vmatpush1.msra.mxu0 0.0
      %396 = vmatprep.subr.mxu0 0.0
      %397 = vmatpush1.msra.mxu0 0.0
      %398 = vmatprep.subr.mxu0 0.0
      %399 = vmatpush1.msra.mxu0 0.0
      %400 = vmatprep.subr.mxu0 0.0
      %401 = vmatpush1.msra.mxu0 0.0
      %402 = vmatprep.subr.mxu0 0.0
      %403 = vmatpush1.msra.mxu0 0.0
      %404 = vmatprep.subr.mxu0 0.0
      %405 = vmatpush1.msra.mxu0 0.0
      %406 = vmatprep.subr.mxu0 %v374
      %407 = vmatpush1.msra.mxu0 %v371
      %408 = vmatprep.subr.mxu0 0.0
      %409 = vmatpush2.msra.mxu0 0.0
      %410 = vmatprep.subr.mxu0 0.0
      %411 = vmatpush2.msra.mxu0 0.0
      %412 = vmatprep.subr.mxu0 0.0
      %413 = vmatpush2.msra.mxu0 0.0
      %414 = vmatprep.subr.mxu0 0.0
      %415 = vmatpush2.msra.mxu0 0.0
      %416 = vmatprep.subr.mxu0 0.0
      %417 = vmatpush2.msra.mxu0 0.0
      %418 = vmatprep.subr.mxu0 0.0
      %419 = vmatpush2.msra.mxu0 0.0
      %420 = vmatprep.subr.mxu0 0.0
      %421 = vmatpush2.msra.mxu0 0.0
      %422 = vmatprep.subr.mxu0 0.0
      %423 = vmatpush2.msra.mxu0 0.0
      %424 = vmatprep.subr.mxu0 0.0
      %425 = vmatpush2.msra.mxu0 0.0
      %426 = vmatprep.subr.mxu0 0.0
      %427 = vmatpush2.msra.mxu0 0.0
      %428 = vmatprep.subr.mxu0 0.0
      %429 = vmatpush2.msra.mxu0 0.0
      %430 = vmatprep.subr.mxu0 0.0
      %431 = vmatpush2.msra.mxu0 0.0
      %432 = vmatprep.subr.mxu0 0.0
      %433 = vmatpush2.msra.mxu0 0.0
      %434 = vmatprep.subr.mxu0 0.0
      %435 = vmatpush2.msra.mxu0 0.0
      %436 = vmatprep.subr.mxu0 0.0
      %437 = vmatpush2.msra.mxu0 0.0
      %438 = vmatprep.subr.mxu0 0.0
      %439 = vmatpush2.msra.mxu0 0.0
      %440 = vmatprep.mubr.f32.mxu0 0.0
      %441 = vmatmul.mubr.f32.gmra.mxu0 %v365
      %v442 = vpop.f32.mrf.mxu0
      %v443 = vadd.f32 %v354, %v442
      %v444 = vpop.f32.mrf.mxu0
      %v445 = vadd.f32 %v356, %v444
      %446 = vmatprep.mubr.f32.mxu0 0.0
      %447 = vmatmul.mubr.f32.gmra.mxu0 %v368
      %v448 = vpop.f32.mrf.mxu0
      %v449 = vadd.f32 %v360, %v448
      %v450 = vpop.f32.mrf.mxu0
      %v451 = vadd.f32 %v362, %v450
      %452 = vdwg.mxu0
      %453 = vrot.lane.b32.xlu0 %v232, 15
      %v454 = vpop.permute.xlu0 %453
      %455 = vrot.lane.b32.xlu0 %v234, 15
      %v456 = vpop.permute.xlu0 %455
      %vm457 = vcmp.lt.s32.totalorder %v226, 15
      %v458 = vsel %vm457, %v454, %v456
      %v459 = vsel %vm457, %v456, %v454
      %vm460 = vcmp.le.s32.totalorder %v230, 14
      %vm461 = vcmp.le.s32.totalorder %v231, 14
      %vm462 = vmand %vm243, %vm460
      %vm463 = vmand %vm244, %vm461
      %v464 = vsel %vm462, 1, 0
      %v465 = vsel %vm463, 1, 0
      %vm466 = vcmp.eq.s32.totalorder %v464, 1
      %vm467 = vcmp.eq.s32.totalorder %v465, 1
      %v468 = vsel %vm466, %v459, 0.0
      %v469 = vsel %vm467, %v458, 0.0
      %s470 = scalar_lea.vmem %s1, 32
      %v471 = vld [vmem:[%s470] sm:$0xff]
      %v472 = vld [vmem:[%s470 + $0x8] sm:$0xff]
      %v474 = vsel %vm273, %v471, 0
      %v477 = vsel %vm273, %v472, 0
      %v480 = vsel %vm280, %v468, 0
      %v483 = vsel %vm280, %v469, 0
      %485 = vmatprep.subr.mxu0 0.0
      %486 = vmatpush1.msra.mxu0 0.0
      %487 = vmatprep.subr.mxu0 0.0
      %488 = vmatpush1.msra.mxu0 0.0
      %489 = vmatprep.subr.mxu0 0.0
      %490 = vmatpush1.msra.mxu0 0.0
      %491 = vmatprep.subr.mxu0 0.0
      %492 = vmatpush1.msra.mxu0 0.0
      %493 = vmatprep.subr.mxu0 0.0
      %494 = vmatpush1.msra.mxu0 0.0
      %495 = vmatprep.subr.mxu0 0.0
      %496 = vmatpush1.msra.mxu0 0.0
      %497 = vmatprep.subr.mxu0 0.0
      %498 = vmatpush1.msra.mxu0 0.0
      %499 = vmatprep.subr.mxu0 0.0
      %500 = vmatpush1.msra.mxu0 0.0
      %501 = vmatprep.subr.mxu0 0.0
      %502 = vmatpush1.msra.mxu0 0.0
      %503 = vmatprep.subr.mxu0 0.0
      %504 = vmatpush1.msra.mxu0 0.0
      %505 = vmatprep.subr.mxu0 0.0
      %506 = vmatpush1.msra.mxu0 0.0
      %507 = vmatprep.subr.mxu0 0.0
      %508 = vmatpush1.msra.mxu0 0.0
      %509 = vmatprep.subr.mxu0 0.0
      %510 = vmatpush1.msra.mxu0 0.0
      %511 = vmatprep.subr.mxu0 0.0
      %512 = vmatpush1.msra.mxu0 0.0
      %513 = vmatprep.subr.mxu0 0.0
      %514 = vmatpush1.msra.mxu0 0.0
      %515 = vmatprep.subr.mxu0 %v483
      %516 = vmatpush1.msra.mxu0 %v480
      %517 = vmatprep.subr.mxu0 0.0
      %518 = vmatpush2.msra.mxu0 0.0
      %519 = vmatprep.subr.mxu0 0.0
      %520 = vmatpush2.msra.mxu0 0.0
      %521 = vmatprep.subr.mxu0 0.0
      %522 = vmatpush2.msra.mxu0 0.0
      %523 = vmatprep.subr.mxu0 0.0
      %524 = vmatpush2.msra.mxu0 0.0
      %525 = vmatprep.subr.mxu0 0.0
      %526 = vmatpush2.msra.mxu0 0.0
      %527 = vmatprep.subr.mxu0 0.0
      %528 = vmatpush2.msra.mxu0 0.0
      %529 = vmatprep.subr.mxu0 0.0
      %530 = vmatpush2.msra.mxu0 0.0
      %531 = vmatprep.subr.mxu0 0.0
      %532 = vmatpush2.msra.mxu0 0.0
      %533 = vmatprep.subr.mxu0 0.0
      %534 = vmatpush2.msra.mxu0 0.0
      %535 = vmatprep.subr.mxu0 0.0
      %536 = vmatpush2.msra.mxu0 0.0
      %537 = vmatprep.subr.mxu0 0.0
      %538 = vmatpush2.msra.mxu0 0.0
      %539 = vmatprep.subr.mxu0 0.0
      %540 = vmatpush2.msra.mxu0 0.0
      %541 = vmatprep.subr.mxu0 0.0
      %542 = vmatpush2.msra.mxu0 0.0
      %543 = vmatprep.subr.mxu0 0.0
      %544 = vmatpush2.msra.mxu0 0.0
      %545 = vmatprep.subr.mxu0 0.0
      %546 = vmatpush2.msra.mxu0 0.0
      %547 = vmatprep.subr.mxu0 0.0
      %548 = vmatpush2.msra.mxu0 0.0
      %549 = vmatprep.mubr.f32.mxu0 0.0
      %550 = vmatmul.mubr.f32.gmra.mxu0 %v474
      %v551 = vpop.f32.mrf.mxu0
      %v552 = vadd.f32 0.0, %v551
      %v553 = vpop.f32.mrf.mxu0
      %v554 = vadd.f32 0.0, %v553
      %555 = vmatprep.mubr.f32.mxu0 0.0
      %556 = vmatmul.mubr.f32.gmra.mxu0 %v477
      %v557 = vpop.f32.mrf.mxu0
      %v558 = vadd.f32 0.0, %v557
      %v559 = vpop.f32.mrf.mxu0
      %v560 = vadd.f32 0.0, %v559
      %561 = vdwg.mxu0
      %v562 = vadd.f32 %v443, %v552
      %v563 = vadd.f32 %v445, %v554
      %v564 = vadd.f32 %v449, %v558
      %v565 = vadd.f32 %v451, %v560
      %566 = vrot.lane.b32.xlu0 %v232, 1
      %v567 = vpop.permute.xlu0 %566
      %568 = vrot.lane.b32.xlu0 %v234, 1
      %v569 = vpop.permute.xlu0 %568
      %vm570 = vcmp.lt.s32.totalorder %v226, 1
      %v571 = vsel %vm570, %v567, %v569
      %v572 = vsel %vm570, %v569, %v567
      %v573 = vsel %vm245, 1, 0
      %v574 = vsel %vm246, 1, 0
      %vm575 = vcmp.eq.s32.totalorder %v573, 1
      %vm576 = vcmp.eq.s32.totalorder %v574, 1
      %v577 = vsel %vm575, %v572, 0.0
      %v578 = vsel %vm576, %v571, 0.0
      %s579 = scalar_lea.vmem %s1, 48
      %v580 = vld [vmem:[%s579] sm:$0xff]
      %v581 = vld [vmem:[%s579 + $0x8] sm:$0xff]
      %v583 = vsel %vm273, %v580, 0
      %v586 = vsel %vm273, %v581, 0
      %v589 = vsel %vm280, %v577, 0
      %v592 = vsel %vm280, %v578, 0
      %594 = vmatprep.subr.mxu0 0.0
      %595 = vmatpush1.msra.mxu0 0.0
      %596 = vmatprep.subr.mxu0 0.0
      %597 = vmatpush1.msra.mxu0 0.0
      %598 = vmatprep.subr.mxu0 0.0
      %599 = vmatpush1.msra.mxu0 0.0
      %600 = vmatprep.subr.mxu0 0.0
      %601 = vmatpush1.msra.mxu0 0.0
      %602 = vmatprep.subr.mxu0 0.0
      %603 = vmatpush1.msra.mxu0 0.0
      %604 = vmatprep.subr.mxu0 0.0
      %605 = vmatpush1.msra.mxu0 0.0
      %606 = vmatprep.subr.mxu0 0.0
      %607 = vmatpush1.msra.mxu0 0.0
      %608 = vmatprep.subr.mxu0 0.0
      %609 = vmatpush1.msra.mxu0 0.0
      %610 = vmatprep.subr.mxu0 0.0
      %611 = vmatpush1.msra.mxu0 0.0
      %612 = vmatprep.subr.mxu0 0.0
      %613 = vmatpush1.msra.mxu0 0.0
      %614 = vmatprep.subr.mxu0 0.0
      %615 = vmatpush1.msra.mxu0 0.0
      %616 = vmatprep.subr.mxu0 0.0
      %617 = vmatpush1.msra.mxu0 0.0
      %618 = vmatprep.subr.mxu0 0.0
      %619 = vmatpush1.msra.mxu0 0.0
      %620 = vmatprep.subr.mxu0 0.0
      %621 = vmatpush1.msra.mxu0 0.0
      %622 = vmatprep.subr.mxu0 0.0
      %623 = vmatpush1.msra.mxu0 0.0
      %624 = vmatprep.subr.mxu0 %v592
      %625 = vmatpush1.msra.mxu0 %v589
      %626 = vmatprep.subr.mxu0 0.0
      %627 = vmatpush2.msra.mxu0 0.0
      %628 = vmatprep.subr.mxu0 0.0
      %629 = vmatpush2.msra.mxu0 0.0
      %630 = vmatprep.subr.mxu0 0.0
      %631 = vmatpush2.msra.mxu0 0.0
      %632 = vmatprep.subr.mxu0 0.0
      %633 = vmatpush2.msra.mxu0 0.0
      %634 = vmatprep.subr.mxu0 0.0
      %635 = vmatpush2.msra.mxu0 0.0
      %636 = vmatprep.subr.mxu0 0.0
      %637 = vmatpush2.msra.mxu0 0.0
      %638 = vmatprep.subr.mxu0 0.0
      %639 = vmatpush2.msra.mxu0 0.0
      %640 = vmatprep.subr.mxu0 0.0
      %641 = vmatpush2.msra.mxu0 0.0
      %642 = vmatprep.subr.mxu0 0.0
      %643 = vmatpush2.msra.mxu0 0.0
      %644 = vmatprep.subr.mxu0 0.0
      %645 = vmatpush2.msra.mxu0 0.0
      %646 = vmatprep.subr.mxu0 0.0
      %647 = vmatpush2.msra.mxu0 0.0
      %648 = vmatprep.subr.mxu0 0.0
      %649 = vmatpush2.msra.mxu0 0.0
      %650 = vmatprep.subr.mxu0 0.0
      %651 = vmatpush2.msra.mxu0 0.0
      %652 = vmatprep.subr.mxu0 0.0
      %653 = vmatpush2.msra.mxu0 0.0
      %654 = vmatprep.subr.mxu0 0.0
      %655 = vmatpush2.msra.mxu0 0.0
      %656 = vmatprep.subr.mxu0 0.0
      %657 = vmatpush2.msra.mxu0 0.0
      %658 = vmatprep.mubr.f32.mxu0 0.0
      %659 = vmatmul.mubr.f32.gmra.mxu0 %v583
      %v660 = vpop.f32.mrf.mxu0
      %v661 = vadd.f32 0.0, %v660
      %v662 = vpop.f32.mrf.mxu0
      %v663 = vadd.f32 0.0, %v662
      %664 = vmatprep.mubr.f32.mxu0 0.0
      %665 = vmatmul.mubr.f32.gmra.mxu0 %v586
      %v666 = vpop.f32.mrf.mxu0
      %v667 = vadd.f32 0.0, %v666
      %v668 = vpop.f32.mrf.mxu0
      %v669 = vadd.f32 0.0, %v668
      %670 = vdwg.mxu0
      %v671 = vadd.f32 %v562, %v661
      %v672 = vadd.f32 %v563, %v663
      %v673 = vadd.f32 %v564, %v667
      %v674 = vadd.f32 %v565, %v669
      %s675 = scalar_lea.vmem %s1, 64
      %v676 = vld [vmem:[%s675] sm:$0xff]
      %v677 = vld [vmem:[%s675 + $0x8] sm:$0xff]
      %v679 = vsel %vm273, %v676, 0
      %v682 = vsel %vm273, %v677, 0
      %v684 = vsel %vm280, %v232, 0
      %v686 = vsel %vm280, %v234, 0
      %688 = vmatprep.subr.mxu0 0.0
      %689 = vmatpush1.msra.mxu0 0.0
      %690 = vmatprep.subr.mxu0 0.0
      %691 = vmatpush1.msra.mxu0 0.0
      %692 = vmatprep.subr.mxu0 0.0
      %693 = vmatpush1.msra.mxu0 0.0
      %694 = vmatprep.subr.mxu0 0.0
      %695 = vmatpush1.msra.mxu0 0.0
      %696 = vmatprep.subr.mxu0 0.0
      %697 = vmatpush1.msra.mxu0 0.0
      %698 = vmatprep.subr.mxu0 0.0
      %699 = vmatpush1.msra.mxu0 0.0
      %700 = vmatprep.subr.mxu0 0.0
      %701 = vmatpush1.msra.mxu0 0.0
      %702 = vmatprep.subr.mxu0 0.0
      %703 = vmatpush1.msra.mxu0 0.0
      %704 = vmatprep.subr.mxu0 0.0
      %705 = vmatpush1.msra.mxu0 0.0
      %706 = vmatprep.subr.mxu0 0.0
      %707 = vmatpush1.msra.mxu0 0.0
      %708 = vmatprep.subr.mxu0 0.0
      %709 = vmatpush1.msra.mxu0 0.0
      %710 = vmatprep.subr.mxu0 0.0
      %711 = vmatpush1.msra.mxu0 0.0
      %712 = vmatprep.subr.mxu0 0.0
      %713 = vmatpush1.msra.mxu0 0.0
      %714 = vmatprep.subr.mxu0 0.0
      %715 = vmatpush1.msra.mxu0 0.0
      %716 = vmatprep.subr.mxu0 0.0
      %717 = vmatpush1.msra.mxu0 0.0
      %718 = vmatprep.subr.mxu0 %v686
      %719 = vmatpush1.msra.mxu0 %v684
      %720 = vmatprep.subr.mxu0 0.0
      %721 = vmatpush2.msra.mxu0 0.0
      %722 = vmatprep.subr.mxu0 0.0
      %723 = vmatpush2.msra.mxu0 0.0
      %724 = vmatprep.subr.mxu0 0.0
      %725 = vmatpush2.msra.mxu0 0.0
      %726 = vmatprep.subr.mxu0 0.0
      %727 = vmatpush2.msra.mxu0 0.0
      %728 = vmatprep.subr.mxu0 0.0
      %729 = vmatpush2.msra.mxu0 0.0
      %730 = vmatprep.subr.mxu0 0.0
      %731 = vmatpush2.msra.mxu0 0.0
      %732 = vmatprep.subr.mxu0 0.0
      %733 = vmatpush2.msra.mxu0 0.0
      %734 = vmatprep.subr.mxu0 0.0
      %735 = vmatpush2.msra.mxu0 0.0
      %736 = vmatprep.subr.mxu0 0.0
      %737 = vmatpush2.msra.mxu0 0.0
      %738 = vmatprep.subr.mxu0 0.0
      %739 = vmatpush2.msra.mxu0 0.0
      %740 = vmatprep.subr.mxu0 0.0
      %741 = vmatpush2.msra.mxu0 0.0
      %742 = vmatprep.subr.mxu0 0.0
      %743 = vmatpush2.msra.mxu0 0.0
      %744 = vmatprep.subr.mxu0 0.0
      %745 = vmatpush2.msra.mxu0 0.0
      %746 = vmatprep.subr.mxu0 0.0
      %747 = vmatpush2.msra.mxu0 0.0
      %748 = vmatprep.subr.mxu0 0.0
      %749 = vmatpush2.msra.mxu0 0.0
      %750 = vmatprep.subr.mxu0 0.0
      %751 = vmatpush2.msra.mxu0 0.0
      %752 = vmatprep.mubr.f32.mxu0 0.0
      %753 = vmatmul.mubr.f32.gmra.mxu0 %v679
      %v754 = vpop.f32.mrf.mxu0
      %v755 = vadd.f32 0.0, %v754
      %v756 = vpop.f32.mrf.mxu0
      %v757 = vadd.f32 0.0, %v756
      %758 = vmatprep.mubr.f32.mxu0 0.0
      %759 = vmatmul.mubr.f32.gmra.mxu0 %v682
      %v760 = vpop.f32.mrf.mxu0
      %v761 = vadd.f32 0.0, %v760
      %v762 = vpop.f32.mrf.mxu0
      %v763 = vadd.f32 0.0, %v762
      %764 = vdwg.mxu0
      %v765 = vadd.f32 %v671, %v755
      %v766 = vadd.f32 %v672, %v757
      %v767 = vadd.f32 %v673, %v761
      %v768 = vadd.f32 %v674, %v763
      %769 = vrot.lane.b32.xlu0 %v232, 127
      %v770 = vpop.permute.xlu0 %769
      %771 = vrot.lane.b32.xlu0 %v234, 127
      %v772 = vpop.permute.xlu0 %771
      %vm773 = vcmp.lt.s32.totalorder %v226, 127
      %v774 = vsel %vm773, %v770, %v772
      %v775 = vsel %vm773, %v772, %v770
      %v776 = vsel %vm460, 1, 0
      %v777 = vsel %vm461, 1, 0
      %vm778 = vcmp.eq.s32.totalorder %v776, 1
      %vm779 = vcmp.eq.s32.totalorder %v777, 1
      %v780 = vsel %vm778, %v774, 0.0
      %v781 = vsel %vm779, %v775, 0.0
      %s782 = scalar_lea.vmem %s1, 80
      %v783 = vld [vmem:[%s782] sm:$0xff]
      %v784 = vld [vmem:[%s782 + $0x8] sm:$0xff]
      %v786 = vsel %vm273, %v783, 0
      %v789 = vsel %vm273, %v784, 0
      %v792 = vsel %vm280, %v780, 0
      %v795 = vsel %vm280, %v781, 0
      %797 = vmatprep.subr.mxu0 0.0
      %798 = vmatpush1.msra.mxu0 0.0
      %799 = vmatprep.subr.mxu0 0.0
      %800 = vmatpush1.msra.mxu0 0.0
      %801 = vmatprep.subr.mxu0 0.0
      %802 = vmatpush1.msra.mxu0 0.0
      %803 = vmatprep.subr.mxu0 0.0
      %804 = vmatpush1.msra.mxu0 0.0
      %805 = vmatprep.subr.mxu0 0.0
      %806 = vmatpush1.msra.mxu0 0.0
      %807 = vmatprep.subr.mxu0 0.0
      %808 = vmatpush1.msra.mxu0 0.0
      %809 = vmatprep.subr.mxu0 0.0
      %810 = vmatpush1.msra.mxu0 0.0
      %811 = vmatprep.subr.mxu0 0.0
      %812 = vmatpush1.msra.mxu0 0.0
      %813 = vmatprep.subr.mxu0 0.0
      %814 = vmatpush1.msra.mxu0 0.0
      %815 = vmatprep.subr.mxu0 0.0
      %816 = vmatpush1.msra.mxu0 0.0
      %817 = vmatprep.subr.mxu0 0.0
      %818 = vmatpush1.msra.mxu0 0.0
      %819 = vmatprep.subr.mxu0 0.0
      %820 = vmatpush1.msra.mxu0 0.0
      %821 = vmatprep.subr.mxu0 0.0
      %822 = vmatpush1.msra.mxu0 0.0
      %823 = vmatprep.subr.mxu0 0.0
      %824 = vmatpush1.msra.mxu0 0.0
      %825 = vmatprep.subr.mxu0 0.0
      %826 = vmatpush1.msra.mxu0 0.0
      %827 = vmatprep.subr.mxu0 %v795
      %828 = vmatpush1.msra.mxu0 %v792
      %829 = vmatprep.subr.mxu0 0.0
      %830 = vmatpush2.msra.mxu0 0.0
      %831 = vmatprep.subr.mxu0 0.0
      %832 = vmatpush2.msra.mxu0 0.0
      %833 = vmatprep.subr.mxu0 0.0
      %834 = vmatpush2.msra.mxu0 0.0
      %835 = vmatprep.subr.mxu0 0.0
      %836 = vmatpush2.msra.mxu0 0.0
      %837 = vmatprep.subr.mxu0 0.0
      %838 = vmatpush2.msra.mxu0 0.0
      %839 = vmatprep.subr.mxu0 0.0
      %840 = vmatpush2.msra.mxu0 0.0
      %841 = vmatprep.subr.mxu0 0.0
      %842 = vmatpush2.msra.mxu0 0.0
      %843 = vmatprep.subr.mxu0 0.0
      %844 = vmatpush2.msra.mxu0 0.0
      %845 = vmatprep.subr.mxu0 0.0
      %846 = vmatpush2.msra.mxu0 0.0
      %847 = vmatprep.subr.mxu0 0.0
      %848 = vmatpush2.msra.mxu0 0.0
      %849 = vmatprep.subr.mxu0 0.0
      %850 = vmatpush2.msra.mxu0 0.0
      %851 = vmatprep.subr.mxu0 0.0
      %852 = vmatpush2.msra.mxu0 0.0
      %853 = vmatprep.subr.mxu0 0.0
      %854 = vmatpush2.msra.mxu0 0.0
      %855 = vmatprep.subr.mxu0 0.0
      %856 = vmatpush2.msra.mxu0 0.0
      %857 = vmatprep.subr.mxu0 0.0
      %858 = vmatpush2.msra.mxu0 0.0
      %859 = vmatprep.subr.mxu0 0.0
      %860 = vmatpush2.msra.mxu0 0.0
      %861 = vmatprep.mubr.f32.mxu0 0.0
      %862 = vmatmul.mubr.f32.gmra.mxu0 %v786
      %v863 = vpop.f32.mrf.mxu0
      %v864 = vadd.f32 0.0, %v863
      %v865 = vpop.f32.mrf.mxu0
      %v866 = vadd.f32 0.0, %v865
      %867 = vmatprep.mubr.f32.mxu0 0.0
      %868 = vmatmul.mubr.f32.gmra.mxu0 %v789
      %v869 = vpop.f32.mrf.mxu0
      %v870 = vadd.f32 0.0, %v869
      %v871 = vpop.f32.mrf.mxu0
      %v872 = vadd.f32 0.0, %v871
      %873 = vdwg.mxu0
      %v874 = vadd.f32 %v765, %v864
      %v875 = vadd.f32 %v766, %v866
      %v876 = vadd.f32 %v767, %v870
      %v877 = vadd.f32 %v768, %v872
      %878 = vrot.lane.b32.xlu0 %v232, 113
      %v879 = vpop.permute.xlu0 %878
      %880 = vrot.lane.b32.xlu0 %v234, 113
      %v881 = vpop.permute.xlu0 %880
      %vm882 = vcmp.lt.s32.totalorder %v226, 113
      %v883 = vsel %vm882, %v879, %v881
      %v884 = vsel %vm882, %v881, %v879
      %vm885 = vcmp.le.s32.totalorder %v228, 14
      %vm886 = vcmp.le.s32.totalorder %v229, 14
      %vm887 = vmand %vm885, %vm245
      %vm888 = vmand %vm886, %vm246
      %v889 = vsel %vm887, 1, 0
      %v890 = vsel %vm888, 1, 0
      %vm891 = vcmp.eq.s32.totalorder %v889, 1
      %vm892 = vcmp.eq.s32.totalorder %v890, 1
      %v893 = vsel %vm891, %v883, 0.0
      %v894 = vsel %vm892, %v884, 0.0
      %s895 = scalar_lea.vmem %s1, 96
      %v896 = vld [vmem:[%s895] sm:$0xff]
      %v897 = vld [vmem:[%s895 + $0x8] sm:$0xff]
      %v899 = vsel %vm273, %v896, 0
      %v902 = vsel %vm273, %v897, 0
      %v905 = vsel %vm280, %v893, 0
      %v908 = vsel %vm280, %v894, 0
      %910 = vmatprep.subr.mxu0 0.0
      %911 = vmatpush1.msra.mxu0 0.0
      %912 = vmatprep.subr.mxu0 0.0
      %913 = vmatpush1.msra.mxu0 0.0
      %914 = vmatprep.subr.mxu0 0.0
      %915 = vmatpush1.msra.mxu0 0.0
      %916 = vmatprep.subr.mxu0 0.0
      %917 = vmatpush1.msra.mxu0 0.0
      %918 = vmatprep.subr.mxu0 0.0
      %919 = vmatpush1.msra.mxu0 0.0
      %920 = vmatprep.subr.mxu0 0.0
      %921 = vmatpush1.msra.mxu0 0.0
      %922 = vmatprep.subr.mxu0 0.0
      %923 = vmatpush1.msra.mxu0 0.0
      %924 = vmatprep.subr.mxu0 0.0
      %925 = vmatpush1.msra.mxu0 0.0
      %926 = vmatprep.subr.mxu0 0.0
      %927 = vmatpush1.msra.mxu0 0.0
      %928 = vmatprep.subr.mxu0 0.0
      %929 = vmatpush1.msra.mxu0 0.0
      %930 = vmatprep.subr.mxu0 0.0
      %931 = vmatpush1.msra.mxu0 0.0
      %932 = vmatprep.subr.mxu0 0.0
      %933 = vmatpush1.msra.mxu0 0.0
      %934 = vmatprep.subr.mxu0 0.0
      %935 = vmatpush1.msra.mxu0 0.0
      %936 = vmatprep.subr.mxu0 0.0
      %937 = vmatpush1.msra.mxu0 0.0
      %938 = vmatprep.subr.mxu0 0.0
      %939 = vmatpush1.msra.mxu0 0.0
      %940 = vmatprep.subr.mxu0 %v908
      %941 = vmatpush1.msra.mxu0 %v905
      %942 = vmatprep.subr.mxu0 0.0
      %943 = vmatpush2.msra.mxu0 0.0
      %944 = vmatprep.subr.mxu0 0.0
      %945 = vmatpush2.msra.mxu0 0.0
      %946 = vmatprep.subr.mxu0 0.0
      %947 = vmatpush2.msra.mxu0 0.0
      %948 = vmatprep.subr.mxu0 0.0
      %949 = vmatpush2.msra.mxu0 0.0
      %950 = vmatprep.subr.mxu0 0.0
      %951 = vmatpush2.msra.mxu0 0.0
      %952 = vmatprep.subr.mxu0 0.0
      %953 = vmatpush2.msra.mxu0 0.0
      %954 = vmatprep.subr.mxu0 0.0
      %955 = vmatpush2.msra.mxu0 0.0
      %956 = vmatprep.subr.mxu0 0.0
      %957 = vmatpush2.msra.mxu0 0.0
      %958 = vmatprep.subr.mxu0 0.0
      %959 = vmatpush2.msra.mxu0 0.0
      %960 = vmatprep.subr.mxu0 0.0
      %961 = vmatpush2.msra.mxu0 0.0
      %962 = vmatprep.subr.mxu0 0.0
      %963 = vmatpush2.msra.mxu0 0.0
      %964 = vmatprep.subr.mxu0 0.0
      %965 = vmatpush2.msra.mxu0 0.0
      %966 = vmatprep.subr.mxu0 0.0
      %967 = vmatpush2.msra.mxu0 0.0
      %968 = vmatprep.subr.mxu0 0.0
      %969 = vmatpush2.msra.mxu0 0.0
      %970 = vmatprep.subr.mxu0 0.0
      %971 = vmatpush2.msra.mxu0 0.0
      %972 = vmatprep.subr.mxu0 0.0
      %973 = vmatpush2.msra.mxu0 0.0
      %974 = vmatprep.mubr.f32.mxu0 0.0
      %975 = vmatmul.mubr.f32.gmra.mxu0 %v899
      %v976 = vpop.f32.mrf.mxu0
      %v977 = vadd.f32 0.0, %v976
      %v978 = vpop.f32.mrf.mxu0
      %v979 = vadd.f32 0.0, %v978
      %980 = vmatprep.mubr.f32.mxu0 0.0
      %981 = vmatmul.mubr.f32.gmra.mxu0 %v902
      %v982 = vpop.f32.mrf.mxu0
      %v983 = vadd.f32 0.0, %v982
      %v984 = vpop.f32.mrf.mxu0
      %v985 = vadd.f32 0.0, %v984
      %986 = vdwg.mxu0
      %v987 = vadd.f32 %v874, %v977
      %v988 = vadd.f32 %v875, %v979
      %v989 = vadd.f32 %v876, %v983
      %v990 = vadd.f32 %v877, %v985
      %991 = vrot.lane.b32.xlu0 %v232, 112
      %v992 = vpop.permute.xlu0 %991
      %993 = vrot.lane.b32.xlu0 %v234, 112
      %v994 = vpop.permute.xlu0 %993
      %vm995 = vcmp.lt.s32.totalorder %v226, 112
      %v996 = vsel %vm995, %v992, %v994
      %v997 = vsel %vm995, %v994, %v992
      %v998 = vsel %vm885, 1, 0
      %v999 = vsel %vm886, 1, 0
      %vm1000 = vcmp.eq.s32.totalorder %v998, 1
      %vm1001 = vcmp.eq.s32.totalorder %v999, 1
      %v1002 = vsel %vm1000, %v996, 0.0
      %v1003 = vsel %vm1001, %v997, 0.0
      %s1004 = scalar_lea.vmem %s1, 112
      %v1005 = vld [vmem:[%s1004] sm:$0xff]
      %v1006 = vld [vmem:[%s1004 + $0x8] sm:$0xff]
      %v1008 = vsel %vm273, %v1005, 0
      %v1011 = vsel %vm273, %v1006, 0
      %v1014 = vsel %vm280, %v1002, 0
      %v1017 = vsel %vm280, %v1003, 0
      %1019 = vmatprep.subr.mxu0 0.0
      %1020 = vmatpush1.msra.mxu0 0.0
      %1021 = vmatprep.subr.mxu0 0.0
      %1022 = vmatpush1.msra.mxu0 0.0
      %1023 = vmatprep.subr.mxu0 0.0
      %1024 = vmatpush1.msra.mxu0 0.0
      %1025 = vmatprep.subr.mxu0 0.0
      %1026 = vmatpush1.msra.mxu0 0.0
      %1027 = vmatprep.subr.mxu0 0.0
      %1028 = vmatpush1.msra.mxu0 0.0
      %1029 = vmatprep.subr.mxu0 0.0
      %1030 = vmatpush1.msra.mxu0 0.0
      %1031 = vmatprep.subr.mxu0 0.0
      %1032 = vmatpush1.msra.mxu0 0.0
      %1033 = vmatprep.subr.mxu0 0.0
      %1034 = vmatpush1.msra.mxu0 0.0
      %1035 = vmatprep.subr.mxu0 0.0
      %1036 = vmatpush1.msra.mxu0 0.0
      %1037 = vmatprep.subr.mxu0 0.0
      %1038 = vmatpush1.msra.mxu0 0.0
      %1039 = vmatprep.subr.mxu0 0.0
      %1040 = vmatpush1.msra.mxu0 0.0
      %1041 = vmatprep.subr.mxu0 0.0
      %1042 = vmatpush1.msra.mxu0 0.0
      %1043 = vmatprep.subr.mxu0 0.0
      %1044 = vmatpush1.msra.mxu0 0.0
      %1045 = vmatprep.subr.mxu0 0.0
      %1046 = vmatpush1.msra.mxu0 0.0
      %1047 = vmatprep.subr.mxu0 0.0
      %1048 = vmatpush1.msra.mxu0 0.0
      %1049 = vmatprep.subr.mxu0 %v1017
      %1050 = vmatpush1.msra.mxu0 %v1014
      %1051 = vmatprep.subr.mxu0 0.0
      %1052 = vmatpush2.msra.mxu0 0.0
      %1053 = vmatprep.subr.mxu0 0.0
      %1054 = vmatpush2.msra.mxu0 0.0
      %1055 = vmatprep.subr.mxu0 0.0
      %1056 = vmatpush2.msra.mxu0 0.0
      %1057 = vmatprep.subr.mxu0 0.0
      %1058 = vmatpush2.msra.mxu0 0.0
      %1059 = vmatprep.subr.mxu0 0.0
      %1060 = vmatpush2.msra.mxu0 0.0
      %1061 = vmatprep.subr.mxu0 0.0
      %1062 = vmatpush2.msra.mxu0 0.0
      %1063 = vmatprep.subr.mxu0 0.0
      %1064 = vmatpush2.msra.mxu0 0.0
      %1065 = vmatprep.subr.mxu0 0.0
      %1066 = vmatpush2.msra.mxu0 0.0
      %1067 = vmatprep.subr.mxu0 0.0
      %1068 = vmatpush2.msra.mxu0 0.0
      %1069 = vmatprep.subr.mxu0 0.0
      %1070 = vmatpush2.msra.mxu0 0.0
      %1071 = vmatprep.subr.mxu0 0.0
      %1072 = vmatpush2.msra.mxu0 0.0
      %1073 = vmatprep.subr.mxu0 0.0
      %1074 = vmatpush2.msra.mxu0 0.0
      %1075 = vmatprep.subr.mxu0 0.0
      %1076 = vmatpush2.msra.mxu0 0.0
      %1077 = vmatprep.subr.mxu0 0.0
      %1078 = vmatpush2.msra.mxu0 0.0
      %1079 = vmatprep.subr.mxu0 0.0
      %1080 = vmatpush2.msra.mxu0 0.0
      %1081 = vmatprep.subr.mxu0 0.0
      %1082 = vmatpush2.msra.mxu0 0.0
      %1083 = vmatprep.mubr.f32.mxu0 0.0
      %1084 = vmatmul.mubr.f32.gmra.mxu0 %v1008
      %v1085 = vpop.f32.mrf.mxu0
      %v1086 = vadd.f32 0.0, %v1085
      %v1087 = vpop.f32.mrf.mxu0
      %v1088 = vadd.f32 0.0, %v1087
      %1089 = vmatprep.mubr.f32.mxu0 0.0
      %1090 = vmatmul.mubr.f32.gmra.mxu0 %v1011
      %v1091 = vpop.f32.mrf.mxu0
      %v1092 = vadd.f32 0.0, %v1091
      %v1093 = vpop.f32.mrf.mxu0
      %v1094 = vadd.f32 0.0, %v1093
      %1095 = vdwg.mxu0
      %v1096 = vadd.f32 %v987, %v1086
      %v1097 = vadd.f32 %v988, %v1088
      %v1098 = vadd.f32 %v989, %v1092
      %v1099 = vadd.f32 %v990, %v1094
      %1100 = vrot.lane.b32.xlu0 %v232, 111
      %v1101 = vpop.permute.xlu0 %1100
      %1102 = vrot.lane.b32.xlu0 %v234, 111
      %v1103 = vpop.permute.xlu0 %1102
      %vm1104 = vcmp.lt.s32.totalorder %v226, 111
      %v1105 = vsel %vm1104, %v1101, %v1103
      %v1106 = vsel %vm1104, %v1103, %v1101
      %vm1107 = vmand %vm885, %vm460
      %vm1108 = vmand %vm886, %vm461
      %v1109 = vsel %vm1107, 1, 0
      %v1110 = vsel %vm1108, 1, 0
      %vm1111 = vcmp.eq.s32.totalorder %v1109, 1
      %vm1112 = vcmp.eq.s32.totalorder %v1110, 1
      %v1113 = vsel %vm1111, %v1105, 0.0
      %v1114 = vsel %vm1112, %v1106, 0.0
      %s1115 = scalar_lea.vmem %s1, 128
      %v1116 = vld [vmem:[%s1115] sm:$0xff]
      %v1117 = vld [vmem:[%s1115 + $0x8] sm:$0xff]
      %v1119 = vsel %vm273, %v1116, 0
      %v1122 = vsel %vm273, %v1117, 0
      %v1125 = vsel %vm280, %v1113, 0
      %v1128 = vsel %vm280, %v1114, 0
      %1130 = vmatprep.subr.mxu0 0.0
      %1131 = vmatpush1.msra.mxu0 0.0
      %1132 = vmatprep.subr.mxu0 0.0
      %1133 = vmatpush1.msra.mxu0 0.0
      %1134 = vmatprep.subr.mxu0 0.0
      %1135 = vmatpush1.msra.mxu0 0.0
      %1136 = vmatprep.subr.mxu0 0.0
      %1137 = vmatpush1.msra.mxu0 0.0
      %1138 = vmatprep.subr.mxu0 0.0
      %1139 = vmatpush1.msra.mxu0 0.0
      %1140 = vmatprep.subr.mxu0 0.0
      %1141 = vmatpush1.msra.mxu0 0.0
      %1142 = vmatprep.subr.mxu0 0.0
      %1143 = vmatpush1.msra.mxu0 0.0
      %1144 = vmatprep.subr.mxu0 0.0
      %1145 = vmatpush1.msra.mxu0 0.0
      %1146 = vmatprep.subr.mxu0 0.0
      %1147 = vmatpush1.msra.mxu0 0.0
      %1148 = vmatprep.subr.mxu0 0.0
      %1149 = vmatpush1.msra.mxu0 0.0
      %1150 = vmatprep.subr.mxu0 0.0
      %1151 = vmatpush1.msra.mxu0 0.0
      %1152 = vmatprep.subr.mxu0 0.0
      %1153 = vmatpush1.msra.mxu0 0.0
      %1154 = vmatprep.subr.mxu0 0.0
      %1155 = vmatpush1.msra.mxu0 0.0
      %1156 = vmatprep.subr.mxu0 0.0
      %1157 = vmatpush1.msra.mxu0 0.0
      %1158 = vmatprep.subr.mxu0 0.0
      %1159 = vmatpush1.msra.mxu0 0.0
      %1160 = vmatprep.subr.mxu0 %v1128
      %1161 = vmatpush1.msra.mxu0 %v1125
      %1162 = vmatprep.subr.mxu0 0.0
      %1163 = vmatpush2.msra.mxu0 0.0
      %1164 = vmatprep.subr.mxu0 0.0
      %1165 = vmatpush2.msra.mxu0 0.0
      %1166 = vmatprep.subr.mxu0 0.0
      %1167 = vmatpush2.msra.mxu0 0.0
      %1168 = vmatprep.subr.mxu0 0.0
      %1169 = vmatpush2.msra.mxu0 0.0
      %1170 = vmatprep.subr.mxu0 0.0
      %1171 = vmatpush2.msra.mxu0 0.0
      %1172 = vmatprep.subr.mxu0 0.0
      %1173 = vmatpush2.msra.mxu0 0.0
      %1174 = vmatprep.subr.mxu0 0.0
      %1175 = vmatpush2.msra.mxu0 0.0
      %1176 = vmatprep.subr.mxu0 0.0
      %1177 = vmatpush2.msra.mxu0 0.0
      %1178 = vmatprep.subr.mxu0 0.0
      %1179 = vmatpush2.msra.mxu0 0.0
      %1180 = vmatprep.subr.mxu0 0.0
      %1181 = vmatpush2.msra.mxu0 0.0
      %1182 = vmatprep.subr.mxu0 0.0
      %1183 = vmatpush2.msra.mxu0 0.0
      %1184 = vmatprep.subr.mxu0 0.0
      %1185 = vmatpush2.msra.mxu0 0.0
      %1186 = vmatprep.subr.mxu0 0.0
      %1187 = vmatpush2.msra.mxu0 0.0
      %1188 = vmatprep.subr.mxu0 0.0
      %1189 = vmatpush2.msra.mxu0 0.0
      %1190 = vmatprep.subr.mxu0 0.0
      %1191 = vmatpush2.msra.mxu0 0.0
      %1192 = vmatprep.subr.mxu0 0.0
      %1193 = vmatpush2.msra.mxu0 0.0
      %1194 = vmatprep.mubr.f32.mxu0 0.0
      %1195 = vmatmul.mubr.f32.gmra.mxu0 %v1119
      %v1196 = vpop.f32.mrf.mxu0
      %v1197 = vadd.f32 0.0, %v1196
      %v1198 = vpop.f32.mrf.mxu0
      %v1199 = vadd.f32 0.0, %v1198
      %1200 = vmatprep.mubr.f32.mxu0 0.0
      %1201 = vmatmul.mubr.f32.gmra.mxu0 %v1122
      %v1202 = vpop.f32.mrf.mxu0
      %v1203 = vadd.f32 0.0, %v1202
      %v1204 = vpop.f32.mrf.mxu0
      %v1205 = vadd.f32 0.0, %v1204
      %1206 = vdwg.mxu0
      %v1207 = vadd.f32 %v1096, %v1197
      %v1208 = vadd.f32 %v1097, %v1199
      %v1209 = vadd.f32 %v1098, %v1203
      %v1210 = vadd.f32 %v1099, %v1205
      %v1211 = vadd.f32 %v1207, %v1208
      %1212 = vadd.xlane.f32.xlu0 %v1211
      %v1213 = vpop.xlane.xlu0 %1212
      %v1214 = vadd.f32 %v1209, %v1210
      %1215 = vadd.xlane.f32.xlu0 %v1214
      %v1216 = vpop.xlane.xlu0 %1215
      %v1217 = vrcp.pop 256.0
      %v1218 = vmul.f32 %v1213, %v1217
      %v1219 = vmul.f32 %v1216, %v1217
      %v1220 = vsub.f32 %v1207, %v1218
      %v1221 = vsub.f32 %v1208, %v1218
      %v1222 = vsub.f32 %v1209, %v1219
      %v1223 = vsub.f32 %v1210, %v1219
      %v1224 = vmul.f32 %v1220, %v1220
      %v1225 = vmul.f32 %v1221, %v1221
      %v1226 = vmul.f32 %v1222, %v1222
      %v1227 = vmul.f32 %v1223, %v1223
      %v1228 = vadd.f32 %v1224, %v1225
      %1229 = vadd.xlane.f32.xlu0 %v1228
      %v1230 = vpop.xlane.xlu0 %1229
      %v1231 = vadd.f32 %v1226, %v1227
      %1232 = vadd.xlane.f32.xlu0 %v1231
      %v1233 = vpop.xlane.xlu0 %1232
      %v1234 = vmul.f32 %v1230, %v1217
      %v1235 = vmul.f32 %v1233, %v1217
      %v1236 = vadd.f32 %v1234, 1e-05
      %v1237 = vadd.f32 %v1235, 1e-05
      %v1238 = vrsqrt.pop %v1236
      %v1239 = vrsqrt.pop %v1237
      %v1240 = vmul.f32 %v1220, %v1238
      %v1241 = vmul.f32 %v1221, %v1238
      %v1242 = vmul.f32 %v1222, %v1239
      %v1243 = vmul.f32 %v1223, %v1239
      %v1244 = vmax.f32 %v1240, 0.0
      %v1245 = vmax.f32 %v1241, 0.0
      %v1246 = vmax.f32 %v1242, 0.0
      %v1247 = vmax.f32 %v1243, 0.0
      %1248 = vrot.lane.b32.xlu0 %v1244, 17
      %v1249 = vpop.permute.xlu0 %1248
      %1250 = vrot.lane.b32.xlu0 %v1246, 17
      %v1251 = vpop.permute.xlu0 %1250
      %1252 = vrot.lane.b32.xlu0 %v1245, 17
      %v1253 = vpop.permute.xlu0 %1252
      %1254 = vrot.lane.b32.xlu0 %v1247, 17
      %v1255 = vpop.permute.xlu0 %1254
      %v1256 = vsel %vm240, %v1249, %v1253
      %v1257 = vsel %vm240, %v1251, %v1255
      %v1258 = vsel %vm240, %v1253, %v1249
      %v1259 = vsel %vm240, %v1255, %v1251
      %v1260 = vsel %vm251, %v1258, 0.0
      %v1261 = vsel %vm252, %v1256, 0.0
      %v1262 = vsel %vm251, %v1259, 0.0
      %v1263 = vsel %vm252, %v1257, 0.0
      %v1264 = vld [vmem:[%s2] sm:$0xff]
      %v1265 = vld [vmem:[%s2 + $0x8] sm:$0xff]
      %v1266 = vld [vmem:[%s2 + $0x10] sm:$0xff]
      %v1267 = vld [vmem:[%s2 + $0x18] sm:$0xff]
      %1268 = vrot.lane.b32.xlu0 %v1244, 16
      %v1269 = vpop.permute.xlu0 %1268
      %1270 = vrot.lane.b32.xlu0 %v1246, 16
      %v1271 = vpop.permute.xlu0 %1270
      %1272 = vrot.lane.b32.xlu0 %v1245, 16
      %v1273 = vpop.permute.xlu0 %1272
      %1274 = vrot.lane.b32.xlu0 %v1247, 16
      %v1275 = vpop.permute.xlu0 %1274
      %v1276 = vsel %vm261, %v1269, %v1273
      %v1277 = vsel %vm261, %v1271, %v1275
      %v1278 = vsel %vm261, %v1273, %v1269
      %v1279 = vsel %vm261, %v1275, %v1271
      %v1280 = vsel %vm266, %v1278, 0.0
      %v1281 = vsel %vm267, %v1276, 0.0
      %v1282 = vsel %vm266, %v1279, 0.0
      %v1283 = vsel %vm267, %v1277, 0.0
      %s1284 = scalar_lea.vmem %s2, 32
      %v1285 = vld [vmem:[%s1284] sm:$0xff]
      %v1286 = vld [vmem:[%s1284 + $0x8] sm:$0xff]
      %v1287 = vld [vmem:[%s1284 + $0x10] sm:$0xff]
      %v1288 = vld [vmem:[%s1284 + $0x18] sm:$0xff]
      %vm1289 = vcmask 130048
      %v1291 = vsel %vm1289, %v1285, 0
      %v1294 = vsel %vm1289, %v1286, 0
      %v1297 = vsel %vm1289, %v1287, 0
      %v1300 = vsel %vm1289, %v1288, 0
      %1302 = vmatprep.subr.mxu0 0.0
      %1303 = vmatpush1.msra.mxu0 0.0
      %1304 = vmatprep.subr.mxu0 0.0
      %1305 = vmatpush1.msra.mxu0 0.0
      %1306 = vmatprep.subr.mxu0 0.0
      %1307 = vmatpush1.msra.mxu0 0.0
      %1308 = vmatprep.subr.mxu0 0.0
      %1309 = vmatpush1.msra.mxu0 0.0
      %1310 = vmatprep.subr.mxu0 0.0
      %1311 = vmatpush1.msra.mxu0 0.0
      %1312 = vmatprep.subr.mxu0 0.0
      %1313 = vmatpush1.msra.mxu0 0.0
      %1314 = vmatprep.subr.mxu0 0.0
      %1315 = vmatpush1.msra.mxu0 0.0
      %1316 = vmatprep.subr.mxu0 0.0
      %1317 = vmatpush1.msra.mxu0 0.0
      %1318 = vmatprep.subr.mxu0 0.0
      %1319 = vmatpush1.msra.mxu0 0.0
      %1320 = vmatprep.subr.mxu0 0.0
      %1321 = vmatpush1.msra.mxu0 0.0
      %1322 = vmatprep.subr.mxu0 0.0
      %1323 = vmatpush1.msra.mxu0 0.0
      %1324 = vmatprep.subr.mxu0 0.0
      %1325 = vmatpush1.msra.mxu0 0.0
      %1326 = vmatprep.subr.mxu0 0.0
      %1327 = vmatpush1.msra.mxu0 0.0
      %1328 = vmatprep.subr.mxu0 0.0
      %1329 = vmatpush1.msra.mxu0 0.0
      %1330 = vmatprep.subr.mxu0 %v1283
      %1331 = vmatpush1.msra.mxu0 %v1282
      %1332 = vmatprep.subr.mxu0 %v1281
      %1333 = vmatpush1.msra.mxu0 %v1280
      %1334 = vmatprep.subr.mxu0 0.0
      %1335 = vmatpush2.msra.mxu0 0.0
      %1336 = vmatprep.subr.mxu0 0.0
      %1337 = vmatpush2.msra.mxu0 0.0
      %1338 = vmatprep.subr.mxu0 0.0
      %1339 = vmatpush2.msra.mxu0 0.0
      %1340 = vmatprep.subr.mxu0 0.0
      %1341 = vmatpush2.msra.mxu0 0.0
      %1342 = vmatprep.subr.mxu0 0.0
      %1343 = vmatpush2.msra.mxu0 0.0
      %1344 = vmatprep.subr.mxu0 0.0
      %1345 = vmatpush2.msra.mxu0 0.0
      %1346 = vmatprep.subr.mxu0 0.0
      %1347 = vmatpush2.msra.mxu0 0.0
      %1348 = vmatprep.subr.mxu0 0.0
      %1349 = vmatpush2.msra.mxu0 0.0
      %1350 = vmatprep.subr.mxu0 0.0
      %1351 = vmatpush2.msra.mxu0 0.0
      %1352 = vmatprep.subr.mxu0 0.0
      %1353 = vmatpush2.msra.mxu0 0.0
      %1354 = vmatprep.subr.mxu0 0.0
      %1355 = vmatpush2.msra.mxu0 0.0
      %1356 = vmatprep.subr.mxu0 0.0
      %1357 = vmatpush2.msra.mxu0 0.0
      %1358 = vmatprep.subr.mxu0 0.0
      %1359 = vmatpush2.msra.mxu0 0.0
      %1360 = vmatprep.subr.mxu0 0.0
      %1361 = vmatpush2.msra.mxu0 0.0
      %1362 = vmatprep.subr.mxu0 0.0
      %1363 = vmatpush2.msra.mxu0 0.0
      %1364 = vmatprep.subr.mxu0 0.0
      %1365 = vmatpush2.msra.mxu0 0.0
      %1366 = vmatprep.mubr.f32.mxu0 0.0
      %1367 = vmatmul.mubr.f32.gmra.mxu0 %v1291
      %v1368 = vpop.f32.mrf.mxu0
      %v1369 = vadd.f32 0.0, %v1368
      %v1370 = vpop.f32.mrf.mxu0
      %v1371 = vadd.f32 0.0, %v1370
      %1372 = vmatprep.mubr.f32.mxu0 0.0
      %1373 = vmatmul.mubr.f32.gmra.mxu0 %v1294
      %v1374 = vpop.f32.mrf.mxu0
      %v1375 = vadd.f32 0.0, %v1374
      %v1376 = vpop.f32.mrf.mxu0
      %v1377 = vadd.f32 0.0, %v1376
      %1378 = vmatprep.mubr.f32.mxu0 0.0
      %1379 = vmatmul.mubr.f32.gmra.mxu0 %v1297
      %v1380 = vpop.f32.mrf.mxu0
      %v1381 = vadd.f32 0.0, %v1380
      %v1382 = vpop.f32.mrf.mxu0
      %v1383 = vadd.f32 0.0, %v1382
      %1384 = vmatprep.mubr.f32.mxu0 0.0
      %1385 = vmatmul.mubr.f32.gmra.mxu0 %v1300
      %v1386 = vpop.f32.mrf.mxu0
      %v1387 = vadd.f32 0.0, %v1386
      %v1388 = vpop.f32.mrf.mxu0
      %v1389 = vadd.f32 0.0, %v1388
      %1390 = vdwg.mxu0
      %v1392 = vsel %vm1289, %v1264, 0
      %v1395 = vsel %vm1289, %v1265, 0
      %v1398 = vsel %vm1289, %v1266, 0
      %v1401 = vsel %vm1289, %v1267, 0
      %1403 = vmatprep.subr.mxu0 0.0
      %1404 = vmatpush1.msra.mxu0 0.0
      %1405 = vmatprep.subr.mxu0 0.0
      %1406 = vmatpush1.msra.mxu0 0.0
      %1407 = vmatprep.subr.mxu0 0.0
      %1408 = vmatpush1.msra.mxu0 0.0
      %1409 = vmatprep.subr.mxu0 0.0
      %1410 = vmatpush1.msra.mxu0 0.0
      %1411 = vmatprep.subr.mxu0 0.0
      %1412 = vmatpush1.msra.mxu0 0.0
      %1413 = vmatprep.subr.mxu0 0.0
      %1414 = vmatpush1.msra.mxu0 0.0
      %1415 = vmatprep.subr.mxu0 0.0
      %1416 = vmatpush1.msra.mxu0 0.0
      %1417 = vmatprep.subr.mxu0 0.0
      %1418 = vmatpush1.msra.mxu0 0.0
      %1419 = vmatprep.subr.mxu0 0.0
      %1420 = vmatpush1.msra.mxu0 0.0
      %1421 = vmatprep.subr.mxu0 0.0
      %1422 = vmatpush1.msra.mxu0 0.0
      %1423 = vmatprep.subr.mxu0 0.0
      %1424 = vmatpush1.msra.mxu0 0.0
      %1425 = vmatprep.subr.mxu0 0.0
      %1426 = vmatpush1.msra.mxu0 0.0
      %1427 = vmatprep.subr.mxu0 0.0
      %1428 = vmatpush1.msra.mxu0 0.0
      %1429 = vmatprep.subr.mxu0 0.0
      %1430 = vmatpush1.msra.mxu0 0.0
      %1431 = vmatprep.subr.mxu0 %v1263
      %1432 = vmatpush1.msra.mxu0 %v1262
      %1433 = vmatprep.subr.mxu0 %v1261
      %1434 = vmatpush1.msra.mxu0 %v1260
      %1435 = vmatprep.subr.mxu0 0.0
      %1436 = vmatpush2.msra.mxu0 0.0
      %1437 = vmatprep.subr.mxu0 0.0
      %1438 = vmatpush2.msra.mxu0 0.0
      %1439 = vmatprep.subr.mxu0 0.0
      %1440 = vmatpush2.msra.mxu0 0.0
      %1441 = vmatprep.subr.mxu0 0.0
      %1442 = vmatpush2.msra.mxu0 0.0
      %1443 = vmatprep.subr.mxu0 0.0
      %1444 = vmatpush2.msra.mxu0 0.0
      %1445 = vmatprep.subr.mxu0 0.0
      %1446 = vmatpush2.msra.mxu0 0.0
      %1447 = vmatprep.subr.mxu0 0.0
      %1448 = vmatpush2.msra.mxu0 0.0
      %1449 = vmatprep.subr.mxu0 0.0
      %1450 = vmatpush2.msra.mxu0 0.0
      %1451 = vmatprep.subr.mxu0 0.0
      %1452 = vmatpush2.msra.mxu0 0.0
      %1453 = vmatprep.subr.mxu0 0.0
      %1454 = vmatpush2.msra.mxu0 0.0
      %1455 = vmatprep.subr.mxu0 0.0
      %1456 = vmatpush2.msra.mxu0 0.0
      %1457 = vmatprep.subr.mxu0 0.0
      %1458 = vmatpush2.msra.mxu0 0.0
      %1459 = vmatprep.subr.mxu0 0.0
      %1460 = vmatpush2.msra.mxu0 0.0
      %1461 = vmatprep.subr.mxu0 0.0
      %1462 = vmatpush2.msra.mxu0 0.0
      %1463 = vmatprep.subr.mxu0 0.0
      %1464 = vmatpush2.msra.mxu0 0.0
      %1465 = vmatprep.subr.mxu0 0.0
      %1466 = vmatpush2.msra.mxu0 0.0
      %1467 = vmatprep.mubr.f32.mxu0 0.0
      %1468 = vmatmul.mubr.f32.gmra.mxu0 %v1392
      %v1469 = vpop.f32.mrf.mxu0
      %v1470 = vadd.f32 %v1369, %v1469
      %v1471 = vpop.f32.mrf.mxu0
      %v1472 = vadd.f32 %v1371, %v1471
      %1473 = vmatprep.mubr.f32.mxu0 0.0
      %1474 = vmatmul.mubr.f32.gmra.mxu0 %v1395
      %v1475 = vpop.f32.mrf.mxu0
      %v1476 = vadd.f32 %v1375, %v1475
      %v1477 = vpop.f32.mrf.mxu0
      %v1478 = vadd.f32 %v1377, %v1477
      %1479 = vmatprep.mubr.f32.mxu0 0.0
      %1480 = vmatmul.mubr.f32.gmra.mxu0 %v1398
      %v1481 = vpop.f32.mrf.mxu0
      %v1482 = vadd.f32 %v1381, %v1481
      %v1483 = vpop.f32.mrf.mxu0
      %v1484 = vadd.f32 %v1383, %v1483
      %1485 = vmatprep.mubr.f32.mxu0 0.0
      %1486 = vmatmul.mubr.f32.gmra.mxu0 %v1401
      %v1487 = vpop.f32.mrf.mxu0
      %v1488 = vadd.f32 %v1387, %v1487
      %v1489 = vpop.f32.mrf.mxu0
      %v1490 = vadd.f32 %v1389, %v1489
      %1491 = vdwg.mxu0
      %1492 = vrot.lane.b32.xlu0 %v1244, 15
      %v1493 = vpop.permute.xlu0 %1492
      %1494 = vrot.lane.b32.xlu0 %v1246, 15
      %v1495 = vpop.permute.xlu0 %1494
      %1496 = vrot.lane.b32.xlu0 %v1245, 15
      %v1497 = vpop.permute.xlu0 %1496
      %1498 = vrot.lane.b32.xlu0 %v1247, 15
      %v1499 = vpop.permute.xlu0 %1498
      %v1500 = vsel %vm457, %v1493, %v1497
      %v1501 = vsel %vm457, %v1495, %v1499
      %v1502 = vsel %vm457, %v1497, %v1493
      %v1503 = vsel %vm457, %v1499, %v1495
      %v1504 = vsel %vm466, %v1502, 0.0
      %v1505 = vsel %vm467, %v1500, 0.0
      %v1506 = vsel %vm466, %v1503, 0.0
      %v1507 = vsel %vm467, %v1501, 0.0
      %s1508 = scalar_lea.vmem %s2, 64
      %v1509 = vld [vmem:[%s1508] sm:$0xff]
      %v1510 = vld [vmem:[%s1508 + $0x8] sm:$0xff]
      %v1511 = vld [vmem:[%s1508 + $0x10] sm:$0xff]
      %v1512 = vld [vmem:[%s1508 + $0x18] sm:$0xff]
      %v1514 = vsel %vm1289, %v1509, 0
      %v1517 = vsel %vm1289, %v1510, 0
      %v1520 = vsel %vm1289, %v1511, 0
      %v1523 = vsel %vm1289, %v1512, 0
      %1525 = vmatprep.subr.mxu0 0.0
      %1526 = vmatpush1.msra.mxu0 0.0
      %1527 = vmatprep.subr.mxu0 0.0
      %1528 = vmatpush1.msra.mxu0 0.0
      %1529 = vmatprep.subr.mxu0 0.0
      %1530 = vmatpush1.msra.mxu0 0.0
      %1531 = vmatprep.subr.mxu0 0.0
      %1532 = vmatpush1.msra.mxu0 0.0
      %1533 = vmatprep.subr.mxu0 0.0
      %1534 = vmatpush1.msra.mxu0 0.0
      %1535 = vmatprep.subr.mxu0 0.0
      %1536 = vmatpush1.msra.mxu0 0.0
      %1537 = vmatprep.subr.mxu0 0.0
      %1538 = vmatpush1.msra.mxu0 0.0
      %1539 = vmatprep.subr.mxu0 0.0
      %1540 = vmatpush1.msra.mxu0 0.0
      %1541 = vmatprep.subr.mxu0 0.0
      %1542 = vmatpush1.msra.mxu0 0.0
      %1543 = vmatprep.subr.mxu0 0.0
      %1544 = vmatpush1.msra.mxu0 0.0
      %1545 = vmatprep.subr.mxu0 0.0
      %1546 = vmatpush1.msra.mxu0 0.0
      %1547 = vmatprep.subr.mxu0 0.0
      %1548 = vmatpush1.msra.mxu0 0.0
      %1549 = vmatprep.subr.mxu0 0.0
      %1550 = vmatpush1.msra.mxu0 0.0
      %1551 = vmatprep.subr.mxu0 0.0
      %1552 = vmatpush1.msra.mxu0 0.0
      %1553 = vmatprep.subr.mxu0 %v1507
      %1554 = vmatpush1.msra.mxu0 %v1506
      %1555 = vmatprep.subr.mxu0 %v1505
      %1556 = vmatpush1.msra.mxu0 %v1504
      %1557 = vmatprep.subr.mxu0 0.0
      %1558 = vmatpush2.msra.mxu0 0.0
      %1559 = vmatprep.subr.mxu0 0.0
      %1560 = vmatpush2.msra.mxu0 0.0
      %1561 = vmatprep.subr.mxu0 0.0
      %1562 = vmatpush2.msra.mxu0 0.0
      %1563 = vmatprep.subr.mxu0 0.0
      %1564 = vmatpush2.msra.mxu0 0.0
      %1565 = vmatprep.subr.mxu0 0.0
      %1566 = vmatpush2.msra.mxu0 0.0
      %1567 = vmatprep.subr.mxu0 0.0
      %1568 = vmatpush2.msra.mxu0 0.0
      %1569 = vmatprep.subr.mxu0 0.0
      %1570 = vmatpush2.msra.mxu0 0.0
      %1571 = vmatprep.subr.mxu0 0.0
      %1572 = vmatpush2.msra.mxu0 0.0
      %1573 = vmatprep.subr.mxu0 0.0
      %1574 = vmatpush2.msra.mxu0 0.0
      %1575 = vmatprep.subr.mxu0 0.0
      %1576 = vmatpush2.msra.mxu0 0.0
      %1577 = vmatprep.subr.mxu0 0.0
      %1578 = vmatpush2.msra.mxu0 0.0
      %1579 = vmatprep.subr.mxu0 0.0
      %1580 = vmatpush2.msra.mxu0 0.0
      %1581 = vmatprep.subr.mxu0 0.0
      %1582 = vmatpush2.msra.mxu0 0.0
      %1583 = vmatprep.subr.mxu0 0.0
      %1584 = vmatpush2.msra.mxu0 0.0
      %1585 = vmatprep.subr.mxu0 0.0
      %1586 = vmatpush2.msra.mxu0 0.0
      %1587 = vmatprep.subr.mxu0 0.0
      %1588 = vmatpush2.msra.mxu0 0.0
      %1589 = vmatprep.mubr.f32.mxu0 0.0
      %1590 = vmatmul.mubr.f32.gmra.mxu0 %v1514
      %v1591 = vpop.f32.mrf.mxu0
      %v1592 = vadd.f32 0.0, %v1591
      %v1593 = vpop.f32.mrf.mxu0
      %v1594 = vadd.f32 0.0, %v1593
      %1595 = vmatprep.mubr.f32.mxu0 0.0
      %1596 = vmatmul.mubr.f32.gmra.mxu0 %v1517
      %v1597 = vpop.f32.mrf.mxu0
      %v1598 = vadd.f32 0.0, %v1597
      %v1599 = vpop.f32.mrf.mxu0
      %v1600 = vadd.f32 0.0, %v1599
      %1601 = vmatprep.mubr.f32.mxu0 0.0
      %1602 = vmatmul.mubr.f32.gmra.mxu0 %v1520
      %v1603 = vpop.f32.mrf.mxu0
      %v1604 = vadd.f32 0.0, %v1603
      %v1605 = vpop.f32.mrf.mxu0
      %v1606 = vadd.f32 0.0, %v1605
      %1607 = vmatprep.mubr.f32.mxu0 0.0
      %1608 = vmatmul.mubr.f32.gmra.mxu0 %v1523
      %v1609 = vpop.f32.mrf.mxu0
      %v1610 = vadd.f32 0.0, %v1609
      %v1611 = vpop.f32.mrf.mxu0
      %v1612 = vadd.f32 0.0, %v1611
      %1613 = vdwg.mxu0
      %v1614 = vadd.f32 %v1470, %v1592
      %v1615 = vadd.f32 %v1472, %v1594
      %v1616 = vadd.f32 %v1476, %v1598
      %v1617 = vadd.f32 %v1478, %v1600
      %v1618 = vadd.f32 %v1482, %v1604
      %v1619 = vadd.f32 %v1484, %v1606
      %v1620 = vadd.f32 %v1488, %v1610
      %v1621 = vadd.f32 %v1490, %v1612
      %1622 = vrot.lane.b32.xlu0 %v1244, 1
      %v1623 = vpop.permute.xlu0 %1622
      %1624 = vrot.lane.b32.xlu0 %v1246, 1
      %v1625 = vpop.permute.xlu0 %1624
      %1626 = vrot.lane.b32.xlu0 %v1245, 1
      %v1627 = vpop.permute.xlu0 %1626
      %1628 = vrot.lane.b32.xlu0 %v1247, 1
      %v1629 = vpop.permute.xlu0 %1628
      %v1630 = vsel %vm570, %v1623, %v1627
      %v1631 = vsel %vm570, %v1625, %v1629
      %v1632 = vsel %vm570, %v1627, %v1623
      %v1633 = vsel %vm570, %v1629, %v1625
      %v1634 = vsel %vm575, %v1632, 0.0
      %v1635 = vsel %vm576, %v1630, 0.0
      %v1636 = vsel %vm575, %v1633, 0.0
      %v1637 = vsel %vm576, %v1631, 0.0
      %s1638 = scalar_lea.vmem %s2, 96
      %v1639 = vld [vmem:[%s1638] sm:$0xff]
      %v1640 = vld [vmem:[%s1638 + $0x8] sm:$0xff]
      %v1641 = vld [vmem:[%s1638 + $0x10] sm:$0xff]
      %v1642 = vld [vmem:[%s1638 + $0x18] sm:$0xff]
      %v1644 = vsel %vm1289, %v1639, 0
      %v1647 = vsel %vm1289, %v1640, 0
      %v1650 = vsel %vm1289, %v1641, 0
      %v1653 = vsel %vm1289, %v1642, 0
      %1655 = vmatprep.subr.mxu0 0.0
      %1656 = vmatpush1.msra.mxu0 0.0
      %1657 = vmatprep.subr.mxu0 0.0
      %1658 = vmatpush1.msra.mxu0 0.0
      %1659 = vmatprep.subr.mxu0 0.0
      %1660 = vmatpush1.msra.mxu0 0.0
      %1661 = vmatprep.subr.mxu0 0.0
      %1662 = vmatpush1.msra.mxu0 0.0
      %1663 = vmatprep.subr.mxu0 0.0
      %1664 = vmatpush1.msra.mxu0 0.0
      %1665 = vmatprep.subr.mxu0 0.0
      %1666 = vmatpush1.msra.mxu0 0.0
      %1667 = vmatprep.subr.mxu0 0.0
      %1668 = vmatpush1.msra.mxu0 0.0
      %1669 = vmatprep.subr.mxu0 0.0
      %1670 = vmatpush1.msra.mxu0 0.0
      %1671 = vmatprep.subr.mxu0 0.0
      %1672 = vmatpush1.msra.mxu0 0.0
      %1673 = vmatprep.subr.mxu0 0.0
      %1674 = vmatpush1.msra.mxu0 0.0
      %1675 = vmatprep.subr.mxu0 0.0
      %1676 = vmatpush1.msra.mxu0 0.0
      %1677 = vmatprep.subr.mxu0 0.0
      %1678 = vmatpush1.msra.mxu0 0.0
      %1679 = vmatprep.subr.mxu0 0.0
      %1680 = vmatpush1.msra.mxu0 0.0
      %1681 = vmatprep.subr.mxu0 0.0
      %1682 = vmatpush1.msra.mxu0 0.0
      %1683 = vmatprep.subr.mxu0 %v1637
      %1684 = vmatpush1.msra.mxu0 %v1636
      %1685 = vmatprep.subr.mxu0 %v1635
      %1686 = vmatpush1.msra.mxu0 %v1634
      %1687 = vmatprep.subr.mxu0 0.0
      %1688 = vmatpush2.msra.mxu0 0.0
      %1689 = vmatprep.subr.mxu0 0.0
      %1690 = vmatpush2.msra.mxu0 0.0
      %1691 = vmatprep.subr.mxu0 0.0
      %1692 = vmatpush2.msra.mxu0 0.0
      %1693 = vmatprep.subr.mxu0 0.0
      %1694 = vmatpush2.msra.mxu0 0.0
      %1695 = vmatprep.subr.mxu0 0.0
      %1696 = vmatpush2.msra.mxu0 0.0
      %1697 = vmatprep.subr.mxu0 0.0
      %1698 = vmatpush2.msra.mxu0 0.0
      %1699 = vmatprep.subr.mxu0 0.0
      %1700 = vmatpush2.msra.mxu0 0.0
      %1701 = vmatprep.subr.mxu0 0.0
      %1702 = vmatpush2.msra.mxu0 0.0
      %1703 = vmatprep.subr.mxu0 0.0
      %1704 = vmatpush2.msra.mxu0 0.0
      %1705 = vmatprep.subr.mxu0 0.0
      %1706 = vmatpush2.msra.mxu0 0.0
      %1707 = vmatprep.subr.mxu0 0.0
      %1708 = vmatpush2.msra.mxu0 0.0
      %1709 = vmatprep.subr.mxu0 0.0
      %1710 = vmatpush2.msra.mxu0 0.0
      %1711 = vmatprep.subr.mxu0 0.0
      %1712 = vmatpush2.msra.mxu0 0.0
      %1713 = vmatprep.subr.mxu0 0.0
      %1714 = vmatpush2.msra.mxu0 0.0
      %1715 = vmatprep.subr.mxu0 0.0
      %1716 = vmatpush2.msra.mxu0 0.0
      %1717 = vmatprep.subr.mxu0 0.0
      %1718 = vmatpush2.msra.mxu0 0.0
      %1719 = vmatprep.mubr.f32.mxu0 0.0
      %1720 = vmatmul.mubr.f32.gmra.mxu0 %v1644
      %v1721 = vpop.f32.mrf.mxu0
      %v1722 = vadd.f32 0.0, %v1721
      %v1723 = vpop.f32.mrf.mxu0
      %v1724 = vadd.f32 0.0, %v1723
      %1725 = vmatprep.mubr.f32.mxu0 0.0
      %1726 = vmatmul.mubr.f32.gmra.mxu0 %v1647
      %v1727 = vpop.f32.mrf.mxu0
      %v1728 = vadd.f32 0.0, %v1727
      %v1729 = vpop.f32.mrf.mxu0
      %v1730 = vadd.f32 0.0, %v1729
      %1731 = vmatprep.mubr.f32.mxu0 0.0
      %1732 = vmatmul.mubr.f32.gmra.mxu0 %v1650
      %v1733 = vpop.f32.mrf.mxu0
      %v1734 = vadd.f32 0.0, %v1733
      %v1735 = vpop.f32.mrf.mxu0
      %v1736 = vadd.f32 0.0, %v1735
      %1737 = vmatprep.mubr.f32.mxu0 0.0
      %1738 = vmatmul.mubr.f32.gmra.mxu0 %v1653
      %v1739 = vpop.f32.mrf.mxu0
      %v1740 = vadd.f32 0.0, %v1739
      %v1741 = vpop.f32.mrf.mxu0
      %v1742 = vadd.f32 0.0, %v1741
      %1743 = vdwg.mxu0
      %v1744 = vadd.f32 %v1614, %v1722
      %v1745 = vadd.f32 %v1615, %v1724
      %v1746 = vadd.f32 %v1616, %v1728
      %v1747 = vadd.f32 %v1617, %v1730
      %v1748 = vadd.f32 %v1618, %v1734
      %v1749 = vadd.f32 %v1619, %v1736
      %v1750 = vadd.f32 %v1620, %v1740
      %v1751 = vadd.f32 %v1621, %v1742
      %s1752 = scalar_lea.vmem %s2, 128
      %v1753 = vld [vmem:[%s1752] sm:$0xff]
      %v1754 = vld [vmem:[%s1752 + $0x8] sm:$0xff]
      %v1755 = vld [vmem:[%s1752 + $0x10] sm:$0xff]
      %v1756 = vld [vmem:[%s1752 + $0x18] sm:$0xff]
      %v1758 = vsel %vm1289, %v1753, 0
      %v1761 = vsel %vm1289, %v1754, 0
      %v1764 = vsel %vm1289, %v1755, 0
      %v1767 = vsel %vm1289, %v1756, 0
      %1769 = vmatprep.subr.mxu0 0.0
      %1770 = vmatpush1.msra.mxu0 0.0
      %1771 = vmatprep.subr.mxu0 0.0
      %1772 = vmatpush1.msra.mxu0 0.0
      %1773 = vmatprep.subr.mxu0 0.0
      %1774 = vmatpush1.msra.mxu0 0.0
      %1775 = vmatprep.subr.mxu0 0.0
      %1776 = vmatpush1.msra.mxu0 0.0
      %1777 = vmatprep.subr.mxu0 0.0
      %1778 = vmatpush1.msra.mxu0 0.0
      %1779 = vmatprep.subr.mxu0 0.0
      %1780 = vmatpush1.msra.mxu0 0.0
      %1781 = vmatprep.subr.mxu0 0.0
      %1782 = vmatpush1.msra.mxu0 0.0
      %1783 = vmatprep.subr.mxu0 0.0
      %1784 = vmatpush1.msra.mxu0 0.0
      %1785 = vmatprep.subr.mxu0 0.0
      %1786 = vmatpush1.msra.mxu0 0.0
      %1787 = vmatprep.subr.mxu0 0.0
      %1788 = vmatpush1.msra.mxu0 0.0
      %1789 = vmatprep.subr.mxu0 0.0
      %1790 = vmatpush1.msra.mxu0 0.0
      %1791 = vmatprep.subr.mxu0 0.0
      %1792 = vmatpush1.msra.mxu0 0.0
      %1793 = vmatprep.subr.mxu0 0.0
      %1794 = vmatpush1.msra.mxu0 0.0
      %1795 = vmatprep.subr.mxu0 0.0
      %1796 = vmatpush1.msra.mxu0 0.0
      %1797 = vmatprep.subr.mxu0 %v1247
      %1798 = vmatpush1.msra.mxu0 %v1246
      %1799 = vmatprep.subr.mxu0 %v1245
      %1800 = vmatpush1.msra.mxu0 %v1244
      %1801 = vmatprep.subr.mxu0 0.0
      %1802 = vmatpush2.msra.mxu0 0.0
      %1803 = vmatprep.subr.mxu0 0.0
      %1804 = vmatpush2.msra.mxu0 0.0
      %1805 = vmatprep.subr.mxu0 0.0
      %1806 = vmatpush2.msra.mxu0 0.0
      %1807 = vmatprep.subr.mxu0 0.0
      %1808 = vmatpush2.msra.mxu0 0.0
      %1809 = vmatprep.subr.mxu0 0.0
      %1810 = vmatpush2.msra.mxu0 0.0
      %1811 = vmatprep.subr.mxu0 0.0
      %1812 = vmatpush2.msra.mxu0 0.0
      %1813 = vmatprep.subr.mxu0 0.0
      %1814 = vmatpush2.msra.mxu0 0.0
      %1815 = vmatprep.subr.mxu0 0.0
      %1816 = vmatpush2.msra.mxu0 0.0
      %1817 = vmatprep.subr.mxu0 0.0
      %1818 = vmatpush2.msra.mxu0 0.0
      %1819 = vmatprep.subr.mxu0 0.0
      %1820 = vmatpush2.msra.mxu0 0.0
      %1821 = vmatprep.subr.mxu0 0.0
      %1822 = vmatpush2.msra.mxu0 0.0
      %1823 = vmatprep.subr.mxu0 0.0
      %1824 = vmatpush2.msra.mxu0 0.0
      %1825 = vmatprep.subr.mxu0 0.0
      %1826 = vmatpush2.msra.mxu0 0.0
      %1827 = vmatprep.subr.mxu0 0.0
      %1828 = vmatpush2.msra.mxu0 0.0
      %1829 = vmatprep.subr.mxu0 0.0
      %1830 = vmatpush2.msra.mxu0 0.0
      %1831 = vmatprep.subr.mxu0 0.0
      %1832 = vmatpush2.msra.mxu0 0.0
      %1833 = vmatprep.mubr.f32.mxu0 0.0
      %1834 = vmatmul.mubr.f32.gmra.mxu0 %v1758
      %v1835 = vpop.f32.mrf.mxu0
      %v1836 = vadd.f32 0.0, %v1835
      %v1837 = vpop.f32.mrf.mxu0
      %v1838 = vadd.f32 0.0, %v1837
      %1839 = vmatprep.mubr.f32.mxu0 0.0
      %1840 = vmatmul.mubr.f32.gmra.mxu0 %v1761
      %v1841 = vpop.f32.mrf.mxu0
      %v1842 = vadd.f32 0.0, %v1841
      %v1843 = vpop.f32.mrf.mxu0
      %v1844 = vadd.f32 0.0, %v1843
      %1845 = vmatprep.mubr.f32.mxu0 0.0
      %1846 = vmatmul.mubr.f32.gmra.mxu0 %v1764
      %v1847 = vpop.f32.mrf.mxu0
      %v1848 = vadd.f32 0.0, %v1847
      %v1849 = vpop.f32.mrf.mxu0
      %v1850 = vadd.f32 0.0, %v1849
      %1851 = vmatprep.mubr.f32.mxu0 0.0
      %1852 = vmatmul.mubr.f32.gmra.mxu0 %v1767
      %v1853 = vpop.f32.mrf.mxu0
      %v1854 = vadd.f32 0.0, %v1853
      %v1855 = vpop.f32.mrf.mxu0
      %v1856 = vadd.f32 0.0, %v1855
      %1857 = vdwg.mxu0
      %v1858 = vadd.f32 %v1744, %v1836
      %v1859 = vadd.f32 %v1745, %v1838
      %v1860 = vadd.f32 %v1746, %v1842
      %v1861 = vadd.f32 %v1747, %v1844
      %v1862 = vadd.f32 %v1748, %v1848
      %v1863 = vadd.f32 %v1749, %v1850
      %v1864 = vadd.f32 %v1750, %v1854
      %v1865 = vadd.f32 %v1751, %v1856
      %1866 = vrot.lane.b32.xlu0 %v1244, 127
      %v1867 = vpop.permute.xlu0 %1866
      %1868 = vrot.lane.b32.xlu0 %v1246, 127
      %v1869 = vpop.permute.xlu0 %1868
      %1870 = vrot.lane.b32.xlu0 %v1245, 127
      %v1871 = vpop.permute.xlu0 %1870
      %1872 = vrot.lane.b32.xlu0 %v1247, 127
      %v1873 = vpop.permute.xlu0 %1872
      %v1874 = vsel %vm773, %v1867, %v1871
      %v1875 = vsel %vm773, %v1869, %v1873
      %v1876 = vsel %vm773, %v1871, %v1867
      %v1877 = vsel %vm773, %v1873, %v1869
      %v1878 = vsel %vm778, %v1874, 0.0
      %v1879 = vsel %vm779, %v1876, 0.0
      %v1880 = vsel %vm778, %v1875, 0.0
      %v1881 = vsel %vm779, %v1877, 0.0
      %s1882 = scalar_lea.vmem %s2, 160
      %v1883 = vld [vmem:[%s1882] sm:$0xff]
      %v1884 = vld [vmem:[%s1882 + $0x8] sm:$0xff]
      %v1885 = vld [vmem:[%s1882 + $0x10] sm:$0xff]
      %v1886 = vld [vmem:[%s1882 + $0x18] sm:$0xff]
      %v1888 = vsel %vm1289, %v1883, 0
      %v1891 = vsel %vm1289, %v1884, 0
      %v1894 = vsel %vm1289, %v1885, 0
      %v1897 = vsel %vm1289, %v1886, 0
      %1899 = vmatprep.subr.mxu0 0.0
      %1900 = vmatpush1.msra.mxu0 0.0
      %1901 = vmatprep.subr.mxu0 0.0
      %1902 = vmatpush1.msra.mxu0 0.0
      %1903 = vmatprep.subr.mxu0 0.0
      %1904 = vmatpush1.msra.mxu0 0.0
      %1905 = vmatprep.subr.mxu0 0.0
      %1906 = vmatpush1.msra.mxu0 0.0
      %1907 = vmatprep.subr.mxu0 0.0
      %1908 = vmatpush1.msra.mxu0 0.0
      %1909 = vmatprep.subr.mxu0 0.0
      %1910 = vmatpush1.msra.mxu0 0.0
      %1911 = vmatprep.subr.mxu0 0.0
      %1912 = vmatpush1.msra.mxu0 0.0
      %1913 = vmatprep.subr.mxu0 0.0
      %1914 = vmatpush1.msra.mxu0 0.0
      %1915 = vmatprep.subr.mxu0 0.0
      %1916 = vmatpush1.msra.mxu0 0.0
      %1917 = vmatprep.subr.mxu0 0.0
      %1918 = vmatpush1.msra.mxu0 0.0
      %1919 = vmatprep.subr.mxu0 0.0
      %1920 = vmatpush1.msra.mxu0 0.0
      %1921 = vmatprep.subr.mxu0 0.0
      %1922 = vmatpush1.msra.mxu0 0.0
      %1923 = vmatprep.subr.mxu0 0.0
      %1924 = vmatpush1.msra.mxu0 0.0
      %1925 = vmatprep.subr.mxu0 0.0
      %1926 = vmatpush1.msra.mxu0 0.0
      %1927 = vmatprep.subr.mxu0 %v1881
      %1928 = vmatpush1.msra.mxu0 %v1880
      %1929 = vmatprep.subr.mxu0 %v1879
      %1930 = vmatpush1.msra.mxu0 %v1878
      %1931 = vmatprep.subr.mxu0 0.0
      %1932 = vmatpush2.msra.mxu0 0.0
      %1933 = vmatprep.subr.mxu0 0.0
      %1934 = vmatpush2.msra.mxu0 0.0
      %1935 = vmatprep.subr.mxu0 0.0
      %1936 = vmatpush2.msra.mxu0 0.0
      %1937 = vmatprep.subr.mxu0 0.0
      %1938 = vmatpush2.msra.mxu0 0.0
      %1939 = vmatprep.subr.mxu0 0.0
      %1940 = vmatpush2.msra.mxu0 0.0
      %1941 = vmatprep.subr.mxu0 0.0
      %1942 = vmatpush2.msra.mxu0 0.0
      %1943 = vmatprep.subr.mxu0 0.0
      %1944 = vmatpush2.msra.mxu0 0.0
      %1945 = vmatprep.subr.mxu0 0.0
      %1946 = vmatpush2.msra.mxu0 0.0
      %1947 = vmatprep.subr.mxu0 0.0
      %1948 = vmatpush2.msra.mxu0 0.0
      %1949 = vmatprep.subr.mxu0 0.0
      %1950 = vmatpush2.msra.mxu0 0.0
      %1951 = vmatprep.subr.mxu0 0.0
      %1952 = vmatpush2.msra.mxu0 0.0
      %1953 = vmatprep.subr.mxu0 0.0
      %1954 = vmatpush2.msra.mxu0 0.0
      %1955 = vmatprep.subr.mxu0 0.0
      %1956 = vmatpush2.msra.mxu0 0.0
      %1957 = vmatprep.subr.mxu0 0.0
      %1958 = vmatpush2.msra.mxu0 0.0
      %1959 = vmatprep.subr.mxu0 0.0
      %1960 = vmatpush2.msra.mxu0 0.0
      %1961 = vmatprep.subr.mxu0 0.0
      %1962 = vmatpush2.msra.mxu0 0.0
      %1963 = vmatprep.mubr.f32.mxu0 0.0
      %1964 = vmatmul.mubr.f32.gmra.mxu0 %v1888
      %v1965 = vpop.f32.mrf.mxu0
      %v1966 = vadd.f32 0.0, %v1965
      %v1967 = vpop.f32.mrf.mxu0
      %v1968 = vadd.f32 0.0, %v1967
      %1969 = vmatprep.mubr.f32.mxu0 0.0
      %1970 = vmatmul.mubr.f32.gmra.mxu0 %v1891
      %v1971 = vpop.f32.mrf.mxu0
      %v1972 = vadd.f32 0.0, %v1971
      %v1973 = vpop.f32.mrf.mxu0
      %v1974 = vadd.f32 0.0, %v1973
      %1975 = vmatprep.mubr.f32.mxu0 0.0
      %1976 = vmatmul.mubr.f32.gmra.mxu0 %v1894
      %v1977 = vpop.f32.mrf.mxu0
      %v1978 = vadd.f32 0.0, %v1977
      %v1979 = vpop.f32.mrf.mxu0
      %v1980 = vadd.f32 0.0, %v1979
      %1981 = vmatprep.mubr.f32.mxu0 0.0
      %1982 = vmatmul.mubr.f32.gmra.mxu0 %v1897
      %v1983 = vpop.f32.mrf.mxu0
      %v1984 = vadd.f32 0.0, %v1983
      %v1985 = vpop.f32.mrf.mxu0
      %v1986 = vadd.f32 0.0, %v1985
      %1987 = vdwg.mxu0
      %v1988 = vadd.f32 %v1858, %v1966
      %v1989 = vadd.f32 %v1859, %v1968
      %v1990 = vadd.f32 %v1860, %v1972
      %v1991 = vadd.f32 %v1861, %v1974
      %v1992 = vadd.f32 %v1862, %v1978
      %v1993 = vadd.f32 %v1863, %v1980
      %v1994 = vadd.f32 %v1864, %v1984
      %v1995 = vadd.f32 %v1865, %v1986
      %1996 = vrot.lane.b32.xlu0 %v1244, 113
      %v1997 = vpop.permute.xlu0 %1996
      %1998 = vrot.lane.b32.xlu0 %v1246, 113
      %v1999 = vpop.permute.xlu0 %1998
      %2000 = vrot.lane.b32.xlu0 %v1245, 113
      %v2001 = vpop.permute.xlu0 %2000
      %2002 = vrot.lane.b32.xlu0 %v1247, 113
      %v2003 = vpop.permute.xlu0 %2002
      %v2004 = vsel %vm882, %v1997, %v2001
      %v2005 = vsel %vm882, %v1999, %v2003
      %v2006 = vsel %vm882, %v2001, %v1997
      %v2007 = vsel %vm882, %v2003, %v1999
      %v2008 = vsel %vm891, %v2004, 0.0
      %v2009 = vsel %vm892, %v2006, 0.0
      %v2010 = vsel %vm891, %v2005, 0.0
      %v2011 = vsel %vm892, %v2007, 0.0
      %s2012 = scalar_lea.vmem %s2, 192
      %v2013 = vld [vmem:[%s2012] sm:$0xff]
      %v2014 = vld [vmem:[%s2012 + $0x8] sm:$0xff]
      %v2015 = vld [vmem:[%s2012 + $0x10] sm:$0xff]
      %v2016 = vld [vmem:[%s2012 + $0x18] sm:$0xff]
      %v2018 = vsel %vm1289, %v2013, 0
      %v2021 = vsel %vm1289, %v2014, 0
      %v2024 = vsel %vm1289, %v2015, 0
      %v2027 = vsel %vm1289, %v2016, 0
      %2029 = vmatprep.subr.mxu0 0.0
      %2030 = vmatpush1.msra.mxu0 0.0
      %2031 = vmatprep.subr.mxu0 0.0
      %2032 = vmatpush1.msra.mxu0 0.0
      %2033 = vmatprep.subr.mxu0 0.0
      %2034 = vmatpush1.msra.mxu0 0.0
      %2035 = vmatprep.subr.mxu0 0.0
      %2036 = vmatpush1.msra.mxu0 0.0
      %2037 = vmatprep.subr.mxu0 0.0
      %2038 = vmatpush1.msra.mxu0 0.0
      %2039 = vmatprep.subr.mxu0 0.0
      %2040 = vmatpush1.msra.mxu0 0.0
      %2041 = vmatprep.subr.mxu0 0.0
      %2042 = vmatpush1.msra.mxu0 0.0
      %2043 = vmatprep.subr.mxu0 0.0
      %2044 = vmatpush1.msra.mxu0 0.0
      %2045 = vmatprep.subr.mxu0 0.0
      %2046 = vmatpush1.msra.mxu0 0.0
      %2047 = vmatprep.subr.mxu0 0.0
      %2048 = vmatpush1.msra.mxu0 0.0
      %2049 = vmatprep.subr.mxu0 0.0
      %2050 = vmatpush1.msra.mxu0 0.0
      %2051 = vmatprep.subr.mxu0 0.0
      %2052 = vmatpush1.msra.mxu0 0.0
      %2053 = vmatprep.subr.mxu0 0.0
      %2054 = vmatpush1.msra.mxu0 0.0
      %2055 = vmatprep.subr.mxu0 0.0
      %2056 = vmatpush1.msra.mxu0 0.0
      %2057 = vmatprep.subr.mxu0 %v2011
      %2058 = vmatpush1.msra.mxu0 %v2010
      %2059 = vmatprep.subr.mxu0 %v2009
      %2060 = vmatpush1.msra.mxu0 %v2008
      %2061 = vmatprep.subr.mxu0 0.0
      %2062 = vmatpush2.msra.mxu0 0.0
      %2063 = vmatprep.subr.mxu0 0.0
      %2064 = vmatpush2.msra.mxu0 0.0
      %2065 = vmatprep.subr.mxu0 0.0
      %2066 = vmatpush2.msra.mxu0 0.0
      %2067 = vmatprep.subr.mxu0 0.0
      %2068 = vmatpush2.msra.mxu0 0.0
      %2069 = vmatprep.subr.mxu0 0.0
      %2070 = vmatpush2.msra.mxu0 0.0
      %2071 = vmatprep.subr.mxu0 0.0
      %2072 = vmatpush2.msra.mxu0 0.0
      %2073 = vmatprep.subr.mxu0 0.0
      %2074 = vmatpush2.msra.mxu0 0.0
      %2075 = vmatprep.subr.mxu0 0.0
      %2076 = vmatpush2.msra.mxu0 0.0
      %2077 = vmatprep.subr.mxu0 0.0
      %2078 = vmatpush2.msra.mxu0 0.0
      %2079 = vmatprep.subr.mxu0 0.0
      %2080 = vmatpush2.msra.mxu0 0.0
      %2081 = vmatprep.subr.mxu0 0.0
      %2082 = vmatpush2.msra.mxu0 0.0
      %2083 = vmatprep.subr.mxu0 0.0
      %2084 = vmatpush2.msra.mxu0 0.0
      %2085 = vmatprep.subr.mxu0 0.0
      %2086 = vmatpush2.msra.mxu0 0.0
      %2087 = vmatprep.subr.mxu0 0.0
      %2088 = vmatpush2.msra.mxu0 0.0
      %2089 = vmatprep.subr.mxu0 0.0
      %2090 = vmatpush2.msra.mxu0 0.0
      %2091 = vmatprep.subr.mxu0 0.0
      %2092 = vmatpush2.msra.mxu0 0.0
      %2093 = vmatprep.mubr.f32.mxu0 0.0
      %2094 = vmatmul.mubr.f32.gmra.mxu0 %v2018
      %v2095 = vpop.f32.mrf.mxu0
      %v2096 = vadd.f32 0.0, %v2095
      %v2097 = vpop.f32.mrf.mxu0
      %v2098 = vadd.f32 0.0, %v2097
      %2099 = vmatprep.mubr.f32.mxu0 0.0
      %2100 = vmatmul.mubr.f32.gmra.mxu0 %v2021
      %v2101 = vpop.f32.mrf.mxu0
      %v2102 = vadd.f32 0.0, %v2101
      %v2103 = vpop.f32.mrf.mxu0
      %v2104 = vadd.f32 0.0, %v2103
      %2105 = vmatprep.mubr.f32.mxu0 0.0
      %2106 = vmatmul.mubr.f32.gmra.mxu0 %v2024
      %v2107 = vpop.f32.mrf.mxu0
      %v2108 = vadd.f32 0.0, %v2107
      %v2109 = vpop.f32.mrf.mxu0
      %v2110 = vadd.f32 0.0, %v2109
      %2111 = vmatprep.mubr.f32.mxu0 0.0
      %2112 = vmatmul.mubr.f32.gmra.mxu0 %v2027
      %v2113 = vpop.f32.mrf.mxu0
      %v2114 = vadd.f32 0.0, %v2113
      %v2115 = vpop.f32.mrf.mxu0
      %v2116 = vadd.f32 0.0, %v2115
      %2117 = vdwg.mxu0
      %v2118 = vadd.f32 %v1988, %v2096
      %v2119 = vadd.f32 %v1989, %v2098
      %v2120 = vadd.f32 %v1990, %v2102
      %v2121 = vadd.f32 %v1991, %v2104
      %v2122 = vadd.f32 %v1992, %v2108
      %v2123 = vadd.f32 %v1993, %v2110
      %v2124 = vadd.f32 %v1994, %v2114
      %v2125 = vadd.f32 %v1995, %v2116
      %2126 = vrot.lane.b32.xlu0 %v1244, 112
      %v2127 = vpop.permute.xlu0 %2126
      %2128 = vrot.lane.b32.xlu0 %v1246, 112
      %v2129 = vpop.permute.xlu0 %2128
      %2130 = vrot.lane.b32.xlu0 %v1245, 112
      %v2131 = vpop.permute.xlu0 %2130
      %2132 = vrot.lane.b32.xlu0 %v1247, 112
      %v2133 = vpop.permute.xlu0 %2132
      %v2134 = vsel %vm995, %v2127, %v2131
      %v2135 = vsel %vm995, %v2129, %v2133
      %v2136 = vsel %vm995, %v2131, %v2127
      %v2137 = vsel %vm995, %v2133, %v2129
      %v2138 = vsel %vm1000, %v2134, 0.0
      %v2139 = vsel %vm1001, %v2136, 0.0
      %v2140 = vsel %vm1000, %v2135, 0.0
      %v2141 = vsel %vm1001, %v2137, 0.0
      %s2142 = scalar_lea.vmem %s2, 224
      %v2143 = vld [vmem:[%s2142] sm:$0xff]
      %v2144 = vld [vmem:[%s2142 + $0x8] sm:$0xff]
      %v2145 = vld [vmem:[%s2142 + $0x10] sm:$0xff]
      %v2146 = vld [vmem:[%s2142 + $0x18] sm:$0xff]
      %v2148 = vsel %vm1289, %v2143, 0
      %v2151 = vsel %vm1289, %v2144, 0
      %v2154 = vsel %vm1289, %v2145, 0
      %v2157 = vsel %vm1289, %v2146, 0
      %2159 = vmatprep.subr.mxu0 0.0
      %2160 = vmatpush1.msra.mxu0 0.0
      %2161 = vmatprep.subr.mxu0 0.0
      %2162 = vmatpush1.msra.mxu0 0.0
      %2163 = vmatprep.subr.mxu0 0.0
      %2164 = vmatpush1.msra.mxu0 0.0
      %2165 = vmatprep.subr.mxu0 0.0
      %2166 = vmatpush1.msra.mxu0 0.0
      %2167 = vmatprep.subr.mxu0 0.0
      %2168 = vmatpush1.msra.mxu0 0.0
      %2169 = vmatprep.subr.mxu0 0.0
      %2170 = vmatpush1.msra.mxu0 0.0
      %2171 = vmatprep.subr.mxu0 0.0
      %2172 = vmatpush1.msra.mxu0 0.0
      %2173 = vmatprep.subr.mxu0 0.0
      %2174 = vmatpush1.msra.mxu0 0.0
      %2175 = vmatprep.subr.mxu0 0.0
      %2176 = vmatpush1.msra.mxu0 0.0
      %2177 = vmatprep.subr.mxu0 0.0
      %2178 = vmatpush1.msra.mxu0 0.0
      %2179 = vmatprep.subr.mxu0 0.0
      %2180 = vmatpush1.msra.mxu0 0.0
      %2181 = vmatprep.subr.mxu0 0.0
      %2182 = vmatpush1.msra.mxu0 0.0
      %2183 = vmatprep.subr.mxu0 0.0
      %2184 = vmatpush1.msra.mxu0 0.0
      %2185 = vmatprep.subr.mxu0 0.0
      %2186 = vmatpush1.msra.mxu0 0.0
      %2187 = vmatprep.subr.mxu0 %v2141
      %2188 = vmatpush1.msra.mxu0 %v2140
      %2189 = vmatprep.subr.mxu0 %v2139
      %2190 = vmatpush1.msra.mxu0 %v2138
      %2191 = vmatprep.subr.mxu0 0.0
      %2192 = vmatpush2.msra.mxu0 0.0
      %2193 = vmatprep.subr.mxu0 0.0
      %2194 = vmatpush2.msra.mxu0 0.0
      %2195 = vmatprep.subr.mxu0 0.0
      %2196 = vmatpush2.msra.mxu0 0.0
      %2197 = vmatprep.subr.mxu0 0.0
      %2198 = vmatpush2.msra.mxu0 0.0
      %2199 = vmatprep.subr.mxu0 0.0
      %2200 = vmatpush2.msra.mxu0 0.0
      %2201 = vmatprep.subr.mxu0 0.0
      %2202 = vmatpush2.msra.mxu0 0.0
      %2203 = vmatprep.subr.mxu0 0.0
      %2204 = vmatpush2.msra.mxu0 0.0
      %2205 = vmatprep.subr.mxu0 0.0
      %2206 = vmatpush2.msra.mxu0 0.0
      %2207 = vmatprep.subr.mxu0 0.0
      %2208 = vmatpush2.msra.mxu0 0.0
      %2209 = vmatprep.subr.mxu0 0.0
      %2210 = vmatpush2.msra.mxu0 0.0
      %2211 = vmatprep.subr.mxu0 0.0
      %2212 = vmatpush2.msra.mxu0 0.0
      %2213 = vmatprep.subr.mxu0 0.0
      %2214 = vmatpush2.msra.mxu0 0.0
      %2215 = vmatprep.subr.mxu0 0.0
      %2216 = vmatpush2.msra.mxu0 0.0
      %2217 = vmatprep.subr.mxu0 0.0
      %2218 = vmatpush2.msra.mxu0 0.0
      %2219 = vmatprep.subr.mxu0 0.0
      %2220 = vmatpush2.msra.mxu0 0.0
      %2221 = vmatprep.subr.mxu0 0.0
      %2222 = vmatpush2.msra.mxu0 0.0
      %2223 = vmatprep.mubr.f32.mxu0 0.0
      %2224 = vmatmul.mubr.f32.gmra.mxu0 %v2148
      %v2225 = vpop.f32.mrf.mxu0
      %v2226 = vadd.f32 0.0, %v2225
      %v2227 = vpop.f32.mrf.mxu0
      %v2228 = vadd.f32 0.0, %v2227
      %2229 = vmatprep.mubr.f32.mxu0 0.0
      %2230 = vmatmul.mubr.f32.gmra.mxu0 %v2151
      %v2231 = vpop.f32.mrf.mxu0
      %v2232 = vadd.f32 0.0, %v2231
      %v2233 = vpop.f32.mrf.mxu0
      %v2234 = vadd.f32 0.0, %v2233
      %2235 = vmatprep.mubr.f32.mxu0 0.0
      %2236 = vmatmul.mubr.f32.gmra.mxu0 %v2154
      %v2237 = vpop.f32.mrf.mxu0
      %v2238 = vadd.f32 0.0, %v2237
      %v2239 = vpop.f32.mrf.mxu0
      %v2240 = vadd.f32 0.0, %v2239
      %2241 = vmatprep.mubr.f32.mxu0 0.0
      %2242 = vmatmul.mubr.f32.gmra.mxu0 %v2157
      %v2243 = vpop.f32.mrf.mxu0
      %v2244 = vadd.f32 0.0, %v2243
      %v2245 = vpop.f32.mrf.mxu0
      %v2246 = vadd.f32 0.0, %v2245
      %2247 = vdwg.mxu0
      %v2248 = vadd.f32 %v2118, %v2226
      %v2249 = vadd.f32 %v2119, %v2228
      %v2250 = vadd.f32 %v2120, %v2232
      %v2251 = vadd.f32 %v2121, %v2234
      %v2252 = vadd.f32 %v2122, %v2238
      %v2253 = vadd.f32 %v2123, %v2240
      %v2254 = vadd.f32 %v2124, %v2244
      %v2255 = vadd.f32 %v2125, %v2246
      %2256 = vrot.lane.b32.xlu0 %v1244, 111
      %v2257 = vpop.permute.xlu0 %2256
      %2258 = vrot.lane.b32.xlu0 %v1246, 111
      %v2259 = vpop.permute.xlu0 %2258
      %2260 = vrot.lane.b32.xlu0 %v1245, 111
      %v2261 = vpop.permute.xlu0 %2260
      %2262 = vrot.lane.b32.xlu0 %v1247, 111
      %v2263 = vpop.permute.xlu0 %2262
      %v2264 = vsel %vm1104, %v2257, %v2261
      %v2265 = vsel %vm1104, %v2259, %v2263
      %v2266 = vsel %vm1104, %v2261, %v2257
      %v2267 = vsel %vm1104, %v2263, %v2259
      %v2268 = vsel %vm1111, %v2264, 0.0
      %v2269 = vsel %vm1112, %v2266, 0.0
      %v2270 = vsel %vm1111, %v2265, 0.0
      %v2271 = vsel %vm1112, %v2267, 0.0
      %s2272 = scalar_lea.vmem %s2, 256
      %v2273 = vld [vmem:[%s2272] sm:$0xff]
      %v2274 = vld [vmem:[%s2272 + $0x8] sm:$0xff]
      %v2275 = vld [vmem:[%s2272 + $0x10] sm:$0xff]
      %v2276 = vld [vmem:[%s2272 + $0x18] sm:$0xff]
      %v2278 = vsel %vm1289, %v2273, 0
      %v2281 = vsel %vm1289, %v2274, 0
      %v2284 = vsel %vm1289, %v2275, 0
      %v2287 = vsel %vm1289, %v2276, 0
      %2289 = vmatprep.subr.mxu0 0.0
      %2290 = vmatpush1.msra.mxu0 0.0
      %2291 = vmatprep.subr.mxu0 0.0
      %2292 = vmatpush1.msra.mxu0 0.0
      %2293 = vmatprep.subr.mxu0 0.0
      %2294 = vmatpush1.msra.mxu0 0.0
      %2295 = vmatprep.subr.mxu0 0.0
      %2296 = vmatpush1.msra.mxu0 0.0
      %2297 = vmatprep.subr.mxu0 0.0
      %2298 = vmatpush1.msra.mxu0 0.0
      %2299 = vmatprep.subr.mxu0 0.0
      %2300 = vmatpush1.msra.mxu0 0.0
      %2301 = vmatprep.subr.mxu0 0.0
      %2302 = vmatpush1.msra.mxu0 0.0
      %2303 = vmatprep.subr.mxu0 0.0
      %2304 = vmatpush1.msra.mxu0 0.0
      %2305 = vmatprep.subr.mxu0 0.0
      %2306 = vmatpush1.msra.mxu0 0.0
      %2307 = vmatprep.subr.mxu0 0.0
      %2308 = vmatpush1.msra.mxu0 0.0
      %2309 = vmatprep.subr.mxu0 0.0
      %2310 = vmatpush1.msra.mxu0 0.0
      %2311 = vmatprep.subr.mxu0 0.0
      %2312 = vmatpush1.msra.mxu0 0.0
      %2313 = vmatprep.subr.mxu0 0.0
      %2314 = vmatpush1.msra.mxu0 0.0
      %2315 = vmatprep.subr.mxu0 0.0
      %2316 = vmatpush1.msra.mxu0 0.0
      %2317 = vmatprep.subr.mxu0 %v2271
      %2318 = vmatpush1.msra.mxu0 %v2270
      %2319 = vmatprep.subr.mxu0 %v2269
      %2320 = vmatpush1.msra.mxu0 %v2268
      %2321 = vmatprep.subr.mxu0 0.0
      %2322 = vmatpush2.msra.mxu0 0.0
      %2323 = vmatprep.subr.mxu0 0.0
      %2324 = vmatpush2.msra.mxu0 0.0
      %2325 = vmatprep.subr.mxu0 0.0
      %2326 = vmatpush2.msra.mxu0 0.0
      %2327 = vmatprep.subr.mxu0 0.0
      %2328 = vmatpush2.msra.mxu0 0.0
      %2329 = vmatprep.subr.mxu0 0.0
      %2330 = vmatpush2.msra.mxu0 0.0
      %2331 = vmatprep.subr.mxu0 0.0
      %2332 = vmatpush2.msra.mxu0 0.0
      %2333 = vmatprep.subr.mxu0 0.0
      %2334 = vmatpush2.msra.mxu0 0.0
      %2335 = vmatprep.subr.mxu0 0.0
      %2336 = vmatpush2.msra.mxu0 0.0
      %2337 = vmatprep.subr.mxu0 0.0
      %2338 = vmatpush2.msra.mxu0 0.0
      %2339 = vmatprep.subr.mxu0 0.0
      %2340 = vmatpush2.msra.mxu0 0.0
      %2341 = vmatprep.subr.mxu0 0.0
      %2342 = vmatpush2.msra.mxu0 0.0
      %2343 = vmatprep.subr.mxu0 0.0
      %2344 = vmatpush2.msra.mxu0 0.0
      %2345 = vmatprep.subr.mxu0 0.0
      %2346 = vmatpush2.msra.mxu0 0.0
      %2347 = vmatprep.subr.mxu0 0.0
      %2348 = vmatpush2.msra.mxu0 0.0
      %2349 = vmatprep.subr.mxu0 0.0
      %2350 = vmatpush2.msra.mxu0 0.0
      %2351 = vmatprep.subr.mxu0 0.0
      %2352 = vmatpush2.msra.mxu0 0.0
      %2353 = vmatprep.mubr.f32.mxu0 0.0
      %2354 = vmatmul.mubr.f32.gmra.mxu0 %v2278
      %v2355 = vpop.f32.mrf.mxu0
      %v2356 = vadd.f32 0.0, %v2355
      %v2357 = vpop.f32.mrf.mxu0
      %v2358 = vadd.f32 0.0, %v2357
      %2359 = vmatprep.mubr.f32.mxu0 0.0
      %2360 = vmatmul.mubr.f32.gmra.mxu0 %v2281
      %v2361 = vpop.f32.mrf.mxu0
      %v2362 = vadd.f32 0.0, %v2361
      %v2363 = vpop.f32.mrf.mxu0
      %v2364 = vadd.f32 0.0, %v2363
      %2365 = vmatprep.mubr.f32.mxu0 0.0
      %2366 = vmatmul.mubr.f32.gmra.mxu0 %v2284
      %v2367 = vpop.f32.mrf.mxu0
      %v2368 = vadd.f32 0.0, %v2367
      %v2369 = vpop.f32.mrf.mxu0
      %v2370 = vadd.f32 0.0, %v2369
      %2371 = vmatprep.mubr.f32.mxu0 0.0
      %2372 = vmatmul.mubr.f32.gmra.mxu0 %v2287
      %v2373 = vpop.f32.mrf.mxu0
      %v2374 = vadd.f32 0.0, %v2373
      %v2375 = vpop.f32.mrf.mxu0
      %v2376 = vadd.f32 0.0, %v2375
      %2377 = vdwg.mxu0
      %v2378 = vadd.f32 %v2248, %v2356
      %v2379 = vadd.f32 %v2249, %v2358
      %v2380 = vadd.f32 %v2250, %v2362
      %v2381 = vadd.f32 %v2251, %v2364
      %v2382 = vadd.f32 %v2252, %v2368
      %v2383 = vadd.f32 %v2253, %v2370
      %v2384 = vadd.f32 %v2254, %v2374
      %v2385 = vadd.f32 %v2255, %v2376
      %v2386 = vadd.f32 %v2378, %v2379
      %2387 = vadd.xlane.f32.xlu0 %v2386
      %v2388 = vpop.xlane.xlu0 %2387
      %v2389 = vadd.f32 %v2380, %v2381
      %2390 = vadd.xlane.f32.xlu0 %v2389
      %v2391 = vpop.xlane.xlu0 %2390
      %v2392 = vadd.f32 %v2382, %v2383
      %2393 = vadd.xlane.f32.xlu0 %v2392
      %v2394 = vpop.xlane.xlu0 %2393
      %v2395 = vadd.f32 %v2384, %v2385
      %2396 = vadd.xlane.f32.xlu0 %v2395
      %v2397 = vpop.xlane.xlu0 %2396
      %v2398 = vmul.f32 %v2388, %v1217
      %v2399 = vmul.f32 %v2391, %v1217
      %v2400 = vmul.f32 %v2394, %v1217
      %v2401 = vmul.f32 %v2397, %v1217
      %v2402 = vsub.f32 %v2378, %v2398
      %v2403 = vsub.f32 %v2379, %v2398
      %v2404 = vsub.f32 %v2380, %v2399
      %v2405 = vsub.f32 %v2381, %v2399
      %v2406 = vsub.f32 %v2382, %v2400
      %v2407 = vsub.f32 %v2383, %v2400
      %v2408 = vsub.f32 %v2384, %v2401
      %v2409 = vsub.f32 %v2385, %v2401
      %v2410 = vmul.f32 %v2402, %v2402
      %v2411 = vmul.f32 %v2403, %v2403
      %v2412 = vmul.f32 %v2404, %v2404
      %v2413 = vmul.f32 %v2405, %v2405
      %v2414 = vmul.f32 %v2406, %v2406
      %v2415 = vmul.f32 %v2407, %v2407
      %v2416 = vmul.f32 %v2408, %v2408
      %v2417 = vmul.f32 %v2409, %v2409
      %v2418 = vadd.f32 %v2410, %v2411
      %2419 = vadd.xlane.f32.xlu0 %v2418
      %v2420 = vpop.xlane.xlu0 %2419
      %v2421 = vadd.f32 %v2412, %v2413
      %2422 = vadd.xlane.f32.xlu0 %v2421
      %v2423 = vpop.xlane.xlu0 %2422
      %v2424 = vadd.f32 %v2414, %v2415
      %2425 = vadd.xlane.f32.xlu0 %v2424
      %v2426 = vpop.xlane.xlu0 %2425
      %v2427 = vadd.f32 %v2416, %v2417
      %2428 = vadd.xlane.f32.xlu0 %v2427
      %v2429 = vpop.xlane.xlu0 %2428
      %v2430 = vmul.f32 %v2420, %v1217
      %v2431 = vmul.f32 %v2423, %v1217
      %v2432 = vmul.f32 %v2426, %v1217
      %v2433 = vmul.f32 %v2429, %v1217
      %v2434 = vadd.f32 %v2430, 1e-05
      %v2435 = vadd.f32 %v2431, 1e-05
      %v2436 = vadd.f32 %v2432, 1e-05
      %v2437 = vadd.f32 %v2433, 1e-05
      %v2438 = vrsqrt.pop %v2434
      %v2439 = vrsqrt.pop %v2435
      %v2440 = vrsqrt.pop %v2436
      %v2441 = vrsqrt.pop %v2437
      %v2442 = vmul.f32 %v2402, %v2438
      %v2443 = vmul.f32 %v2403, %v2438
      %v2444 = vmul.f32 %v2404, %v2439
      %v2445 = vmul.f32 %v2405, %v2439
      %v2446 = vmul.f32 %v2406, %v2440
      %v2447 = vmul.f32 %v2407, %v2440
      %v2448 = vmul.f32 %v2408, %v2441
      %v2449 = vmul.f32 %v2409, %v2441
      %v2450 = vmax.f32 %v2442, 0.0
      %v2451 = vmax.f32 %v2443, 0.0
      %v2452 = vmax.f32 %v2444, 0.0
      %v2453 = vmax.f32 %v2445, 0.0
      %v2454 = vmax.f32 %v2446, 0.0
      %v2455 = vmax.f32 %v2447, 0.0
      %v2456 = vmax.f32 %v2448, 0.0
      %v2457 = vmax.f32 %v2449, 0.0
      %2458 = vrot.lane.b32.xlu0 %v2450, 17
      %v2459 = vpop.permute.xlu0 %2458
      %2460 = vrot.lane.b32.xlu0 %v2452, 17
      %v2461 = vpop.permute.xlu0 %2460
      %2462 = vrot.lane.b32.xlu0 %v2454, 17
      %v2463 = vpop.permute.xlu0 %2462
      %2464 = vrot.lane.b32.xlu0 %v2456, 17
      %v2465 = vpop.permute.xlu0 %2464
      %2466 = vrot.lane.b32.xlu0 %v2451, 17
      %v2467 = vpop.permute.xlu0 %2466
      %2468 = vrot.lane.b32.xlu0 %v2453, 17
      %v2469 = vpop.permute.xlu0 %2468
      %2470 = vrot.lane.b32.xlu0 %v2455, 17
      %v2471 = vpop.permute.xlu0 %2470
      %2472 = vrot.lane.b32.xlu0 %v2457, 17
      %v2473 = vpop.permute.xlu0 %2472
      %v2474 = vsel %vm240, %v2459, %v2467
      %v2475 = vsel %vm240, %v2461, %v2469
      %v2476 = vsel %vm240, %v2463, %v2471
      %v2477 = vsel %vm240, %v2465, %v2473
      %v2478 = vsel %vm240, %v2467, %v2459
      %v2479 = vsel %vm240, %v2469, %v2461
      %v2480 = vsel %vm240, %v2471, %v2463
      %v2481 = vsel %vm240, %v2473, %v2465
      %v2482 = vsel %vm251, %v2478, 0.0
      %v2483 = vsel %vm252, %v2474, 0.0
      %v2484 = vsel %vm251, %v2479, 0.0
      %v2485 = vsel %vm252, %v2475, 0.0
      %v2486 = vsel %vm251, %v2480, 0.0
      %v2487 = vsel %vm252, %v2476, 0.0
      %v2488 = vsel %vm251, %v2481, 0.0
      %v2489 = vsel %vm252, %v2477, 0.0
      %v2490 = vld [vmem:[%s3] sm:$0xff]
      %v2491 = vld [vmem:[%s3 + $0x8] sm:$0xff]
      %2492 = vrot.lane.b32.xlu0 %v2450, 16
      %v2493 = vpop.permute.xlu0 %2492
      %2494 = vrot.lane.b32.xlu0 %v2452, 16
      %v2495 = vpop.permute.xlu0 %2494
      %2496 = vrot.lane.b32.xlu0 %v2454, 16
      %v2497 = vpop.permute.xlu0 %2496
      %2498 = vrot.lane.b32.xlu0 %v2456, 16
      %v2499 = vpop.permute.xlu0 %2498
      %2500 = vrot.lane.b32.xlu0 %v2451, 16
      %v2501 = vpop.permute.xlu0 %2500
      %2502 = vrot.lane.b32.xlu0 %v2453, 16
      %v2503 = vpop.permute.xlu0 %2502
      %2504 = vrot.lane.b32.xlu0 %v2455, 16
      %v2505 = vpop.permute.xlu0 %2504
      %2506 = vrot.lane.b32.xlu0 %v2457, 16
      %v2507 = vpop.permute.xlu0 %2506
      %v2508 = vsel %vm261, %v2493, %v2501
      %v2509 = vsel %vm261, %v2495, %v2503
      %v2510 = vsel %vm261, %v2497, %v2505
      %v2511 = vsel %vm261, %v2499, %v2507
      %v2512 = vsel %vm261, %v2501, %v2493
      %v2513 = vsel %vm261, %v2503, %v2495
      %v2514 = vsel %vm261, %v2505, %v2497
      %v2515 = vsel %vm261, %v2507, %v2499
      %v2516 = vsel %vm266, %v2512, 0.0
      %v2517 = vsel %vm267, %v2508, 0.0
      %v2518 = vsel %vm266, %v2513, 0.0
      %v2519 = vsel %vm267, %v2509, 0.0
      %v2520 = vsel %vm266, %v2514, 0.0
      %v2521 = vsel %vm267, %v2510, 0.0
      %v2522 = vsel %vm266, %v2515, 0.0
      %v2523 = vsel %vm267, %v2511, 0.0
      %s2524 = scalar_lea.vmem %s3, 16
      %v2525 = vld [vmem:[%s2524] sm:$0xff]
      %v2526 = vld [vmem:[%s2524 + $0x8] sm:$0xff]
      %vm2527 = vcmask 261120
      %v2529 = vsel %vm2527, %v2525, 0
      %v2532 = vsel %vm2527, %v2526, 0
      %2534 = vmatprep.subr.mxu0 0.0
      %2535 = vmatpush1.msra.mxu0 0.0
      %2536 = vmatprep.subr.mxu0 0.0
      %2537 = vmatpush1.msra.mxu0 0.0
      %2538 = vmatprep.subr.mxu0 0.0
      %2539 = vmatpush1.msra.mxu0 0.0
      %2540 = vmatprep.subr.mxu0 0.0
      %2541 = vmatpush1.msra.mxu0 0.0
      %2542 = vmatprep.subr.mxu0 0.0
      %2543 = vmatpush1.msra.mxu0 0.0
      %2544 = vmatprep.subr.mxu0 0.0
      %2545 = vmatpush1.msra.mxu0 0.0
      %2546 = vmatprep.subr.mxu0 0.0
      %2547 = vmatpush1.msra.mxu0 0.0
      %2548 = vmatprep.subr.mxu0 0.0
      %2549 = vmatpush1.msra.mxu0 0.0
      %2550 = vmatprep.subr.mxu0 0.0
      %2551 = vmatpush1.msra.mxu0 0.0
      %2552 = vmatprep.subr.mxu0 0.0
      %2553 = vmatpush1.msra.mxu0 0.0
      %2554 = vmatprep.subr.mxu0 0.0
      %2555 = vmatpush1.msra.mxu0 0.0
      %2556 = vmatprep.subr.mxu0 0.0
      %2557 = vmatpush1.msra.mxu0 0.0
      %2558 = vmatprep.subr.mxu0 %v2523
      %2559 = vmatpush1.msra.mxu0 %v2522
      %2560 = vmatprep.subr.mxu0 %v2521
      %2561 = vmatpush1.msra.mxu0 %v2520
      %2562 = vmatprep.subr.mxu0 %v2519
      %2563 = vmatpush1.msra.mxu0 %v2518
      %2564 = vmatprep.subr.mxu0 %v2517
      %2565 = vmatpush1.msra.mxu0 %v2516
      %2566 = vmatprep.subr.mxu0 0.0
      %2567 = vmatpush2.msra.mxu0 0.0
      %2568 = vmatprep.subr.mxu0 0.0
      %2569 = vmatpush2.msra.mxu0 0.0
      %2570 = vmatprep.subr.mxu0 0.0
      %2571 = vmatpush2.msra.mxu0 0.0
      %2572 = vmatprep.subr.mxu0 0.0
      %2573 = vmatpush2.msra.mxu0 0.0
      %2574 = vmatprep.subr.mxu0 0.0
      %2575 = vmatpush2.msra.mxu0 0.0
      %2576 = vmatprep.subr.mxu0 0.0
      %2577 = vmatpush2.msra.mxu0 0.0
      %2578 = vmatprep.subr.mxu0 0.0
      %2579 = vmatpush2.msra.mxu0 0.0
      %2580 = vmatprep.subr.mxu0 0.0
      %2581 = vmatpush2.msra.mxu0 0.0
      %2582 = vmatprep.subr.mxu0 0.0
      %2583 = vmatpush2.msra.mxu0 0.0
      %2584 = vmatprep.subr.mxu0 0.0
      %2585 = vmatpush2.msra.mxu0 0.0
      %2586 = vmatprep.subr.mxu0 0.0
      %2587 = vmatpush2.msra.mxu0 0.0
      %2588 = vmatprep.subr.mxu0 0.0
      %2589 = vmatpush2.msra.mxu0 0.0
      %2590 = vmatprep.subr.mxu0 0.0
      %2591 = vmatpush2.msra.mxu0 0.0
      %2592 = vmatprep.subr.mxu0 0.0
      %2593 = vmatpush2.msra.mxu0 0.0
      %2594 = vmatprep.subr.mxu0 0.0
      %2595 = vmatpush2.msra.mxu0 0.0
      %2596 = vmatprep.subr.mxu0 0.0
      %2597 = vmatpush2.msra.mxu0 0.0
      %2598 = vmatprep.mubr.f32.mxu0 0.0
      %2599 = vmatmul.mubr.f32.gmra.mxu0 %v2529
      %v2600 = vpop.f32.mrf.mxu0
      %v2601 = vadd.f32 0.0, %v2600
      %v2602 = vpop.f32.mrf.mxu0
      %v2603 = vadd.f32 0.0, %v2602
      %2604 = vmatprep.mubr.f32.mxu0 0.0
      %2605 = vmatmul.mubr.f32.gmra.mxu0 %v2532
      %v2606 = vpop.f32.mrf.mxu0
      %v2607 = vadd.f32 0.0, %v2606
      %v2608 = vpop.f32.mrf.mxu0
      %v2609 = vadd.f32 0.0, %v2608
      %2610 = vdwg.mxu0
      %v2612 = vsel %vm2527, %v2490, 0
      %v2615 = vsel %vm2527, %v2491, 0
      %2617 = vmatprep.subr.mxu0 0.0
      %2618 = vmatpush1.msra.mxu0 0.0
      %2619 = vmatprep.subr.mxu0 0.0
      %2620 = vmatpush1.msra.mxu0 0.0
      %2621 = vmatprep.subr.mxu0 0.0
      %2622 = vmatpush1.msra.mxu0 0.0
      %2623 = vmatprep.subr.mxu0 0.0
      %2624 = vmatpush1.msra.mxu0 0.0
      %2625 = vmatprep.subr.mxu0 0.0
      %2626 = vmatpush1.msra.mxu0 0.0
      %2627 = vmatprep.subr.mxu0 0.0
      %2628 = vmatpush1.msra.mxu0 0.0
      %2629 = vmatprep.subr.mxu0 0.0
      %2630 = vmatpush1.msra.mxu0 0.0
      %2631 = vmatprep.subr.mxu0 0.0
      %2632 = vmatpush1.msra.mxu0 0.0
      %2633 = vmatprep.subr.mxu0 0.0
      %2634 = vmatpush1.msra.mxu0 0.0
      %2635 = vmatprep.subr.mxu0 0.0
      %2636 = vmatpush1.msra.mxu0 0.0
      %2637 = vmatprep.subr.mxu0 0.0
      %2638 = vmatpush1.msra.mxu0 0.0
      %2639 = vmatprep.subr.mxu0 0.0
      %2640 = vmatpush1.msra.mxu0 0.0
      %2641 = vmatprep.subr.mxu0 %v2489
      %2642 = vmatpush1.msra.mxu0 %v2488
      %2643 = vmatprep.subr.mxu0 %v2487
      %2644 = vmatpush1.msra.mxu0 %v2486
      %2645 = vmatprep.subr.mxu0 %v2485
      %2646 = vmatpush1.msra.mxu0 %v2484
      %2647 = vmatprep.subr.mxu0 %v2483
      %2648 = vmatpush1.msra.mxu0 %v2482
      %2649 = vmatprep.subr.mxu0 0.0
      %2650 = vmatpush2.msra.mxu0 0.0
      %2651 = vmatprep.subr.mxu0 0.0
      %2652 = vmatpush2.msra.mxu0 0.0
      %2653 = vmatprep.subr.mxu0 0.0
      %2654 = vmatpush2.msra.mxu0 0.0
      %2655 = vmatprep.subr.mxu0 0.0
      %2656 = vmatpush2.msra.mxu0 0.0
      %2657 = vmatprep.subr.mxu0 0.0
      %2658 = vmatpush2.msra.mxu0 0.0
      %2659 = vmatprep.subr.mxu0 0.0
      %2660 = vmatpush2.msra.mxu0 0.0
      %2661 = vmatprep.subr.mxu0 0.0
      %2662 = vmatpush2.msra.mxu0 0.0
      %2663 = vmatprep.subr.mxu0 0.0
      %2664 = vmatpush2.msra.mxu0 0.0
      %2665 = vmatprep.subr.mxu0 0.0
      %2666 = vmatpush2.msra.mxu0 0.0
      %2667 = vmatprep.subr.mxu0 0.0
      %2668 = vmatpush2.msra.mxu0 0.0
      %2669 = vmatprep.subr.mxu0 0.0
      %2670 = vmatpush2.msra.mxu0 0.0
      %2671 = vmatprep.subr.mxu0 0.0
      %2672 = vmatpush2.msra.mxu0 0.0
      %2673 = vmatprep.subr.mxu0 0.0
      %2674 = vmatpush2.msra.mxu0 0.0
      %2675 = vmatprep.subr.mxu0 0.0
      %2676 = vmatpush2.msra.mxu0 0.0
      %2677 = vmatprep.subr.mxu0 0.0
      %2678 = vmatpush2.msra.mxu0 0.0
      %2679 = vmatprep.subr.mxu0 0.0
      %2680 = vmatpush2.msra.mxu0 0.0
      %2681 = vmatprep.mubr.f32.mxu0 0.0
      %2682 = vmatmul.mubr.f32.gmra.mxu0 %v2612
      %v2683 = vpop.f32.mrf.mxu0
      %v2684 = vadd.f32 %v2601, %v2683
      %v2685 = vpop.f32.mrf.mxu0
      %v2686 = vadd.f32 %v2603, %v2685
      %2687 = vmatprep.mubr.f32.mxu0 0.0
      %2688 = vmatmul.mubr.f32.gmra.mxu0 %v2615
      %v2689 = vpop.f32.mrf.mxu0
      %v2690 = vadd.f32 %v2607, %v2689
      %v2691 = vpop.f32.mrf.mxu0
      %v2692 = vadd.f32 %v2609, %v2691
      %2693 = vdwg.mxu0
      %2694 = vrot.lane.b32.xlu0 %v2450, 15
      %v2695 = vpop.permute.xlu0 %2694
      %2696 = vrot.lane.b32.xlu0 %v2452, 15
      %v2697 = vpop.permute.xlu0 %2696
      %2698 = vrot.lane.b32.xlu0 %v2454, 15
      %v2699 = vpop.permute.xlu0 %2698
      %2700 = vrot.lane.b32.xlu0 %v2456, 15
      %v2701 = vpop.permute.xlu0 %2700
      %2702 = vrot.lane.b32.xlu0 %v2451, 15
      %v2703 = vpop.permute.xlu0 %2702
      %2704 = vrot.lane.b32.xlu0 %v2453, 15
      %v2705 = vpop.permute.xlu0 %2704
      %2706 = vrot.lane.b32.xlu0 %v2455, 15
      %v2707 = vpop.permute.xlu0 %2706
      %2708 = vrot.lane.b32.xlu0 %v2457, 15
      %v2709 = vpop.permute.xlu0 %2708
      %v2710 = vsel %vm457, %v2695, %v2703
      %v2711 = vsel %vm457, %v2697, %v2705
      %v2712 = vsel %vm457, %v2699, %v2707
      %v2713 = vsel %vm457, %v2701, %v2709
      %v2714 = vsel %vm457, %v2703, %v2695
      %v2715 = vsel %vm457, %v2705, %v2697
      %v2716 = vsel %vm457, %v2707, %v2699
      %v2717 = vsel %vm457, %v2709, %v2701
      %v2718 = vsel %vm466, %v2714, 0.0
      %v2719 = vsel %vm467, %v2710, 0.0
      %v2720 = vsel %vm466, %v2715, 0.0
      %v2721 = vsel %vm467, %v2711, 0.0
      %v2722 = vsel %vm466, %v2716, 0.0
      %v2723 = vsel %vm467, %v2712, 0.0
      %v2724 = vsel %vm466, %v2717, 0.0
      %v2725 = vsel %vm467, %v2713, 0.0
      %s2726 = scalar_lea.vmem %s3, 32
      %v2727 = vld [vmem:[%s2726] sm:$0xff]
      %v2728 = vld [vmem:[%s2726 + $0x8] sm:$0xff]
      %v2730 = vsel %vm2527, %v2727, 0
      %v2733 = vsel %vm2527, %v2728, 0
      %2735 = vmatprep.subr.mxu0 0.0
      %2736 = vmatpush1.msra.mxu0 0.0
      %2737 = vmatprep.subr.mxu0 0.0
      %2738 = vmatpush1.msra.mxu0 0.0
      %2739 = vmatprep.subr.mxu0 0.0
      %2740 = vmatpush1.msra.mxu0 0.0
      %2741 = vmatprep.subr.mxu0 0.0
      %2742 = vmatpush1.msra.mxu0 0.0
      %2743 = vmatprep.subr.mxu0 0.0
      %2744 = vmatpush1.msra.mxu0 0.0
      %2745 = vmatprep.subr.mxu0 0.0
      %2746 = vmatpush1.msra.mxu0 0.0
      %2747 = vmatprep.subr.mxu0 0.0
      %2748 = vmatpush1.msra.mxu0 0.0
      %2749 = vmatprep.subr.mxu0 0.0
      %2750 = vmatpush1.msra.mxu0 0.0
      %2751 = vmatprep.subr.mxu0 0.0
      %2752 = vmatpush1.msra.mxu0 0.0
      %2753 = vmatprep.subr.mxu0 0.0
      %2754 = vmatpush1.msra.mxu0 0.0
      %2755 = vmatprep.subr.mxu0 0.0
      %2756 = vmatpush1.msra.mxu0 0.0
      %2757 = vmatprep.subr.mxu0 0.0
      %2758 = vmatpush1.msra.mxu0 0.0
      %2759 = vmatprep.subr.mxu0 %v2725
      %2760 = vmatpush1.msra.mxu0 %v2724
      %2761 = vmatprep.subr.mxu0 %v2723
      %2762 = vmatpush1.msra.mxu0 %v2722
      %2763 = vmatprep.subr.mxu0 %v2721
      %2764 = vmatpush1.msra.mxu0 %v2720
      %2765 = vmatprep.subr.mxu0 %v2719
      %2766 = vmatpush1.msra.mxu0 %v2718
      %2767 = vmatprep.subr.mxu0 0.0
      %2768 = vmatpush2.msra.mxu0 0.0
      %2769 = vmatprep.subr.mxu0 0.0
      %2770 = vmatpush2.msra.mxu0 0.0
      %2771 = vmatprep.subr.mxu0 0.0
      %2772 = vmatpush2.msra.mxu0 0.0
      %2773 = vmatprep.subr.mxu0 0.0
      %2774 = vmatpush2.msra.mxu0 0.0
      %2775 = vmatprep.subr.mxu0 0.0
      %2776 = vmatpush2.msra.mxu0 0.0
      %2777 = vmatprep.subr.mxu0 0.0
      %2778 = vmatpush2.msra.mxu0 0.0
      %2779 = vmatprep.subr.mxu0 0.0
      %2780 = vmatpush2.msra.mxu0 0.0
      %2781 = vmatprep.subr.mxu0 0.0
      %2782 = vmatpush2.msra.mxu0 0.0
      %2783 = vmatprep.subr.mxu0 0.0
      %2784 = vmatpush2.msra.mxu0 0.0
      %2785 = vmatprep.subr.mxu0 0.0
      %2786 = vmatpush2.msra.mxu0 0.0
      %2787 = vmatprep.subr.mxu0 0.0
      %2788 = vmatpush2.msra.mxu0 0.0
      %2789 = vmatprep.subr.mxu0 0.0
      %2790 = vmatpush2.msra.mxu0 0.0
      %2791 = vmatprep.subr.mxu0 0.0
      %2792 = vmatpush2.msra.mxu0 0.0
      %2793 = vmatprep.subr.mxu0 0.0
      %2794 = vmatpush2.msra.mxu0 0.0
      %2795 = vmatprep.subr.mxu0 0.0
      %2796 = vmatpush2.msra.mxu0 0.0
      %2797 = vmatprep.subr.mxu0 0.0
      %2798 = vmatpush2.msra.mxu0 0.0
      %2799 = vmatprep.mubr.f32.mxu0 0.0
      %2800 = vmatmul.mubr.f32.gmra.mxu0 %v2730
      %v2801 = vpop.f32.mrf.mxu0
      %v2802 = vadd.f32 0.0, %v2801
      %v2803 = vpop.f32.mrf.mxu0
      %v2804 = vadd.f32 0.0, %v2803
      %2805 = vmatprep.mubr.f32.mxu0 0.0
      %2806 = vmatmul.mubr.f32.gmra.mxu0 %v2733
      %v2807 = vpop.f32.mrf.mxu0
      %v2808 = vadd.f32 0.0, %v2807
      %v2809 = vpop.f32.mrf.mxu0
      %v2810 = vadd.f32 0.0, %v2809
      %2811 = vdwg.mxu0
      %v2812 = vadd.f32 %v2684, %v2802
      %v2813 = vadd.f32 %v2686, %v2804
      %v2814 = vadd.f32 %v2690, %v2808
      %v2815 = vadd.f32 %v2692, %v2810
      %2816 = vrot.lane.b32.xlu0 %v2450, 1
      %v2817 = vpop.permute.xlu0 %2816
      %2818 = vrot.lane.b32.xlu0 %v2452, 1
      %v2819 = vpop.permute.xlu0 %2818
      %2820 = vrot.lane.b32.xlu0 %v2454, 1
      %v2821 = vpop.permute.xlu0 %2820
      %2822 = vrot.lane.b32.xlu0 %v2456, 1
      %v2823 = vpop.permute.xlu0 %2822
      %2824 = vrot.lane.b32.xlu0 %v2451, 1
      %v2825 = vpop.permute.xlu0 %2824
      %2826 = vrot.lane.b32.xlu0 %v2453, 1
      %v2827 = vpop.permute.xlu0 %2826
      %2828 = vrot.lane.b32.xlu0 %v2455, 1
      %v2829 = vpop.permute.xlu0 %2828
      %2830 = vrot.lane.b32.xlu0 %v2457, 1
      %v2831 = vpop.permute.xlu0 %2830
      %v2832 = vsel %vm570, %v2817, %v2825
      %v2833 = vsel %vm570, %v2819, %v2827
      %v2834 = vsel %vm570, %v2821, %v2829
      %v2835 = vsel %vm570, %v2823, %v2831
      %v2836 = vsel %vm570, %v2825, %v2817
      %v2837 = vsel %vm570, %v2827, %v2819
      %v2838 = vsel %vm570, %v2829, %v2821
      %v2839 = vsel %vm570, %v2831, %v2823
      %v2840 = vsel %vm575, %v2836, 0.0
      %v2841 = vsel %vm576, %v2832, 0.0
      %v2842 = vsel %vm575, %v2837, 0.0
      %v2843 = vsel %vm576, %v2833, 0.0
      %v2844 = vsel %vm575, %v2838, 0.0
      %v2845 = vsel %vm576, %v2834, 0.0
      %v2846 = vsel %vm575, %v2839, 0.0
      %v2847 = vsel %vm576, %v2835, 0.0
      %s2848 = scalar_lea.vmem %s3, 48
      %v2849 = vld [vmem:[%s2848] sm:$0xff]
      %v2850 = vld [vmem:[%s2848 + $0x8] sm:$0xff]
      %v2852 = vsel %vm2527, %v2849, 0
      %v2855 = vsel %vm2527, %v2850, 0
      %2857 = vmatprep.subr.mxu0 0.0
      %2858 = vmatpush1.msra.mxu0 0.0
      %2859 = vmatprep.subr.mxu0 0.0
      %2860 = vmatpush1.msra.mxu0 0.0
      %2861 = vmatprep.subr.mxu0 0.0
      %2862 = vmatpush1.msra.mxu0 0.0
      %2863 = vmatprep.subr.mxu0 0.0
      %2864 = vmatpush1.msra.mxu0 0.0
      %2865 = vmatprep.subr.mxu0 0.0
      %2866 = vmatpush1.msra.mxu0 0.0
      %2867 = vmatprep.subr.mxu0 0.0
      %2868 = vmatpush1.msra.mxu0 0.0
      %2869 = vmatprep.subr.mxu0 0.0
      %2870 = vmatpush1.msra.mxu0 0.0
      %2871 = vmatprep.subr.mxu0 0.0
      %2872 = vmatpush1.msra.mxu0 0.0
      %2873 = vmatprep.subr.mxu0 0.0
      %2874 = vmatpush1.msra.mxu0 0.0
      %2875 = vmatprep.subr.mxu0 0.0
      %2876 = vmatpush1.msra.mxu0 0.0
      %2877 = vmatprep.subr.mxu0 0.0
      %2878 = vmatpush1.msra.mxu0 0.0
      %2879 = vmatprep.subr.mxu0 0.0
      %2880 = vmatpush1.msra.mxu0 0.0
      %2881 = vmatprep.subr.mxu0 %v2847
      %2882 = vmatpush1.msra.mxu0 %v2846
      %2883 = vmatprep.subr.mxu0 %v2845
      %2884 = vmatpush1.msra.mxu0 %v2844
      %2885 = vmatprep.subr.mxu0 %v2843
      %2886 = vmatpush1.msra.mxu0 %v2842
      %2887 = vmatprep.subr.mxu0 %v2841
      %2888 = vmatpush1.msra.mxu0 %v2840
      %2889 = vmatprep.subr.mxu0 0.0
      %2890 = vmatpush2.msra.mxu0 0.0
      %2891 = vmatprep.subr.mxu0 0.0
      %2892 = vmatpush2.msra.mxu0 0.0
      %2893 = vmatprep.subr.mxu0 0.0
      %2894 = vmatpush2.msra.mxu0 0.0
      %2895 = vmatprep.subr.mxu0 0.0
      %2896 = vmatpush2.msra.mxu0 0.0
      %2897 = vmatprep.subr.mxu0 0.0
      %2898 = vmatpush2.msra.mxu0 0.0
      %2899 = vmatprep.subr.mxu0 0.0
      %2900 = vmatpush2.msra.mxu0 0.0
      %2901 = vmatprep.subr.mxu0 0.0
      %2902 = vmatpush2.msra.mxu0 0.0
      %2903 = vmatprep.subr.mxu0 0.0
      %2904 = vmatpush2.msra.mxu0 0.0
      %2905 = vmatprep.subr.mxu0 0.0
      %2906 = vmatpush2.msra.mxu0 0.0
      %2907 = vmatprep.subr.mxu0 0.0
      %2908 = vmatpush2.msra.mxu0 0.0
      %2909 = vmatprep.subr.mxu0 0.0
      %2910 = vmatpush2.msra.mxu0 0.0
      %2911 = vmatprep.subr.mxu0 0.0
      %2912 = vmatpush2.msra.mxu0 0.0
      %2913 = vmatprep.subr.mxu0 0.0
      %2914 = vmatpush2.msra.mxu0 0.0
      %2915 = vmatprep.subr.mxu0 0.0
      %2916 = vmatpush2.msra.mxu0 0.0
      %2917 = vmatprep.subr.mxu0 0.0
      %2918 = vmatpush2.msra.mxu0 0.0
      %2919 = vmatprep.subr.mxu0 0.0
      %2920 = vmatpush2.msra.mxu0 0.0
      %2921 = vmatprep.mubr.f32.mxu0 0.0
      %2922 = vmatmul.mubr.f32.gmra.mxu0 %v2852
      %v2923 = vpop.f32.mrf.mxu0
      %v2924 = vadd.f32 0.0, %v2923
      %v2925 = vpop.f32.mrf.mxu0
      %v2926 = vadd.f32 0.0, %v2925
      %2927 = vmatprep.mubr.f32.mxu0 0.0
      %2928 = vmatmul.mubr.f32.gmra.mxu0 %v2855
      %v2929 = vpop.f32.mrf.mxu0
      %v2930 = vadd.f32 0.0, %v2929
      %v2931 = vpop.f32.mrf.mxu0
      %v2932 = vadd.f32 0.0, %v2931
      %2933 = vdwg.mxu0
      %v2934 = vadd.f32 %v2812, %v2924
      %v2935 = vadd.f32 %v2813, %v2926
      %v2936 = vadd.f32 %v2814, %v2930
      %v2937 = vadd.f32 %v2815, %v2932
      %s2938 = scalar_lea.vmem %s3, 64
      %v2939 = vld [vmem:[%s2938] sm:$0xff]
      %v2940 = vld [vmem:[%s2938 + $0x8] sm:$0xff]
      %v2942 = vsel %vm2527, %v2939, 0
      %v2945 = vsel %vm2527, %v2940, 0
      %2947 = vmatprep.subr.mxu0 0.0
      %2948 = vmatpush1.msra.mxu0 0.0
      %2949 = vmatprep.subr.mxu0 0.0
      %2950 = vmatpush1.msra.mxu0 0.0
      %2951 = vmatprep.subr.mxu0 0.0
      %2952 = vmatpush1.msra.mxu0 0.0
      %2953 = vmatprep.subr.mxu0 0.0
      %2954 = vmatpush1.msra.mxu0 0.0
      %2955 = vmatprep.subr.mxu0 0.0
      %2956 = vmatpush1.msra.mxu0 0.0
      %2957 = vmatprep.subr.mxu0 0.0
      %2958 = vmatpush1.msra.mxu0 0.0
      %2959 = vmatprep.subr.mxu0 0.0
      %2960 = vmatpush1.msra.mxu0 0.0
      %2961 = vmatprep.subr.mxu0 0.0
      %2962 = vmatpush1.msra.mxu0 0.0
      %2963 = vmatprep.subr.mxu0 0.0
      %2964 = vmatpush1.msra.mxu0 0.0
      %2965 = vmatprep.subr.mxu0 0.0
      %2966 = vmatpush1.msra.mxu0 0.0
      %2967 = vmatprep.subr.mxu0 0.0
      %2968 = vmatpush1.msra.mxu0 0.0
      %2969 = vmatprep.subr.mxu0 0.0
      %2970 = vmatpush1.msra.mxu0 0.0
      %2971 = vmatprep.subr.mxu0 %v2457
      %2972 = vmatpush1.msra.mxu0 %v2456
      %2973 = vmatprep.subr.mxu0 %v2455
      %2974 = vmatpush1.msra.mxu0 %v2454
      %2975 = vmatprep.subr.mxu0 %v2453
      %2976 = vmatpush1.msra.mxu0 %v2452
      %2977 = vmatprep.subr.mxu0 %v2451
      %2978 = vmatpush1.msra.mxu0 %v2450
      %2979 = vmatprep.subr.mxu0 0.0
      %2980 = vmatpush2.msra.mxu0 0.0
      %2981 = vmatprep.subr.mxu0 0.0
      %2982 = vmatpush2.msra.mxu0 0.0
      %2983 = vmatprep.subr.mxu0 0.0
      %2984 = vmatpush2.msra.mxu0 0.0
      %2985 = vmatprep.subr.mxu0 0.0
      %2986 = vmatpush2.msra.mxu0 0.0
      %2987 = vmatprep.subr.mxu0 0.0
      %2988 = vmatpush2.msra.mxu0 0.0
      %2989 = vmatprep.subr.mxu0 0.0
      %2990 = vmatpush2.msra.mxu0 0.0
      %2991 = vmatprep.subr.mxu0 0.0
      %2992 = vmatpush2.msra.mxu0 0.0
      %2993 = vmatprep.subr.mxu0 0.0
      %2994 = vmatpush2.msra.mxu0 0.0
      %2995 = vmatprep.subr.mxu0 0.0
      %2996 = vmatpush2.msra.mxu0 0.0
      %2997 = vmatprep.subr.mxu0 0.0
      %2998 = vmatpush2.msra.mxu0 0.0
      %2999 = vmatprep.subr.mxu0 0.0
      %3000 = vmatpush2.msra.mxu0 0.0
      %3001 = vmatprep.subr.mxu0 0.0
      %3002 = vmatpush2.msra.mxu0 0.0
      %3003 = vmatprep.subr.mxu0 0.0
      %3004 = vmatpush2.msra.mxu0 0.0
      %3005 = vmatprep.subr.mxu0 0.0
      %3006 = vmatpush2.msra.mxu0 0.0
      %3007 = vmatprep.subr.mxu0 0.0
      %3008 = vmatpush2.msra.mxu0 0.0
      %3009 = vmatprep.subr.mxu0 0.0
      %3010 = vmatpush2.msra.mxu0 0.0
      %3011 = vmatprep.mubr.f32.mxu0 0.0
      %3012 = vmatmul.mubr.f32.gmra.mxu0 %v2942
      %v3013 = vpop.f32.mrf.mxu0
      %v3014 = vadd.f32 0.0, %v3013
      %v3015 = vpop.f32.mrf.mxu0
      %v3016 = vadd.f32 0.0, %v3015
      %3017 = vmatprep.mubr.f32.mxu0 0.0
      %3018 = vmatmul.mubr.f32.gmra.mxu0 %v2945
      %v3019 = vpop.f32.mrf.mxu0
      %v3020 = vadd.f32 0.0, %v3019
      %v3021 = vpop.f32.mrf.mxu0
      %v3022 = vadd.f32 0.0, %v3021
      %3023 = vdwg.mxu0
      %v3024 = vadd.f32 %v2934, %v3014
      %v3025 = vadd.f32 %v2935, %v3016
      %v3026 = vadd.f32 %v2936, %v3020
      %v3027 = vadd.f32 %v2937, %v3022
      %3028 = vrot.lane.b32.xlu0 %v2450, 127
      %v3029 = vpop.permute.xlu0 %3028
      %3030 = vrot.lane.b32.xlu0 %v2452, 127
      %v3031 = vpop.permute.xlu0 %3030
      %3032 = vrot.lane.b32.xlu0 %v2454, 127
      %v3033 = vpop.permute.xlu0 %3032
      %3034 = vrot.lane.b32.xlu0 %v2456, 127
      %v3035 = vpop.permute.xlu0 %3034
      %3036 = vrot.lane.b32.xlu0 %v2451, 127
      %v3037 = vpop.permute.xlu0 %3036
      %3038 = vrot.lane.b32.xlu0 %v2453, 127
      %v3039 = vpop.permute.xlu0 %3038
      %3040 = vrot.lane.b32.xlu0 %v2455, 127
      %v3041 = vpop.permute.xlu0 %3040
      %3042 = vrot.lane.b32.xlu0 %v2457, 127
      %v3043 = vpop.permute.xlu0 %3042
      %v3044 = vsel %vm773, %v3029, %v3037
      %v3045 = vsel %vm773, %v3031, %v3039
      %v3046 = vsel %vm773, %v3033, %v3041
      %v3047 = vsel %vm773, %v3035, %v3043
      %v3048 = vsel %vm773, %v3037, %v3029
      %v3049 = vsel %vm773, %v3039, %v3031
      %v3050 = vsel %vm773, %v3041, %v3033
      %v3051 = vsel %vm773, %v3043, %v3035
      %v3052 = vsel %vm778, %v3044, 0.0
      %v3053 = vsel %vm779, %v3048, 0.0
      %v3054 = vsel %vm778, %v3045, 0.0
      %v3055 = vsel %vm779, %v3049, 0.0
      %v3056 = vsel %vm778, %v3046, 0.0
      %v3057 = vsel %vm779, %v3050, 0.0
      %v3058 = vsel %vm778, %v3047, 0.0
      %v3059 = vsel %vm779, %v3051, 0.0
      %s3060 = scalar_lea.vmem %s3, 80
      %v3061 = vld [vmem:[%s3060] sm:$0xff]
      %v3062 = vld [vmem:[%s3060 + $0x8] sm:$0xff]
      %v3064 = vsel %vm2527, %v3061, 0
      %v3067 = vsel %vm2527, %v3062, 0
      %3069 = vmatprep.subr.mxu0 0.0
      %3070 = vmatpush1.msra.mxu0 0.0
      %3071 = vmatprep.subr.mxu0 0.0
      %3072 = vmatpush1.msra.mxu0 0.0
      %3073 = vmatprep.subr.mxu0 0.0
      %3074 = vmatpush1.msra.mxu0 0.0
      %3075 = vmatprep.subr.mxu0 0.0
      %3076 = vmatpush1.msra.mxu0 0.0
      %3077 = vmatprep.subr.mxu0 0.0
      %3078 = vmatpush1.msra.mxu0 0.0
      %3079 = vmatprep.subr.mxu0 0.0
      %3080 = vmatpush1.msra.mxu0 0.0
      %3081 = vmatprep.subr.mxu0 0.0
      %3082 = vmatpush1.msra.mxu0 0.0
      %3083 = vmatprep.subr.mxu0 0.0
      %3084 = vmatpush1.msra.mxu0 0.0
      %3085 = vmatprep.subr.mxu0 0.0
      %3086 = vmatpush1.msra.mxu0 0.0
      %3087 = vmatprep.subr.mxu0 0.0
      %3088 = vmatpush1.msra.mxu0 0.0
      %3089 = vmatprep.subr.mxu0 0.0
      %3090 = vmatpush1.msra.mxu0 0.0
      %3091 = vmatprep.subr.mxu0 0.0
      %3092 = vmatpush1.msra.mxu0 0.0
      %3093 = vmatprep.subr.mxu0 %v3059
      %3094 = vmatpush1.msra.mxu0 %v3058
      %3095 = vmatprep.subr.mxu0 %v3057
      %3096 = vmatpush1.msra.mxu0 %v3056
      %3097 = vmatprep.subr.mxu0 %v3055
      %3098 = vmatpush1.msra.mxu0 %v3054
      %3099 = vmatprep.subr.mxu0 %v3053
      %3100 = vmatpush1.msra.mxu0 %v3052
      %3101 = vmatprep.subr.mxu0 0.0
      %3102 = vmatpush2.msra.mxu0 0.0
      %3103 = vmatprep.subr.mxu0 0.0
      %3104 = vmatpush2.msra.mxu0 0.0
      %3105 = vmatprep.subr.mxu0 0.0
      %3106 = vmatpush2.msra.mxu0 0.0
      %3107 = vmatprep.subr.mxu0 0.0
      %3108 = vmatpush2.msra.mxu0 0.0
      %3109 = vmatprep.subr.mxu0 0.0
      %3110 = vmatpush2.msra.mxu0 0.0
      %3111 = vmatprep.subr.mxu0 0.0
      %3112 = vmatpush2.msra.mxu0 0.0
      %3113 = vmatprep.subr.mxu0 0.0
      %3114 = vmatpush2.msra.mxu0 0.0
      %3115 = vmatprep.subr.mxu0 0.0
      %3116 = vmatpush2.msra.mxu0 0.0
      %3117 = vmatprep.subr.mxu0 0.0
      %3118 = vmatpush2.msra.mxu0 0.0
      %3119 = vmatprep.subr.mxu0 0.0
      %3120 = vmatpush2.msra.mxu0 0.0
      %3121 = vmatprep.subr.mxu0 0.0
      %3122 = vmatpush2.msra.mxu0 0.0
      %3123 = vmatprep.subr.mxu0 0.0
      %3124 = vmatpush2.msra.mxu0 0.0
      %3125 = vmatprep.subr.mxu0 0.0
      %3126 = vmatpush2.msra.mxu0 0.0
      %3127 = vmatprep.subr.mxu0 0.0
      %3128 = vmatpush2.msra.mxu0 0.0
      %3129 = vmatprep.subr.mxu0 0.0
      %3130 = vmatpush2.msra.mxu0 0.0
      %3131 = vmatprep.subr.mxu0 0.0
      %3132 = vmatpush2.msra.mxu0 0.0
      %3133 = vmatprep.mubr.f32.mxu0 0.0
      %3134 = vmatmul.mubr.f32.gmra.mxu0 %v3064
      %v3135 = vpop.f32.mrf.mxu0
      %v3136 = vadd.f32 0.0, %v3135
      %v3137 = vpop.f32.mrf.mxu0
      %v3138 = vadd.f32 0.0, %v3137
      %3139 = vmatprep.mubr.f32.mxu0 0.0
      %3140 = vmatmul.mubr.f32.gmra.mxu0 %v3067
      %v3141 = vpop.f32.mrf.mxu0
      %v3142 = vadd.f32 0.0, %v3141
      %v3143 = vpop.f32.mrf.mxu0
      %v3144 = vadd.f32 0.0, %v3143
      %3145 = vdwg.mxu0
      %v3146 = vadd.f32 %v3024, %v3136
      %v3147 = vadd.f32 %v3025, %v3138
      %v3148 = vadd.f32 %v3026, %v3142
      %v3149 = vadd.f32 %v3027, %v3144
      %3150 = vrot.lane.b32.xlu0 %v2450, 113
      %v3151 = vpop.permute.xlu0 %3150
      %3152 = vrot.lane.b32.xlu0 %v2452, 113
      %v3153 = vpop.permute.xlu0 %3152
      %3154 = vrot.lane.b32.xlu0 %v2454, 113
      %v3155 = vpop.permute.xlu0 %3154
      %3156 = vrot.lane.b32.xlu0 %v2456, 113
      %v3157 = vpop.permute.xlu0 %3156
      %3158 = vrot.lane.b32.xlu0 %v2451, 113
      %v3159 = vpop.permute.xlu0 %3158
      %3160 = vrot.lane.b32.xlu0 %v2453, 113
      %v3161 = vpop.permute.xlu0 %3160
      %3162 = vrot.lane.b32.xlu0 %v2455, 113
      %v3163 = vpop.permute.xlu0 %3162
      %3164 = vrot.lane.b32.xlu0 %v2457, 113
      %v3165 = vpop.permute.xlu0 %3164
      %v3166 = vsel %vm882, %v3151, %v3159
      %v3167 = vsel %vm882, %v3153, %v3161
      %v3168 = vsel %vm882, %v3155, %v3163
      %v3169 = vsel %vm882, %v3157, %v3165
      %v3170 = vsel %vm882, %v3159, %v3151
      %v3171 = vsel %vm882, %v3161, %v3153
      %v3172 = vsel %vm882, %v3163, %v3155
      %v3173 = vsel %vm882, %v3165, %v3157
      %v3174 = vsel %vm891, %v3166, 0.0
      %v3175 = vsel %vm892, %v3170, 0.0
      %v3176 = vsel %vm891, %v3167, 0.0
      %v3177 = vsel %vm892, %v3171, 0.0
      %v3178 = vsel %vm891, %v3168, 0.0
      %v3179 = vsel %vm892, %v3172, 0.0
      %v3180 = vsel %vm891, %v3169, 0.0
      %v3181 = vsel %vm892, %v3173, 0.0
      %s3182 = scalar_lea.vmem %s3, 96
      %v3183 = vld [vmem:[%s3182] sm:$0xff]
      %v3184 = vld [vmem:[%s3182 + $0x8] sm:$0xff]
      %v3186 = vsel %vm2527, %v3183, 0
      %v3189 = vsel %vm2527, %v3184, 0
      %3191 = vmatprep.subr.mxu0 0.0
      %3192 = vmatpush1.msra.mxu0 0.0
      %3193 = vmatprep.subr.mxu0 0.0
      %3194 = vmatpush1.msra.mxu0 0.0
      %3195 = vmatprep.subr.mxu0 0.0
      %3196 = vmatpush1.msra.mxu0 0.0
      %3197 = vmatprep.subr.mxu0 0.0
      %3198 = vmatpush1.msra.mxu0 0.0
      %3199 = vmatprep.subr.mxu0 0.0
      %3200 = vmatpush1.msra.mxu0 0.0
      %3201 = vmatprep.subr.mxu0 0.0
      %3202 = vmatpush1.msra.mxu0 0.0
      %3203 = vmatprep.subr.mxu0 0.0
      %3204 = vmatpush1.msra.mxu0 0.0
      %3205 = vmatprep.subr.mxu0 0.0
      %3206 = vmatpush1.msra.mxu0 0.0
      %3207 = vmatprep.subr.mxu0 0.0
      %3208 = vmatpush1.msra.mxu0 0.0
      %3209 = vmatprep.subr.mxu0 0.0
      %3210 = vmatpush1.msra.mxu0 0.0
      %3211 = vmatprep.subr.mxu0 0.0
      %3212 = vmatpush1.msra.mxu0 0.0
      %3213 = vmatprep.subr.mxu0 0.0
      %3214 = vmatpush1.msra.mxu0 0.0
      %3215 = vmatprep.subr.mxu0 %v3181
      %3216 = vmatpush1.msra.mxu0 %v3180
      %3217 = vmatprep.subr.mxu0 %v3179
      %3218 = vmatpush1.msra.mxu0 %v3178
      %3219 = vmatprep.subr.mxu0 %v3177
      %3220 = vmatpush1.msra.mxu0 %v3176
      %3221 = vmatprep.subr.mxu0 %v3175
      %3222 = vmatpush1.msra.mxu0 %v3174
      %3223 = vmatprep.subr.mxu0 0.0
      %3224 = vmatpush2.msra.mxu0 0.0
      %3225 = vmatprep.subr.mxu0 0.0
      %3226 = vmatpush2.msra.mxu0 0.0
      %3227 = vmatprep.subr.mxu0 0.0
      %3228 = vmatpush2.msra.mxu0 0.0
      %3229 = vmatprep.subr.mxu0 0.0
      %3230 = vmatpush2.msra.mxu0 0.0
      %3231 = vmatprep.subr.mxu0 0.0
      %3232 = vmatpush2.msra.mxu0 0.0
      %3233 = vmatprep.subr.mxu0 0.0
      %3234 = vmatpush2.msra.mxu0 0.0
      %3235 = vmatprep.subr.mxu0 0.0
      %3236 = vmatpush2.msra.mxu0 0.0
      %3237 = vmatprep.subr.mxu0 0.0
      %3238 = vmatpush2.msra.mxu0 0.0
      %3239 = vmatprep.subr.mxu0 0.0
      %3240 = vmatpush2.msra.mxu0 0.0
      %3241 = vmatprep.subr.mxu0 0.0
      %3242 = vmatpush2.msra.mxu0 0.0
      %3243 = vmatprep.subr.mxu0 0.0
      %3244 = vmatpush2.msra.mxu0 0.0
      %3245 = vmatprep.subr.mxu0 0.0
      %3246 = vmatpush2.msra.mxu0 0.0
      %3247 = vmatprep.subr.mxu0 0.0
      %3248 = vmatpush2.msra.mxu0 0.0
      %3249 = vmatprep.subr.mxu0 0.0
      %3250 = vmatpush2.msra.mxu0 0.0
      %3251 = vmatprep.subr.mxu0 0.0
      %3252 = vmatpush2.msra.mxu0 0.0
      %3253 = vmatprep.subr.mxu0 0.0
      %3254 = vmatpush2.msra.mxu0 0.0
      %3255 = vmatprep.mubr.f32.mxu0 0.0
      %3256 = vmatmul.mubr.f32.gmra.mxu0 %v3186
      %v3257 = vpop.f32.mrf.mxu0
      %v3258 = vadd.f32 0.0, %v3257
      %v3259 = vpop.f32.mrf.mxu0
      %v3260 = vadd.f32 0.0, %v3259
      %3261 = vmatprep.mubr.f32.mxu0 0.0
      %3262 = vmatmul.mubr.f32.gmra.mxu0 %v3189
      %v3263 = vpop.f32.mrf.mxu0
      %v3264 = vadd.f32 0.0, %v3263
      %v3265 = vpop.f32.mrf.mxu0
      %v3266 = vadd.f32 0.0, %v3265
      %3267 = vdwg.mxu0
      %v3268 = vadd.f32 %v3146, %v3258
      %v3269 = vadd.f32 %v3147, %v3260
      %v3270 = vadd.f32 %v3148, %v3264
      %v3271 = vadd.f32 %v3149, %v3266
      %3272 = vrot.lane.b32.xlu0 %v2450, 112
      %v3273 = vpop.permute.xlu0 %3272
      %3274 = vrot.lane.b32.xlu0 %v2452, 112
      %v3275 = vpop.permute.xlu0 %3274
      %3276 = vrot.lane.b32.xlu0 %v2454, 112
      %v3277 = vpop.permute.xlu0 %3276
      %3278 = vrot.lane.b32.xlu0 %v2456, 112
      %v3279 = vpop.permute.xlu0 %3278
      %3280 = vrot.lane.b32.xlu0 %v2451, 112
      %v3281 = vpop.permute.xlu0 %3280
      %3282 = vrot.lane.b32.xlu0 %v2453, 112
      %v3283 = vpop.permute.xlu0 %3282
      %3284 = vrot.lane.b32.xlu0 %v2455, 112
      %v3285 = vpop.permute.xlu0 %3284
      %3286 = vrot.lane.b32.xlu0 %v2457, 112
      %v3287 = vpop.permute.xlu0 %3286
      %v3288 = vsel %vm995, %v3273, %v3281
      %v3289 = vsel %vm995, %v3275, %v3283
      %v3290 = vsel %vm995, %v3277, %v3285
      %v3291 = vsel %vm995, %v3279, %v3287
      %v3292 = vsel %vm995, %v3281, %v3273
      %v3293 = vsel %vm995, %v3283, %v3275
      %v3294 = vsel %vm995, %v3285, %v3277
      %v3295 = vsel %vm995, %v3287, %v3279
      %v3296 = vsel %vm1000, %v3288, 0.0
      %v3297 = vsel %vm1001, %v3292, 0.0
      %v3298 = vsel %vm1000, %v3289, 0.0
      %v3299 = vsel %vm1001, %v3293, 0.0
      %v3300 = vsel %vm1000, %v3290, 0.0
      %v3301 = vsel %vm1001, %v3294, 0.0
      %v3302 = vsel %vm1000, %v3291, 0.0
      %v3303 = vsel %vm1001, %v3295, 0.0
      %s3304 = scalar_lea.vmem %s3, 112
      %v3305 = vld [vmem:[%s3304] sm:$0xff]
      %v3306 = vld [vmem:[%s3304 + $0x8] sm:$0xff]
      %v3308 = vsel %vm2527, %v3305, 0
      %v3311 = vsel %vm2527, %v3306, 0
      %3313 = vmatprep.subr.mxu0 0.0
      %3314 = vmatpush1.msra.mxu0 0.0
      %3315 = vmatprep.subr.mxu0 0.0
      %3316 = vmatpush1.msra.mxu0 0.0
      %3317 = vmatprep.subr.mxu0 0.0
      %3318 = vmatpush1.msra.mxu0 0.0
      %3319 = vmatprep.subr.mxu0 0.0
      %3320 = vmatpush1.msra.mxu0 0.0
      %3321 = vmatprep.subr.mxu0 0.0
      %3322 = vmatpush1.msra.mxu0 0.0
      %3323 = vmatprep.subr.mxu0 0.0
      %3324 = vmatpush1.msra.mxu0 0.0
      %3325 = vmatprep.subr.mxu0 0.0
      %3326 = vmatpush1.msra.mxu0 0.0
      %3327 = vmatprep.subr.mxu0 0.0
      %3328 = vmatpush1.msra.mxu0 0.0
      %3329 = vmatprep.subr.mxu0 0.0
      %3330 = vmatpush1.msra.mxu0 0.0
      %3331 = vmatprep.subr.mxu0 0.0
      %3332 = vmatpush1.msra.mxu0 0.0
      %3333 = vmatprep.subr.mxu0 0.0
      %3334 = vmatpush1.msra.mxu0 0.0
      %3335 = vmatprep.subr.mxu0 0.0
      %3336 = vmatpush1.msra.mxu0 0.0
      %3337 = vmatprep.subr.mxu0 %v3303
      %3338 = vmatpush1.msra.mxu0 %v3302
      %3339 = vmatprep.subr.mxu0 %v3301
      %3340 = vmatpush1.msra.mxu0 %v3300
      %3341 = vmatprep.subr.mxu0 %v3299
      %3342 = vmatpush1.msra.mxu0 %v3298
      %3343 = vmatprep.subr.mxu0 %v3297
      %3344 = vmatpush1.msra.mxu0 %v3296
      %3345 = vmatprep.subr.mxu0 0.0
      %3346 = vmatpush2.msra.mxu0 0.0
      %3347 = vmatprep.subr.mxu0 0.0
      %3348 = vmatpush2.msra.mxu0 0.0
      %3349 = vmatprep.subr.mxu0 0.0
      %3350 = vmatpush2.msra.mxu0 0.0
      %3351 = vmatprep.subr.mxu0 0.0
      %3352 = vmatpush2.msra.mxu0 0.0
      %3353 = vmatprep.subr.mxu0 0.0
      %3354 = vmatpush2.msra.mxu0 0.0
      %3355 = vmatprep.subr.mxu0 0.0
      %3356 = vmatpush2.msra.mxu0 0.0
      %3357 = vmatprep.subr.mxu0 0.0
      %3358 = vmatpush2.msra.mxu0 0.0
      %3359 = vmatprep.subr.mxu0 0.0
      %3360 = vmatpush2.msra.mxu0 0.0
      %3361 = vmatprep.subr.mxu0 0.0
      %3362 = vmatpush2.msra.mxu0 0.0
      %3363 = vmatprep.subr.mxu0 0.0
      %3364 = vmatpush2.msra.mxu0 0.0
      %3365 = vmatprep.subr.mxu0 0.0
      %3366 = vmatpush2.msra.mxu0 0.0
      %3367 = vmatprep.subr.mxu0 0.0
      %3368 = vmatpush2.msra.mxu0 0.0
      %3369 = vmatprep.subr.mxu0 0.0
      %3370 = vmatpush2.msra.mxu0 0.0
      %3371 = vmatprep.subr.mxu0 0.0
      %3372 = vmatpush2.msra.mxu0 0.0
      %3373 = vmatprep.subr.mxu0 0.0
      %3374 = vmatpush2.msra.mxu0 0.0
      %3375 = vmatprep.subr.mxu0 0.0
      %3376 = vmatpush2.msra.mxu0 0.0
      %3377 = vmatprep.mubr.f32.mxu0 0.0
      %3378 = vmatmul.mubr.f32.gmra.mxu0 %v3308
      %v3379 = vpop.f32.mrf.mxu0
      %v3380 = vadd.f32 0.0, %v3379
      %v3381 = vpop.f32.mrf.mxu0
      %v3382 = vadd.f32 0.0, %v3381
      %3383 = vmatprep.mubr.f32.mxu0 0.0
      %3384 = vmatmul.mubr.f32.gmra.mxu0 %v3311
      %v3385 = vpop.f32.mrf.mxu0
      %v3386 = vadd.f32 0.0, %v3385
      %v3387 = vpop.f32.mrf.mxu0
      %v3388 = vadd.f32 0.0, %v3387
      %3389 = vdwg.mxu0
      %v3390 = vadd.f32 %v3268, %v3380
      %v3391 = vadd.f32 %v3269, %v3382
      %v3392 = vadd.f32 %v3270, %v3386
      %v3393 = vadd.f32 %v3271, %v3388
      %3394 = vrot.lane.b32.xlu0 %v2450, 111
      %v3395 = vpop.permute.xlu0 %3394
      %3396 = vrot.lane.b32.xlu0 %v2452, 111
      %v3397 = vpop.permute.xlu0 %3396
      %3398 = vrot.lane.b32.xlu0 %v2454, 111
      %v3399 = vpop.permute.xlu0 %3398
      %3400 = vrot.lane.b32.xlu0 %v2456, 111
      %v3401 = vpop.permute.xlu0 %3400
      %3402 = vrot.lane.b32.xlu0 %v2451, 111
      %v3403 = vpop.permute.xlu0 %3402
      %3404 = vrot.lane.b32.xlu0 %v2453, 111
      %v3405 = vpop.permute.xlu0 %3404
      %3406 = vrot.lane.b32.xlu0 %v2455, 111
      %v3407 = vpop.permute.xlu0 %3406
      %3408 = vrot.lane.b32.xlu0 %v2457, 111
      %v3409 = vpop.permute.xlu0 %3408
      %v3410 = vsel %vm1104, %v3395, %v3403
      %v3411 = vsel %vm1104, %v3397, %v3405
      %v3412 = vsel %vm1104, %v3399, %v3407
      %v3413 = vsel %vm1104, %v3401, %v3409
      %v3414 = vsel %vm1104, %v3403, %v3395
      %v3415 = vsel %vm1104, %v3405, %v3397
      %v3416 = vsel %vm1104, %v3407, %v3399
      %v3417 = vsel %vm1104, %v3409, %v3401
      %v3418 = vsel %vm1111, %v3410, 0.0
      %v3419 = vsel %vm1112, %v3414, 0.0
      %v3420 = vsel %vm1111, %v3411, 0.0
      %v3421 = vsel %vm1112, %v3415, 0.0
      %v3422 = vsel %vm1111, %v3412, 0.0
      %v3423 = vsel %vm1112, %v3416, 0.0
      %v3424 = vsel %vm1111, %v3413, 0.0
      %v3425 = vsel %vm1112, %v3417, 0.0
      %s3426 = scalar_lea.vmem %s3, 128
      %v3427 = vld [vmem:[%s3426] sm:$0xff]
      %v3428 = vld [vmem:[%s3426 + $0x8] sm:$0xff]
      %v3430 = vsel %vm2527, %v3427, 0
      %v3433 = vsel %vm2527, %v3428, 0
      %3435 = vmatprep.subr.mxu0 0.0
      %3436 = vmatpush1.msra.mxu0 0.0
      %3437 = vmatprep.subr.mxu0 0.0
      %3438 = vmatpush1.msra.mxu0 0.0
      %3439 = vmatprep.subr.mxu0 0.0
      %3440 = vmatpush1.msra.mxu0 0.0
      %3441 = vmatprep.subr.mxu0 0.0
      %3442 = vmatpush1.msra.mxu0 0.0
      %3443 = vmatprep.subr.mxu0 0.0
      %3444 = vmatpush1.msra.mxu0 0.0
      %3445 = vmatprep.subr.mxu0 0.0
      %3446 = vmatpush1.msra.mxu0 0.0
      %3447 = vmatprep.subr.mxu0 0.0
      %3448 = vmatpush1.msra.mxu0 0.0
      %3449 = vmatprep.subr.mxu0 0.0
      %3450 = vmatpush1.msra.mxu0 0.0
      %3451 = vmatprep.subr.mxu0 0.0
      %3452 = vmatpush1.msra.mxu0 0.0
      %3453 = vmatprep.subr.mxu0 0.0
      %3454 = vmatpush1.msra.mxu0 0.0
      %3455 = vmatprep.subr.mxu0 0.0
      %3456 = vmatpush1.msra.mxu0 0.0
      %3457 = vmatprep.subr.mxu0 0.0
      %3458 = vmatpush1.msra.mxu0 0.0
      %3459 = vmatprep.subr.mxu0 %v3425
      %3460 = vmatpush1.msra.mxu0 %v3424
      %3461 = vmatprep.subr.mxu0 %v3423
      %3462 = vmatpush1.msra.mxu0 %v3422
      %3463 = vmatprep.subr.mxu0 %v3421
      %3464 = vmatpush1.msra.mxu0 %v3420
      %3465 = vmatprep.subr.mxu0 %v3419
      %3466 = vmatpush1.msra.mxu0 %v3418
      %3467 = vmatprep.subr.mxu0 0.0
      %3468 = vmatpush2.msra.mxu0 0.0
      %3469 = vmatprep.subr.mxu0 0.0
      %3470 = vmatpush2.msra.mxu0 0.0
      %3471 = vmatprep.subr.mxu0 0.0
      %3472 = vmatpush2.msra.mxu0 0.0
      %3473 = vmatprep.subr.mxu0 0.0
      %3474 = vmatpush2.msra.mxu0 0.0
      %3475 = vmatprep.subr.mxu0 0.0
      %3476 = vmatpush2.msra.mxu0 0.0
      %3477 = vmatprep.subr.mxu0 0.0
      %3478 = vmatpush2.msra.mxu0 0.0
      %3479 = vmatprep.subr.mxu0 0.0
      %3480 = vmatpush2.msra.mxu0 0.0
      %3481 = vmatprep.subr.mxu0 0.0
      %3482 = vmatpush2.msra.mxu0 0.0
      %3483 = vmatprep.subr.mxu0 0.0
      %3484 = vmatpush2.msra.mxu0 0.0
      %3485 = vmatprep.subr.mxu0 0.0
      %3486 = vmatpush2.msra.mxu0 0.0
      %3487 = vmatprep.subr.mxu0 0.0
      %3488 = vmatpush2.msra.mxu0 0.0
      %3489 = vmatprep.subr.mxu0 0.0
      %3490 = vmatpush2.msra.mxu0 0.0
      %3491 = vmatprep.subr.mxu0 0.0
      %3492 = vmatpush2.msra.mxu0 0.0
      %3493 = vmatprep.subr.mxu0 0.0
      %3494 = vmatpush2.msra.mxu0 0.0
      %3495 = vmatprep.subr.mxu0 0.0
      %3496 = vmatpush2.msra.mxu0 0.0
      %3497 = vmatprep.subr.mxu0 0.0
      %3498 = vmatpush2.msra.mxu0 0.0
      %3499 = vmatprep.mubr.f32.mxu0 0.0
      %3500 = vmatmul.mubr.f32.gmra.mxu0 %v3430
      %v3501 = vpop.f32.mrf.mxu0
      %v3502 = vadd.f32 0.0, %v3501
      %v3503 = vpop.f32.mrf.mxu0
      %v3504 = vadd.f32 0.0, %v3503
      %3505 = vmatprep.mubr.f32.mxu0 0.0
      %3506 = vmatmul.mubr.f32.gmra.mxu0 %v3433
      %v3507 = vpop.f32.mrf.mxu0
      %v3508 = vadd.f32 0.0, %v3507
      %v3509 = vpop.f32.mrf.mxu0
      %v3510 = vadd.f32 0.0, %v3509
      %3511 = vdwg.mxu0
      %v3512 = vadd.f32 %v3390, %v3502
      %v3513 = vadd.f32 %v3391, %v3504
      %v3514 = vadd.f32 %v3392, %v3508
      %v3515 = vadd.f32 %v3393, %v3510
      %v3516 = vadd.f32 %v3512, %v3513
      %3517 = vadd.xlane.f32.xlu0 %v3516
      %v3518 = vpop.xlane.xlu0 %3517
      %v3519 = vadd.f32 %v3514, %v3515
      %3520 = vadd.xlane.f32.xlu0 %v3519
      %v3521 = vpop.xlane.xlu0 %3520
      %v3522 = vmul.f32 %v3518, %v1217
      %v3523 = vmul.f32 %v3521, %v1217
      %v3524 = vsub.f32 %v3512, %v3522
      %v3525 = vsub.f32 %v3513, %v3522
      %v3526 = vsub.f32 %v3514, %v3523
      %v3527 = vsub.f32 %v3515, %v3523
      %v3528 = vmul.f32 %v3524, %v3524
      %v3529 = vmul.f32 %v3525, %v3525
      %v3530 = vmul.f32 %v3526, %v3526
      %v3531 = vmul.f32 %v3527, %v3527
      %v3532 = vadd.f32 %v3528, %v3529
      %3533 = vadd.xlane.f32.xlu0 %v3532
      %v3534 = vpop.xlane.xlu0 %3533
      %v3535 = vadd.f32 %v3530, %v3531
      %3536 = vadd.xlane.f32.xlu0 %v3535
      %v3537 = vpop.xlane.xlu0 %3536
      %v3538 = vmul.f32 %v3534, %v1217
      %v3539 = vmul.f32 %v3537, %v1217
      %v3540 = vadd.f32 %v3538, 1e-05
      %v3541 = vadd.f32 %v3539, 1e-05
      %v3542 = vrsqrt.pop %v3540
      %v3543 = vrsqrt.pop %v3541
      %v3544 = vmul.f32 %v3524, %v3542
      %v3545 = vmul.f32 %v3525, %v3542
      %v3546 = vmul.f32 %v3526, %v3543
      %v3547 = vmul.f32 %v3527, %v3543
      %v3548 = vmax.f32 %v3544, 0.0
      %v3549 = vmax.f32 %v3545, 0.0
      %v3550 = vmax.f32 %v3546, 0.0
      %v3551 = vmax.f32 %v3547, 0.0
      %3552 = vrot.lane.b32.xlu0 %v3548, 17
      %v3553 = vpop.permute.xlu0 %3552
      %3554 = vrot.lane.b32.xlu0 %v3550, 17
      %v3555 = vpop.permute.xlu0 %3554
      %3556 = vrot.lane.b32.xlu0 %v3549, 17
      %v3557 = vpop.permute.xlu0 %3556
      %3558 = vrot.lane.b32.xlu0 %v3551, 17
      %v3559 = vpop.permute.xlu0 %3558
      %v3560 = vsel %vm240, %v3553, %v3557
      %v3561 = vsel %vm240, %v3555, %v3559
      %v3562 = vsel %vm240, %v3557, %v3553
      %v3563 = vsel %vm240, %v3559, %v3555
      %v3564 = vsel %vm251, %v3562, 0.0
      %v3565 = vsel %vm252, %v3560, 0.0
      %v3566 = vsel %vm251, %v3563, 0.0
      %v3567 = vsel %vm252, %v3561, 0.0
      %v3568 = vld [vmem:[%s4] sm:$0x7]
      %3569 = vrot.lane.b32.xlu0 %v3548, 16
      %v3570 = vpop.permute.xlu0 %3569
      %3571 = vrot.lane.b32.xlu0 %v3550, 16
      %v3572 = vpop.permute.xlu0 %3571
      %3573 = vrot.lane.b32.xlu0 %v3549, 16
      %v3574 = vpop.permute.xlu0 %3573
      %3575 = vrot.lane.b32.xlu0 %v3551, 16
      %v3576 = vpop.permute.xlu0 %3575
      %v3577 = vsel %vm261, %v3570, %v3574
      %v3578 = vsel %vm261, %v3572, %v3576
      %v3579 = vsel %vm261, %v3574, %v3570
      %v3580 = vsel %vm261, %v3576, %v3572
      %v3581 = vsel %vm266, %v3579, 0.0
      %v3582 = vsel %vm267, %v3577, 0.0
      %v3583 = vsel %vm266, %v3580, 0.0
      %v3584 = vsel %vm267, %v3578, 0.0
      %s3585 = scalar_lea.vmem %s4, 4
      %v3586 = vld [vmem:[%s3585] sm:$0x7]
      %v3588 = vsel %vm1289, %v3586, 0
      %3590 = vmatprep.subr.mxu0 0.0
      %3591 = vmatpush1.msra.mxu0 0.0
      %3592 = vmatprep.subr.mxu0 0.0
      %3593 = vmatpush1.msra.mxu0 0.0
      %3594 = vmatprep.subr.mxu0 0.0
      %3595 = vmatpush1.msra.mxu0 0.0
      %3596 = vmatprep.subr.mxu0 0.0
      %3597 = vmatpush1.msra.mxu0 0.0
      %3598 = vmatprep.subr.mxu0 0.0
      %3599 = vmatpush1.msra.mxu0 0.0
      %3600 = vmatprep.subr.mxu0 0.0
      %3601 = vmatpush1.msra.mxu0 0.0
      %3602 = vmatprep.subr.mxu0 0.0
      %3603 = vmatpush1.msra.mxu0 0.0
      %3604 = vmatprep.subr.mxu0 0.0
      %3605 = vmatpush1.msra.mxu0 0.0
      %3606 = vmatprep.subr.mxu0 0.0
      %3607 = vmatpush1.msra.mxu0 0.0
      %3608 = vmatprep.subr.mxu0 0.0
      %3609 = vmatpush1.msra.mxu0 0.0
      %3610 = vmatprep.subr.mxu0 0.0
      %3611 = vmatpush1.msra.mxu0 0.0
      %3612 = vmatprep.subr.mxu0 0.0
      %3613 = vmatpush1.msra.mxu0 0.0
      %3614 = vmatprep.subr.mxu0 0.0
      %3615 = vmatpush1.msra.mxu0 0.0
      %3616 = vmatprep.subr.mxu0 0.0
      %3617 = vmatpush1.msra.mxu0 0.0
      %3618 = vmatprep.subr.mxu0 %v3584
      %3619 = vmatpush1.msra.mxu0 %v3583
      %3620 = vmatprep.subr.mxu0 %v3582
      %3621 = vmatpush1.msra.mxu0 %v3581
      %3622 = vmatprep.subr.mxu0 0.0
      %3623 = vmatpush2.msra.mxu0 0.0
      %3624 = vmatprep.subr.mxu0 0.0
      %3625 = vmatpush2.msra.mxu0 0.0
      %3626 = vmatprep.subr.mxu0 0.0
      %3627 = vmatpush2.msra.mxu0 0.0
      %3628 = vmatprep.subr.mxu0 0.0
      %3629 = vmatpush2.msra.mxu0 0.0
      %3630 = vmatprep.subr.mxu0 0.0
      %3631 = vmatpush2.msra.mxu0 0.0
      %3632 = vmatprep.subr.mxu0 0.0
      %3633 = vmatpush2.msra.mxu0 0.0
      %3634 = vmatprep.subr.mxu0 0.0
      %3635 = vmatpush2.msra.mxu0 0.0
      %3636 = vmatprep.subr.mxu0 0.0
      %3637 = vmatpush2.msra.mxu0 0.0
      %3638 = vmatprep.subr.mxu0 0.0
      %3639 = vmatpush2.msra.mxu0 0.0
      %3640 = vmatprep.subr.mxu0 0.0
      %3641 = vmatpush2.msra.mxu0 0.0
      %3642 = vmatprep.subr.mxu0 0.0
      %3643 = vmatpush2.msra.mxu0 0.0
      %3644 = vmatprep.subr.mxu0 0.0
      %3645 = vmatpush2.msra.mxu0 0.0
      %3646 = vmatprep.subr.mxu0 0.0
      %3647 = vmatpush2.msra.mxu0 0.0
      %3648 = vmatprep.subr.mxu0 0.0
      %3649 = vmatpush2.msra.mxu0 0.0
      %3650 = vmatprep.subr.mxu0 0.0
      %3651 = vmatpush2.msra.mxu0 0.0
      %3652 = vmatprep.subr.mxu0 0.0
      %3653 = vmatpush2.msra.mxu0 0.0
      %3654 = vmatprep.mubr.f32.mxu0 0.0
      %3655 = vmatmul.mubr.f32.gmra.mxu0 %v3588
      %v3656 = vpop.f32.mrf.mxu0
      %v3657 = vadd.f32 0.0, %v3656
      %v3658 = vpop.f32.mrf.mxu0
      %v3659 = vadd.f32 0.0, %v3658
      %3660 = vdwg.mxu0
      %v3662 = vsel %vm1289, %v3568, 0
      %3664 = vmatprep.subr.mxu0 0.0
      %3665 = vmatpush1.msra.mxu0 0.0
      %3666 = vmatprep.subr.mxu0 0.0
      %3667 = vmatpush1.msra.mxu0 0.0
      %3668 = vmatprep.subr.mxu0 0.0
      %3669 = vmatpush1.msra.mxu0 0.0
      %3670 = vmatprep.subr.mxu0 0.0
      %3671 = vmatpush1.msra.mxu0 0.0
      %3672 = vmatprep.subr.mxu0 0.0
      %3673 = vmatpush1.msra.mxu0 0.0
      %3674 = vmatprep.subr.mxu0 0.0
      %3675 = vmatpush1.msra.mxu0 0.0
      %3676 = vmatprep.subr.mxu0 0.0
      %3677 = vmatpush1.msra.mxu0 0.0
      %3678 = vmatprep.subr.mxu0 0.0
      %3679 = vmatpush1.msra.mxu0 0.0
      %3680 = vmatprep.subr.mxu0 0.0
      %3681 = vmatpush1.msra.mxu0 0.0
      %3682 = vmatprep.subr.mxu0 0.0
      %3683 = vmatpush1.msra.mxu0 0.0
      %3684 = vmatprep.subr.mxu0 0.0
      %3685 = vmatpush1.msra.mxu0 0.0
      %3686 = vmatprep.subr.mxu0 0.0
      %3687 = vmatpush1.msra.mxu0 0.0
      %3688 = vmatprep.subr.mxu0 0.0
      %3689 = vmatpush1.msra.mxu0 0.0
      %3690 = vmatprep.subr.mxu0 0.0
      %3691 = vmatpush1.msra.mxu0 0.0
      %3692 = vmatprep.subr.mxu0 %v3567
      %3693 = vmatpush1.msra.mxu0 %v3566
      %3694 = vmatprep.subr.mxu0 %v3565
      %3695 = vmatpush1.msra.mxu0 %v3564
      %3696 = vmatprep.subr.mxu0 0.0
      %3697 = vmatpush2.msra.mxu0 0.0
      %3698 = vmatprep.subr.mxu0 0.0
      %3699 = vmatpush2.msra.mxu0 0.0
      %3700 = vmatprep.subr.mxu0 0.0
      %3701 = vmatpush2.msra.mxu0 0.0
      %3702 = vmatprep.subr.mxu0 0.0
      %3703 = vmatpush2.msra.mxu0 0.0
      %3704 = vmatprep.subr.mxu0 0.0
      %3705 = vmatpush2.msra.mxu0 0.0
      %3706 = vmatprep.subr.mxu0 0.0
      %3707 = vmatpush2.msra.mxu0 0.0
      %3708 = vmatprep.subr.mxu0 0.0
      %3709 = vmatpush2.msra.mxu0 0.0
      %3710 = vmatprep.subr.mxu0 0.0
      %3711 = vmatpush2.msra.mxu0 0.0
      %3712 = vmatprep.subr.mxu0 0.0
      %3713 = vmatpush2.msra.mxu0 0.0
      %3714 = vmatprep.subr.mxu0 0.0
      %3715 = vmatpush2.msra.mxu0 0.0
      %3716 = vmatprep.subr.mxu0 0.0
      %3717 = vmatpush2.msra.mxu0 0.0
      %3718 = vmatprep.subr.mxu0 0.0
      %3719 = vmatpush2.msra.mxu0 0.0
      %3720 = vmatprep.subr.mxu0 0.0
      %3721 = vmatpush2.msra.mxu0 0.0
      %3722 = vmatprep.subr.mxu0 0.0
      %3723 = vmatpush2.msra.mxu0 0.0
      %3724 = vmatprep.subr.mxu0 0.0
      %3725 = vmatpush2.msra.mxu0 0.0
      %3726 = vmatprep.subr.mxu0 0.0
      %3727 = vmatpush2.msra.mxu0 0.0
      %3728 = vmatprep.mubr.f32.mxu0 0.0
      %3729 = vmatmul.mubr.f32.gmra.mxu0 %v3662
      %v3730 = vpop.f32.mrf.mxu0
      %v3731 = vadd.f32 %v3657, %v3730
      %v3732 = vpop.f32.mrf.mxu0
      %v3733 = vadd.f32 %v3659, %v3732
      %3734 = vdwg.mxu0
      %3735 = vrot.lane.b32.xlu0 %v3548, 15
      %v3736 = vpop.permute.xlu0 %3735
      %3737 = vrot.lane.b32.xlu0 %v3550, 15
      %v3738 = vpop.permute.xlu0 %3737
      %3739 = vrot.lane.b32.xlu0 %v3549, 15
      %v3740 = vpop.permute.xlu0 %3739
      %3741 = vrot.lane.b32.xlu0 %v3551, 15
      %v3742 = vpop.permute.xlu0 %3741
      %v3743 = vsel %vm457, %v3736, %v3740
      %v3744 = vsel %vm457, %v3738, %v3742
      %v3745 = vsel %vm457, %v3740, %v3736
      %v3746 = vsel %vm457, %v3742, %v3738
      %v3747 = vsel %vm466, %v3745, 0.0
      %v3748 = vsel %vm467, %v3743, 0.0
      %v3749 = vsel %vm466, %v3746, 0.0
      %v3750 = vsel %vm467, %v3744, 0.0
      %s3751 = scalar_lea.vmem %s4, 8
      %v3752 = vld [vmem:[%s3751] sm:$0x7]
      %v3754 = vsel %vm1289, %v3752, 0
      %3756 = vmatprep.subr.mxu0 0.0
      %3757 = vmatpush1.msra.mxu0 0.0
      %3758 = vmatprep.subr.mxu0 0.0
      %3759 = vmatpush1.msra.mxu0 0.0
      %3760 = vmatprep.subr.mxu0 0.0
      %3761 = vmatpush1.msra.mxu0 0.0
      %3762 = vmatprep.subr.mxu0 0.0
      %3763 = vmatpush1.msra.mxu0 0.0
      %3764 = vmatprep.subr.mxu0 0.0
      %3765 = vmatpush1.msra.mxu0 0.0
      %3766 = vmatprep.subr.mxu0 0.0
      %3767 = vmatpush1.msra.mxu0 0.0
      %3768 = vmatprep.subr.mxu0 0.0
      %3769 = vmatpush1.msra.mxu0 0.0
      %3770 = vmatprep.subr.mxu0 0.0
      %3771 = vmatpush1.msra.mxu0 0.0
      %3772 = vmatprep.subr.mxu0 0.0
      %3773 = vmatpush1.msra.mxu0 0.0
      %3774 = vmatprep.subr.mxu0 0.0
      %3775 = vmatpush1.msra.mxu0 0.0
      %3776 = vmatprep.subr.mxu0 0.0
      %3777 = vmatpush1.msra.mxu0 0.0
      %3778 = vmatprep.subr.mxu0 0.0
      %3779 = vmatpush1.msra.mxu0 0.0
      %3780 = vmatprep.subr.mxu0 0.0
      %3781 = vmatpush1.msra.mxu0 0.0
      %3782 = vmatprep.subr.mxu0 0.0
      %3783 = vmatpush1.msra.mxu0 0.0
      %3784 = vmatprep.subr.mxu0 %v3750
      %3785 = vmatpush1.msra.mxu0 %v3749
      %3786 = vmatprep.subr.mxu0 %v3748
      %3787 = vmatpush1.msra.mxu0 %v3747
      %3788 = vmatprep.subr.mxu0 0.0
      %3789 = vmatpush2.msra.mxu0 0.0
      %3790 = vmatprep.subr.mxu0 0.0
      %3791 = vmatpush2.msra.mxu0 0.0
      %3792 = vmatprep.subr.mxu0 0.0
      %3793 = vmatpush2.msra.mxu0 0.0
      %3794 = vmatprep.subr.mxu0 0.0
      %3795 = vmatpush2.msra.mxu0 0.0
      %3796 = vmatprep.subr.mxu0 0.0
      %3797 = vmatpush2.msra.mxu0 0.0
      %3798 = vmatprep.subr.mxu0 0.0
      %3799 = vmatpush2.msra.mxu0 0.0
      %3800 = vmatprep.subr.mxu0 0.0
      %3801 = vmatpush2.msra.mxu0 0.0
      %3802 = vmatprep.subr.mxu0 0.0
      %3803 = vmatpush2.msra.mxu0 0.0
      %3804 = vmatprep.subr.mxu0 0.0
      %3805 = vmatpush2.msra.mxu0 0.0
      %3806 = vmatprep.subr.mxu0 0.0
      %3807 = vmatpush2.msra.mxu0 0.0
      %3808 = vmatprep.subr.mxu0 0.0
      %3809 = vmatpush2.msra.mxu0 0.0
      %3810 = vmatprep.subr.mxu0 0.0
      %3811 = vmatpush2.msra.mxu0 0.0
      %3812 = vmatprep.subr.mxu0 0.0
      %3813 = vmatpush2.msra.mxu0 0.0
      %3814 = vmatprep.subr.mxu0 0.0
      %3815 = vmatpush2.msra.mxu0 0.0
      %3816 = vmatprep.subr.mxu0 0.0
      %3817 = vmatpush2.msra.mxu0 0.0
      %3818 = vmatprep.subr.mxu0 0.0
      %3819 = vmatpush2.msra.mxu0 0.0
      %3820 = vmatprep.mubr.f32.mxu0 0.0
      %3821 = vmatmul.mubr.f32.gmra.mxu0 %v3754
      %v3822 = vpop.f32.mrf.mxu0
      %v3823 = vadd.f32 0.0, %v3822
      %v3824 = vpop.f32.mrf.mxu0
      %v3825 = vadd.f32 0.0, %v3824
      %3826 = vdwg.mxu0
      %v3827 = vadd.f32 %v3731, %v3823
      %v3828 = vadd.f32 %v3733, %v3825
      %3829 = vrot.lane.b32.xlu0 %v3548, 1
      %v3830 = vpop.permute.xlu0 %3829
      %3831 = vrot.lane.b32.xlu0 %v3550, 1
      %v3832 = vpop.permute.xlu0 %3831
      %3833 = vrot.lane.b32.xlu0 %v3549, 1
      %v3834 = vpop.permute.xlu0 %3833
      %3835 = vrot.lane.b32.xlu0 %v3551, 1
      %v3836 = vpop.permute.xlu0 %3835
      %v3837 = vsel %vm570, %v3830, %v3834
      %v3838 = vsel %vm570, %v3832, %v3836
      %v3839 = vsel %vm570, %v3834, %v3830
      %v3840 = vsel %vm570, %v3836, %v3832
      %v3841 = vsel %vm575, %v3839, 0.0
      %v3842 = vsel %vm576, %v3837, 0.0
      %v3843 = vsel %vm575, %v3840, 0.0
      %v3844 = vsel %vm576, %v3838, 0.0
      %s3845 = scalar_lea.vmem %s4, 12
      %v3846 = vld [vmem:[%s3845] sm:$0x7]
      %v3848 = vsel %vm1289, %v3846, 0
      %3850 = vmatprep.subr.mxu0 0.0
      %3851 = vmatpush1.msra.mxu0 0.0
      %3852 = vmatprep.subr.mxu0 0.0
      %3853 = vmatpush1.msra.mxu0 0.0
      %3854 = vmatprep.subr.mxu0 0.0
      %3855 = vmatpush1.msra.mxu0 0.0
      %3856 = vmatprep.subr.mxu0 0.0
      %3857 = vmatpush1.msra.mxu0 0.0
      %3858 = vmatprep.subr.mxu0 0.0
      %3859 = vmatpush1.msra.mxu0 0.0
      %3860 = vmatprep.subr.mxu0 0.0
      %3861 = vmatpush1.msra.mxu0 0.0
      %3862 = vmatprep.subr.mxu0 0.0
      %3863 = vmatpush1.msra.mxu0 0.0
      %3864 = vmatprep.subr.mxu0 0.0
      %3865 = vmatpush1.msra.mxu0 0.0
      %3866 = vmatprep.subr.mxu0 0.0
      %3867 = vmatpush1.msra.mxu0 0.0
      %3868 = vmatprep.subr.mxu0 0.0
      %3869 = vmatpush1.msra.mxu0 0.0
      %3870 = vmatprep.subr.mxu0 0.0
      %3871 = vmatpush1.msra.mxu0 0.0
      %3872 = vmatprep.subr.mxu0 0.0
      %3873 = vmatpush1.msra.mxu0 0.0
      %3874 = vmatprep.subr.mxu0 0.0
      %3875 = vmatpush1.msra.mxu0 0.0
      %3876 = vmatprep.subr.mxu0 0.0
      %3877 = vmatpush1.msra.mxu0 0.0
      %3878 = vmatprep.subr.mxu0 %v3844
      %3879 = vmatpush1.msra.mxu0 %v3843
      %3880 = vmatprep.subr.mxu0 %v3842
      %3881 = vmatpush1.msra.mxu0 %v3841
      %3882 = vmatprep.subr.mxu0 0.0
      %3883 = vmatpush2.msra.mxu0 0.0
      %3884 = vmatprep.subr.mxu0 0.0
      %3885 = vmatpush2.msra.mxu0 0.0
      %3886 = vmatprep.subr.mxu0 0.0
      %3887 = vmatpush2.msra.mxu0 0.0
      %3888 = vmatprep.subr.mxu0 0.0
      %3889 = vmatpush2.msra.mxu0 0.0
      %3890 = vmatprep.subr.mxu0 0.0
      %3891 = vmatpush2.msra.mxu0 0.0
      %3892 = vmatprep.subr.mxu0 0.0
      %3893 = vmatpush2.msra.mxu0 0.0
      %3894 = vmatprep.subr.mxu0 0.0
      %3895 = vmatpush2.msra.mxu0 0.0
      %3896 = vmatprep.subr.mxu0 0.0
      %3897 = vmatpush2.msra.mxu0 0.0
      %3898 = vmatprep.subr.mxu0 0.0
      %3899 = vmatpush2.msra.mxu0 0.0
      %3900 = vmatprep.subr.mxu0 0.0
      %3901 = vmatpush2.msra.mxu0 0.0
      %3902 = vmatprep.subr.mxu0 0.0
      %3903 = vmatpush2.msra.mxu0 0.0
      %3904 = vmatprep.subr.mxu0 0.0
      %3905 = vmatpush2.msra.mxu0 0.0
      %3906 = vmatprep.subr.mxu0 0.0
      %3907 = vmatpush2.msra.mxu0 0.0
      %3908 = vmatprep.subr.mxu0 0.0
      %3909 = vmatpush2.msra.mxu0 0.0
      %3910 = vmatprep.subr.mxu0 0.0
      %3911 = vmatpush2.msra.mxu0 0.0
      %3912 = vmatprep.subr.mxu0 0.0
      %3913 = vmatpush2.msra.mxu0 0.0
      %3914 = vmatprep.mubr.f32.mxu0 0.0
      %3915 = vmatmul.mubr.f32.gmra.mxu0 %v3848
      %v3916 = vpop.f32.mrf.mxu0
      %v3917 = vadd.f32 0.0, %v3916
      %v3918 = vpop.f32.mrf.mxu0
      %v3919 = vadd.f32 0.0, %v3918
      %3920 = vdwg.mxu0
      %v3921 = vadd.f32 %v3827, %v3917
      %v3922 = vadd.f32 %v3828, %v3919
      %s3923 = scalar_lea.vmem %s4, 16
      %v3924 = vld [vmem:[%s3923] sm:$0x7]
      %v3926 = vsel %vm1289, %v3924, 0
      %3928 = vmatprep.subr.mxu0 0.0
      %3929 = vmatpush1.msra.mxu0 0.0
      %3930 = vmatprep.subr.mxu0 0.0
      %3931 = vmatpush1.msra.mxu0 0.0
      %3932 = vmatprep.subr.mxu0 0.0
      %3933 = vmatpush1.msra.mxu0 0.0
      %3934 = vmatprep.subr.mxu0 0.0
      %3935 = vmatpush1.msra.mxu0 0.0
      %3936 = vmatprep.subr.mxu0 0.0
      %3937 = vmatpush1.msra.mxu0 0.0
      %3938 = vmatprep.subr.mxu0 0.0
      %3939 = vmatpush1.msra.mxu0 0.0
      %3940 = vmatprep.subr.mxu0 0.0
      %3941 = vmatpush1.msra.mxu0 0.0
      %3942 = vmatprep.subr.mxu0 0.0
      %3943 = vmatpush1.msra.mxu0 0.0
      %3944 = vmatprep.subr.mxu0 0.0
      %3945 = vmatpush1.msra.mxu0 0.0
      %3946 = vmatprep.subr.mxu0 0.0
      %3947 = vmatpush1.msra.mxu0 0.0
      %3948 = vmatprep.subr.mxu0 0.0
      %3949 = vmatpush1.msra.mxu0 0.0
      %3950 = vmatprep.subr.mxu0 0.0
      %3951 = vmatpush1.msra.mxu0 0.0
      %3952 = vmatprep.subr.mxu0 0.0
      %3953 = vmatpush1.msra.mxu0 0.0
      %3954 = vmatprep.subr.mxu0 0.0
      %3955 = vmatpush1.msra.mxu0 0.0
      %3956 = vmatprep.subr.mxu0 %v3551
      %3957 = vmatpush1.msra.mxu0 %v3550
      %3958 = vmatprep.subr.mxu0 %v3549
      %3959 = vmatpush1.msra.mxu0 %v3548
      %3960 = vmatprep.subr.mxu0 0.0
      %3961 = vmatpush2.msra.mxu0 0.0
      %3962 = vmatprep.subr.mxu0 0.0
      %3963 = vmatpush2.msra.mxu0 0.0
      %3964 = vmatprep.subr.mxu0 0.0
      %3965 = vmatpush2.msra.mxu0 0.0
      %3966 = vmatprep.subr.mxu0 0.0
      %3967 = vmatpush2.msra.mxu0 0.0
      %3968 = vmatprep.subr.mxu0 0.0
      %3969 = vmatpush2.msra.mxu0 0.0
      %3970 = vmatprep.subr.mxu0 0.0
      %3971 = vmatpush2.msra.mxu0 0.0
      %3972 = vmatprep.subr.mxu0 0.0
      %3973 = vmatpush2.msra.mxu0 0.0
      %3974 = vmatprep.subr.mxu0 0.0
      %3975 = vmatpush2.msra.mxu0 0.0
      %3976 = vmatprep.subr.mxu0 0.0
      %3977 = vmatpush2.msra.mxu0 0.0
      %3978 = vmatprep.subr.mxu0 0.0
      %3979 = vmatpush2.msra.mxu0 0.0
      %3980 = vmatprep.subr.mxu0 0.0
      %3981 = vmatpush2.msra.mxu0 0.0
      %3982 = vmatprep.subr.mxu0 0.0
      %3983 = vmatpush2.msra.mxu0 0.0
      %3984 = vmatprep.subr.mxu0 0.0
      %3985 = vmatpush2.msra.mxu0 0.0
      %3986 = vmatprep.subr.mxu0 0.0
      %3987 = vmatpush2.msra.mxu0 0.0
      %3988 = vmatprep.subr.mxu0 0.0
      %3989 = vmatpush2.msra.mxu0 0.0
      %3990 = vmatprep.subr.mxu0 0.0
      %3991 = vmatpush2.msra.mxu0 0.0
      %3992 = vmatprep.mubr.f32.mxu0 0.0
      %3993 = vmatmul.mubr.f32.gmra.mxu0 %v3926
      %v3994 = vpop.f32.mrf.mxu0
      %v3995 = vadd.f32 0.0, %v3994
      %v3996 = vpop.f32.mrf.mxu0
      %v3997 = vadd.f32 0.0, %v3996
      %3998 = vdwg.mxu0
      %v3999 = vadd.f32 %v3921, %v3995
      %v4000 = vadd.f32 %v3922, %v3997
      %4001 = vrot.lane.b32.xlu0 %v3548, 127
      %v4002 = vpop.permute.xlu0 %4001
      %4003 = vrot.lane.b32.xlu0 %v3550, 127
      %v4004 = vpop.permute.xlu0 %4003
      %4005 = vrot.lane.b32.xlu0 %v3549, 127
      %v4006 = vpop.permute.xlu0 %4005
      %4007 = vrot.lane.b32.xlu0 %v3551, 127
      %v4008 = vpop.permute.xlu0 %4007
      %v4009 = vsel %vm773, %v4002, %v4006
      %v4010 = vsel %vm773, %v4004, %v4008
      %v4011 = vsel %vm773, %v4006, %v4002
      %v4012 = vsel %vm773, %v4008, %v4004
      %v4013 = vsel %vm778, %v4009, 0.0
      %v4014 = vsel %vm779, %v4011, 0.0
      %v4015 = vsel %vm778, %v4010, 0.0
      %v4016 = vsel %vm779, %v4012, 0.0
      %s4017 = scalar_lea.vmem %s4, 20
      %v4018 = vld [vmem:[%s4017] sm:$0x7]
      %v4020 = vsel %vm1289, %v4018, 0
      %4022 = vmatprep.subr.mxu0 0.0
      %4023 = vmatpush1.msra.mxu0 0.0
      %4024 = vmatprep.subr.mxu0 0.0
      %4025 = vmatpush1.msra.mxu0 0.0
      %4026 = vmatprep.subr.mxu0 0.0
      %4027 = vmatpush1.msra.mxu0 0.0
      %4028 = vmatprep.subr.mxu0 0.0
      %4029 = vmatpush1.msra.mxu0 0.0
      %4030 = vmatprep.subr.mxu0 0.0
      %4031 = vmatpush1.msra.mxu0 0.0
      %4032 = vmatprep.subr.mxu0 0.0
      %4033 = vmatpush1.msra.mxu0 0.0
      %4034 = vmatprep.subr.mxu0 0.0
      %4035 = vmatpush1.msra.mxu0 0.0
      %4036 = vmatprep.subr.mxu0 0.0
      %4037 = vmatpush1.msra.mxu0 0.0
      %4038 = vmatprep.subr.mxu0 0.0
      %4039 = vmatpush1.msra.mxu0 0.0
      %4040 = vmatprep.subr.mxu0 0.0
      %4041 = vmatpush1.msra.mxu0 0.0
      %4042 = vmatprep.subr.mxu0 0.0
      %4043 = vmatpush1.msra.mxu0 0.0
      %4044 = vmatprep.subr.mxu0 0.0
      %4045 = vmatpush1.msra.mxu0 0.0
      %4046 = vmatprep.subr.mxu0 0.0
      %4047 = vmatpush1.msra.mxu0 0.0
      %4048 = vmatprep.subr.mxu0 0.0
      %4049 = vmatpush1.msra.mxu0 0.0
      %4050 = vmatprep.subr.mxu0 %v4016
      %4051 = vmatpush1.msra.mxu0 %v4015
      %4052 = vmatprep.subr.mxu0 %v4014
      %4053 = vmatpush1.msra.mxu0 %v4013
      %4054 = vmatprep.subr.mxu0 0.0
      %4055 = vmatpush2.msra.mxu0 0.0
      %4056 = vmatprep.subr.mxu0 0.0
      %4057 = vmatpush2.msra.mxu0 0.0
      %4058 = vmatprep.subr.mxu0 0.0
      %4059 = vmatpush2.msra.mxu0 0.0
      %4060 = vmatprep.subr.mxu0 0.0
      %4061 = vmatpush2.msra.mxu0 0.0
      %4062 = vmatprep.subr.mxu0 0.0
      %4063 = vmatpush2.msra.mxu0 0.0
      %4064 = vmatprep.subr.mxu0 0.0
      %4065 = vmatpush2.msra.mxu0 0.0
      %4066 = vmatprep.subr.mxu0 0.0
      %4067 = vmatpush2.msra.mxu0 0.0
      %4068 = vmatprep.subr.mxu0 0.0
      %4069 = vmatpush2.msra.mxu0 0.0
      %4070 = vmatprep.subr.mxu0 0.0
      %4071 = vmatpush2.msra.mxu0 0.0
      %4072 = vmatprep.subr.mxu0 0.0
      %4073 = vmatpush2.msra.mxu0 0.0
      %4074 = vmatprep.subr.mxu0 0.0
      %4075 = vmatpush2.msra.mxu0 0.0
      %4076 = vmatprep.subr.mxu0 0.0
      %4077 = vmatpush2.msra.mxu0 0.0
      %4078 = vmatprep.subr.mxu0 0.0
      %4079 = vmatpush2.msra.mxu0 0.0
      %4080 = vmatprep.subr.mxu0 0.0
      %4081 = vmatpush2.msra.mxu0 0.0
      %4082 = vmatprep.subr.mxu0 0.0
      %4083 = vmatpush2.msra.mxu0 0.0
      %4084 = vmatprep.subr.mxu0 0.0
      %4085 = vmatpush2.msra.mxu0 0.0
      %4086 = vmatprep.mubr.f32.mxu0 0.0
      %4087 = vmatmul.mubr.f32.gmra.mxu0 %v4020
      %v4088 = vpop.f32.mrf.mxu0
      %v4089 = vadd.f32 0.0, %v4088
      %v4090 = vpop.f32.mrf.mxu0
      %v4091 = vadd.f32 0.0, %v4090
      %4092 = vdwg.mxu0
      %v4093 = vadd.f32 %v3999, %v4089
      %v4094 = vadd.f32 %v4000, %v4091
      %4095 = vrot.lane.b32.xlu0 %v3548, 113
      %v4096 = vpop.permute.xlu0 %4095
      %4097 = vrot.lane.b32.xlu0 %v3550, 113
      %v4098 = vpop.permute.xlu0 %4097
      %4099 = vrot.lane.b32.xlu0 %v3549, 113
      %v4100 = vpop.permute.xlu0 %4099
      %4101 = vrot.lane.b32.xlu0 %v3551, 113
      %v4102 = vpop.permute.xlu0 %4101
      %v4103 = vsel %vm882, %v4096, %v4100
      %v4104 = vsel %vm882, %v4098, %v4102
      %v4105 = vsel %vm882, %v4100, %v4096
      %v4106 = vsel %vm882, %v4102, %v4098
      %v4107 = vsel %vm891, %v4103, 0.0
      %v4108 = vsel %vm892, %v4105, 0.0
      %v4109 = vsel %vm891, %v4104, 0.0
      %v4110 = vsel %vm892, %v4106, 0.0
      %s4111 = scalar_lea.vmem %s4, 24
      %v4112 = vld [vmem:[%s4111] sm:$0x7]
      %v4114 = vsel %vm1289, %v4112, 0
      %4116 = vmatprep.subr.mxu0 0.0
      %4117 = vmatpush1.msra.mxu0 0.0
      %4118 = vmatprep.subr.mxu0 0.0
      %4119 = vmatpush1.msra.mxu0 0.0
      %4120 = vmatprep.subr.mxu0 0.0
      %4121 = vmatpush1.msra.mxu0 0.0
      %4122 = vmatprep.subr.mxu0 0.0
      %4123 = vmatpush1.msra.mxu0 0.0
      %4124 = vmatprep.subr.mxu0 0.0
      %4125 = vmatpush1.msra.mxu0 0.0
      %4126 = vmatprep.subr.mxu0 0.0
      %4127 = vmatpush1.msra.mxu0 0.0
      %4128 = vmatprep.subr.mxu0 0.0
      %4129 = vmatpush1.msra.mxu0 0.0
      %4130 = vmatprep.subr.mxu0 0.0
      %4131 = vmatpush1.msra.mxu0 0.0
      %4132 = vmatprep.subr.mxu0 0.0
      %4133 = vmatpush1.msra.mxu0 0.0
      %4134 = vmatprep.subr.mxu0 0.0
      %4135 = vmatpush1.msra.mxu0 0.0
      %4136 = vmatprep.subr.mxu0 0.0
      %4137 = vmatpush1.msra.mxu0 0.0
      %4138 = vmatprep.subr.mxu0 0.0
      %4139 = vmatpush1.msra.mxu0 0.0
      %4140 = vmatprep.subr.mxu0 0.0
      %4141 = vmatpush1.msra.mxu0 0.0
      %4142 = vmatprep.subr.mxu0 0.0
      %4143 = vmatpush1.msra.mxu0 0.0
      %4144 = vmatprep.subr.mxu0 %v4110
      %4145 = vmatpush1.msra.mxu0 %v4109
      %4146 = vmatprep.subr.mxu0 %v4108
      %4147 = vmatpush1.msra.mxu0 %v4107
      %4148 = vmatprep.subr.mxu0 0.0
      %4149 = vmatpush2.msra.mxu0 0.0
      %4150 = vmatprep.subr.mxu0 0.0
      %4151 = vmatpush2.msra.mxu0 0.0
      %4152 = vmatprep.subr.mxu0 0.0
      %4153 = vmatpush2.msra.mxu0 0.0
      %4154 = vmatprep.subr.mxu0 0.0
      %4155 = vmatpush2.msra.mxu0 0.0
      %4156 = vmatprep.subr.mxu0 0.0
      %4157 = vmatpush2.msra.mxu0 0.0
      %4158 = vmatprep.subr.mxu0 0.0
      %4159 = vmatpush2.msra.mxu0 0.0
      %4160 = vmatprep.subr.mxu0 0.0
      %4161 = vmatpush2.msra.mxu0 0.0
      %4162 = vmatprep.subr.mxu0 0.0
      %4163 = vmatpush2.msra.mxu0 0.0
      %4164 = vmatprep.subr.mxu0 0.0
      %4165 = vmatpush2.msra.mxu0 0.0
      %4166 = vmatprep.subr.mxu0 0.0
      %4167 = vmatpush2.msra.mxu0 0.0
      %4168 = vmatprep.subr.mxu0 0.0
      %4169 = vmatpush2.msra.mxu0 0.0
      %4170 = vmatprep.subr.mxu0 0.0
      %4171 = vmatpush2.msra.mxu0 0.0
      %4172 = vmatprep.subr.mxu0 0.0
      %4173 = vmatpush2.msra.mxu0 0.0
      %4174 = vmatprep.subr.mxu0 0.0
      %4175 = vmatpush2.msra.mxu0 0.0
      %4176 = vmatprep.subr.mxu0 0.0
      %4177 = vmatpush2.msra.mxu0 0.0
      %4178 = vmatprep.subr.mxu0 0.0
      %4179 = vmatpush2.msra.mxu0 0.0
      %4180 = vmatprep.mubr.f32.mxu0 0.0
      %4181 = vmatmul.mubr.f32.gmra.mxu0 %v4114
      %v4182 = vpop.f32.mrf.mxu0
      %v4183 = vadd.f32 0.0, %v4182
      %v4184 = vpop.f32.mrf.mxu0
      %v4185 = vadd.f32 0.0, %v4184
      %4186 = vdwg.mxu0
      %v4187 = vadd.f32 %v4093, %v4183
      %v4188 = vadd.f32 %v4094, %v4185
      %4189 = vrot.lane.b32.xlu0 %v3548, 112
      %v4190 = vpop.permute.xlu0 %4189
      %4191 = vrot.lane.b32.xlu0 %v3550, 112
      %v4192 = vpop.permute.xlu0 %4191
      %4193 = vrot.lane.b32.xlu0 %v3549, 112
      %v4194 = vpop.permute.xlu0 %4193
      %4195 = vrot.lane.b32.xlu0 %v3551, 112
      %v4196 = vpop.permute.xlu0 %4195
      %v4197 = vsel %vm995, %v4190, %v4194
      %v4198 = vsel %vm995, %v4192, %v4196
      %v4199 = vsel %vm995, %v4194, %v4190
      %v4200 = vsel %vm995, %v4196, %v4192
      %v4201 = vsel %vm1000, %v4197, 0.0
      %v4202 = vsel %vm1001, %v4199, 0.0
      %v4203 = vsel %vm1000, %v4198, 0.0
      %v4204 = vsel %vm1001, %v4200, 0.0
      %s4205 = scalar_lea.vmem %s4, 28
      %v4206 = vld [vmem:[%s4205] sm:$0x7]
      %v4208 = vsel %vm1289, %v4206, 0
      %4210 = vmatprep.subr.mxu0 0.0
      %4211 = vmatpush1.msra.mxu0 0.0
      %4212 = vmatprep.subr.mxu0 0.0
      %4213 = vmatpush1.msra.mxu0 0.0
      %4214 = vmatprep.subr.mxu0 0.0
      %4215 = vmatpush1.msra.mxu0 0.0
      %4216 = vmatprep.subr.mxu0 0.0
      %4217 = vmatpush1.msra.mxu0 0.0
      %4218 = vmatprep.subr.mxu0 0.0
      %4219 = vmatpush1.msra.mxu0 0.0
      %4220 = vmatprep.subr.mxu0 0.0
      %4221 = vmatpush1.msra.mxu0 0.0
      %4222 = vmatprep.subr.mxu0 0.0
      %4223 = vmatpush1.msra.mxu0 0.0
      %4224 = vmatprep.subr.mxu0 0.0
      %4225 = vmatpush1.msra.mxu0 0.0
      %4226 = vmatprep.subr.mxu0 0.0
      %4227 = vmatpush1.msra.mxu0 0.0
      %4228 = vmatprep.subr.mxu0 0.0
      %4229 = vmatpush1.msra.mxu0 0.0
      %4230 = vmatprep.subr.mxu0 0.0
      %4231 = vmatpush1.msra.mxu0 0.0
      %4232 = vmatprep.subr.mxu0 0.0
      %4233 = vmatpush1.msra.mxu0 0.0
      %4234 = vmatprep.subr.mxu0 0.0
      %4235 = vmatpush1.msra.mxu0 0.0
      %4236 = vmatprep.subr.mxu0 0.0
      %4237 = vmatpush1.msra.mxu0 0.0
      %4238 = vmatprep.subr.mxu0 %v4204
      %4239 = vmatpush1.msra.mxu0 %v4203
      %4240 = vmatprep.subr.mxu0 %v4202
      %4241 = vmatpush1.msra.mxu0 %v4201
      %4242 = vmatprep.subr.mxu0 0.0
      %4243 = vmatpush2.msra.mxu0 0.0
      %4244 = vmatprep.subr.mxu0 0.0
      %4245 = vmatpush2.msra.mxu0 0.0
      %4246 = vmatprep.subr.mxu0 0.0
      %4247 = vmatpush2.msra.mxu0 0.0
      %4248 = vmatprep.subr.mxu0 0.0
      %4249 = vmatpush2.msra.mxu0 0.0
      %4250 = vmatprep.subr.mxu0 0.0
      %4251 = vmatpush2.msra.mxu0 0.0
      %4252 = vmatprep.subr.mxu0 0.0
      %4253 = vmatpush2.msra.mxu0 0.0
      %4254 = vmatprep.subr.mxu0 0.0
      %4255 = vmatpush2.msra.mxu0 0.0
      %4256 = vmatprep.subr.mxu0 0.0
      %4257 = vmatpush2.msra.mxu0 0.0
      %4258 = vmatprep.subr.mxu0 0.0
      %4259 = vmatpush2.msra.mxu0 0.0
      %4260 = vmatprep.subr.mxu0 0.0
      %4261 = vmatpush2.msra.mxu0 0.0
      %4262 = vmatprep.subr.mxu0 0.0
      %4263 = vmatpush2.msra.mxu0 0.0
      %4264 = vmatprep.subr.mxu0 0.0
      %4265 = vmatpush2.msra.mxu0 0.0
      %4266 = vmatprep.subr.mxu0 0.0
      %4267 = vmatpush2.msra.mxu0 0.0
      %4268 = vmatprep.subr.mxu0 0.0
      %4269 = vmatpush2.msra.mxu0 0.0
      %4270 = vmatprep.subr.mxu0 0.0
      %4271 = vmatpush2.msra.mxu0 0.0
      %4272 = vmatprep.subr.mxu0 0.0
      %4273 = vmatpush2.msra.mxu0 0.0
      %4274 = vmatprep.mubr.f32.mxu0 0.0
      %4275 = vmatmul.mubr.f32.gmra.mxu0 %v4208
      %v4276 = vpop.f32.mrf.mxu0
      %v4277 = vadd.f32 0.0, %v4276
      %v4278 = vpop.f32.mrf.mxu0
      %v4279 = vadd.f32 0.0, %v4278
      %4280 = vdwg.mxu0
      %v4281 = vadd.f32 %v4187, %v4277
      %v4282 = vadd.f32 %v4188, %v4279
      %4283 = vrot.lane.b32.xlu0 %v3548, 111
      %v4284 = vpop.permute.xlu0 %4283
      %4285 = vrot.lane.b32.xlu0 %v3550, 111
      %v4286 = vpop.permute.xlu0 %4285
      %4287 = vrot.lane.b32.xlu0 %v3549, 111
      %v4288 = vpop.permute.xlu0 %4287
      %4289 = vrot.lane.b32.xlu0 %v3551, 111
      %v4290 = vpop.permute.xlu0 %4289
      %v4291 = vsel %vm1104, %v4284, %v4288
      %v4292 = vsel %vm1104, %v4286, %v4290
      %v4293 = vsel %vm1104, %v4288, %v4284
      %v4294 = vsel %vm1104, %v4290, %v4286
      %v4295 = vsel %vm1111, %v4291, 0.0
      %v4296 = vsel %vm1112, %v4293, 0.0
      %v4297 = vsel %vm1111, %v4292, 0.0
      %v4298 = vsel %vm1112, %v4294, 0.0
      %s4299 = scalar_lea.vmem %s4, 32
      %v4300 = vld [vmem:[%s4299] sm:$0x7]
      %v4302 = vsel %vm1289, %v4300, 0
      %4304 = vmatprep.subr.mxu0 0.0
      %4305 = vmatpush1.msra.mxu0 0.0
      %4306 = vmatprep.subr.mxu0 0.0
      %4307 = vmatpush1.msra.mxu0 0.0
      %4308 = vmatprep.subr.mxu0 0.0
      %4309 = vmatpush1.msra.mxu0 0.0
      %4310 = vmatprep.subr.mxu0 0.0
      %4311 = vmatpush1.msra.mxu0 0.0
      %4312 = vmatprep.subr.mxu0 0.0
      %4313 = vmatpush1.msra.mxu0 0.0
      %4314 = vmatprep.subr.mxu0 0.0
      %4315 = vmatpush1.msra.mxu0 0.0
      %4316 = vmatprep.subr.mxu0 0.0
      %4317 = vmatpush1.msra.mxu0 0.0
      %4318 = vmatprep.subr.mxu0 0.0
      %4319 = vmatpush1.msra.mxu0 0.0
      %4320 = vmatprep.subr.mxu0 0.0
      %4321 = vmatpush1.msra.mxu0 0.0
      %4322 = vmatprep.subr.mxu0 0.0
      %4323 = vmatpush1.msra.mxu0 0.0
      %4324 = vmatprep.subr.mxu0 0.0
      %4325 = vmatpush1.msra.mxu0 0.0
      %4326 = vmatprep.subr.mxu0 0.0
      %4327 = vmatpush1.msra.mxu0 0.0
      %4328 = vmatprep.subr.mxu0 0.0
      %4329 = vmatpush1.msra.mxu0 0.0
      %4330 = vmatprep.subr.mxu0 0.0
      %4331 = vmatpush1.msra.mxu0 0.0
      %4332 = vmatprep.subr.mxu0 %v4298
      %4333 = vmatpush1.msra.mxu0 %v4297
      %4334 = vmatprep.subr.mxu0 %v4296
      %4335 = vmatpush1.msra.mxu0 %v4295
      %4336 = vmatprep.subr.mxu0 0.0
      %4337 = vmatpush2.msra.mxu0 0.0
      %4338 = vmatprep.subr.mxu0 0.0
      %4339 = vmatpush2.msra.mxu0 0.0
      %4340 = vmatprep.subr.mxu0 0.0
      %4341 = vmatpush2.msra.mxu0 0.0
      %4342 = vmatprep.subr.mxu0 0.0
      %4343 = vmatpush2.msra.mxu0 0.0
      %4344 = vmatprep.subr.mxu0 0.0
      %4345 = vmatpush2.msra.mxu0 0.0
      %4346 = vmatprep.subr.mxu0 0.0
      %4347 = vmatpush2.msra.mxu0 0.0
      %4348 = vmatprep.subr.mxu0 0.0
      %4349 = vmatpush2.msra.mxu0 0.0
      %4350 = vmatprep.subr.mxu0 0.0
      %4351 = vmatpush2.msra.mxu0 0.0
      %4352 = vmatprep.subr.mxu0 0.0
      %4353 = vmatpush2.msra.mxu0 0.0
      %4354 = vmatprep.subr.mxu0 0.0
      %4355 = vmatpush2.msra.mxu0 0.0
      %4356 = vmatprep.subr.mxu0 0.0
      %4357 = vmatpush2.msra.mxu0 0.0
      %4358 = vmatprep.subr.mxu0 0.0
      %4359 = vmatpush2.msra.mxu0 0.0
      %4360 = vmatprep.subr.mxu0 0.0
      %4361 = vmatpush2.msra.mxu0 0.0
      %4362 = vmatprep.subr.mxu0 0.0
      %4363 = vmatpush2.msra.mxu0 0.0
      %4364 = vmatprep.subr.mxu0 0.0
      %4365 = vmatpush2.msra.mxu0 0.0
      %4366 = vmatprep.subr.mxu0 0.0
      %4367 = vmatpush2.msra.mxu0 0.0
      %4368 = vmatprep.mubr.f32.mxu0 0.0
      %4369 = vmatmul.mubr.f32.gmra.mxu0 %v4302
      %v4370 = vpop.f32.mrf.mxu0
      %v4371 = vadd.f32 0.0, %v4370
      %v4372 = vpop.f32.mrf.mxu0
      %v4373 = vadd.f32 0.0, %v4372
      %4374 = vdwg.mxu0
      %v4375 = vadd.f32 %v4281, %v4371
      %v4376 = vadd.f32 %v4282, %v4373
      %v4377 = vsel %vm280, %v4375, 0.0
      %v4378 = vsel %vm280, %v4376, 0.0
      %v4379 = vadd.f32 %v4377, %v4378
      %4380 = vadd.xlane.f32.xlu0 %v4379
      %v4381 = vpop.xlane.xlu0 %4380
      %v4382 = vmul.f32 %v4381, %v1217
      %v4383 = vsub.f32 %v4375, %v4382
      %v4384 = vsub.f32 %v4376, %v4382
      %v4385 = vmul.f32 %v4383, %v4383
      %v4386 = vmul.f32 %v4384, %v4384
      %v4387 = vsel %vm280, %v4385, 0.0
      %v4388 = vsel %vm280, %v4386, 0.0
      %v4389 = vadd.f32 %v4387, %v4388
      %4390 = vadd.xlane.f32.xlu0 %v4389
      %v4391 = vpop.xlane.xlu0 %4390
      %v4392 = vmul.f32 %v4391, %v1217
      %v4393 = vadd.f32 %v4392, 1e-05
      %v4394 = vrsqrt.pop %v4393
      %v4395 = vmul.f32 %v4383, %v4394
      %v4396 = vmul.f32 %v4384, %v4394
      %v4397 = vmax.f32 %v4395, 0.0
      %v4398 = vmax.f32 %v4396, 0.0
      %v4401 = vcombine.low %v4397, %v4398
      %4403 = vst [vmem:[%s224] sm:$0x77] %v4401
      %p4404 = scmp.lt.s32.totalorder %s16, 1
      %s4405 = scalar_select %p4404, %s16, 1
      %s4406 = smul.addr %s4405, 2
      %s4407 = smul.addr %s4406, 4
      %s4408 = scalar_lea.vmem %s5, %s4407
      // Predicated region
      $region41: #{tpu_custom_call.1} parent=39 // pred_check
        %p4409 = pneg %p144
      $region42: #{tpu_custom_call.1} parent=39 // pred_check_branch
        %4411 = sbr.rel (%p4409) target = $region44
      $region43: #{tpu_custom_call.1} parent=39 // pred_region
        _
      $region44: #{tpu_custom_call.1} parent=39 // pred_fallthru
        _
    $region40: #{tpu_custom_call.1} parent=5 // pred_fallthru
      _
    %p4412 = scmp.le.s32.totalorder 2, %s11
    // Predicated region
    $region45: #{tpu_custom_call.1} parent=5 // pred_check
      %p4413 = pneg %p4412
    $region46: #{tpu_custom_call.1} parent=5 // pred_check_branch
      %4415 = sbr.rel (%p4413) target = $region48
    $region47: #{tpu_custom_call.1} parent=5 // pred_region
      %s4416 = ssub.s32 %s11, 2
      // Predicated region
      $region49: #{tpu_custom_call.1} parent=47 // pred_check
        %p4417 = pneg %p150
      $region50: #{tpu_custom_call.1} parent=47 // pred_check_branch
        %4419 = sbr.rel (%p4417) target = $region52
      $region51: #{tpu_custom_call.1} parent=47 // pred_region
        %p4420 = scmp.lt.s32.totalorder %s17, 1
        %s4421 = scalar_select %p4420, %s17, 1
        %s4422 = smul.addr %s4421, 2
        %s4423 = smul.addr %s4422, 4
        %s4424 = scalar_lea.vmem %s5, %s4423
      $region52: #{tpu_custom_call.1} parent=47 // pred_fallthru
        _
    $region48: #{tpu_custom_call.1} parent=5 // pred_fallthru
      _
  $region6: #{tpu_custom_call.1} parent=0 // loop_footer
    %s15 = sadd.s32 1, %s11
  $region7: #{tpu_custom_call.1} parent=0 // loop_footer_branch
    %10 = sbr.rel target = $region3
  $region8: #{tpu_custom_call.1} parent=0 // loop_exit
    _

</llo_original>
